<compile_context>
chip_gen: v7x
topology: tpu7x:2x2x1
jax: 0.10.0
libtpu: 0.0.40
codegen_flags: <defaults>
</compile_context>

<pallas_src>
import jax
import jax.numpy as jnp
from jax.experimental import pallas as pl
from jax.experimental.pallas import tpu as pltpu


_VMEM_SMALL = 32 * 1024 * 1024   # conv kernels (tiny blocks)
_VMEM_LARGE = 48 * 1024 * 1024   # fc head (fits v7x's 64 MiB with headroom)


# ----------------------------- Pallas kernels ------------------------------

def _matmul_bias_relu_kernel(x_ref, w_ref, b_ref, o_ref):
    # conv1: (tile, 72) x (72, 128) block-diagonal weights -> 8 spatial
    # positions x 16 channels per lane-dense output row.
    acc = jnp.dot(x_ref[...], w_ref[...], preferred_element_type=jnp.float32)
    o_ref[...] = jnp.maximum(acc + b_ref[...], 0.0).astype(o_ref.dtype)


def _conv2_pool_kernel(p_ref, w_ref, b_ref, o_ref):
    # p_ref: (tile, 256) bf16 patches covering a full 2x2 pool window (4x4x16).
    # w_ref: (256, 128) bf16 -- the 4 zero-padded conv2 weight matrices (one
    # per pool offset) concatenated along N.  One MXU dot, then max over the
    # four 32-lane column groups implements the 2x2 maxpool.
    acc = jnp.dot(p_ref[...], w_ref[...], preferred_element_type=jnp.float32)
    m = jnp.maximum(jnp.maximum(acc[:, 0:32], acc[:, 32:64]),
                    jnp.maximum(acc[:, 64:96], acc[:, 96:128]))
    # max_q relu(z_q + b) == relu(max_q z_q + b)   (shared bias, relu monotone)
    o_ref[...] = jnp.maximum(m + b_ref[...], 0.0).astype(o_ref.dtype)


def _mlp_kernel(x_ref, w1_ref, b1_ref, w2_ref, b2_ref, o_ref):
    # fc1 (4608 -> 128 padded) + ReLU + fc2 (128 -> 128 padded), all lane-dense.
    h = jnp.dot(x_ref[...], w1_ref[...], preferred_element_type=jnp.float32)
    h = jnp.maximum(h + b1_ref[...], 0.0)
    y = jnp.dot(h.astype(jnp.bfloat16), w2_ref[...],
                preferred_element_type=jnp.float32)
    o_ref[...] = (y + b2_ref[...]).astype(o_ref.dtype)


# ------------------------------- wrappers -----------------------------------

def _round_up(n, m):
    return ((n + m - 1) // m) * m


def _cparams(vmem=_VMEM_SMALL):
    return pltpu.CompilerParams(dimension_semantics=("parallel",),
                                vmem_limit_bytes=vmem)


def conv1_packed(p1, w1p, b1p, *, tile=1024):
    """relu(p1 @ w1 + b1), 8 spatial positions packed per 128-lane output row.

    p1: (M, 9) bf16 im2col patches.  Returns (M, 16) bf16 activations.
    """
    m = p1.shape[0]
    mg = pl.cdiv(m, 8)                               # grouped rows (8 pos/row)
    tile = min(tile, _round_up(mg, 16))
    mgp = _round_up(mg, tile)
    xp = jnp.pad(p1, ((0, mgp * 8 - m), (0, 0))).reshape(mgp, 72)  # free reshape
    out = pl.pallas_call(
        _matmul_bias_relu_kernel,
        out_shape=jax.ShapeDtypeStruct((mgp, 128), jnp.bfloat16),
        grid=(mgp // tile,),
        in_specs=[pl.BlockSpec((tile, 72), lambda i: (i, 0)),
                  pl.BlockSpec((72, 128), lambda i: (0, 0)),
                  pl.BlockSpec((1, 128), lambda i: (0, 0))],
        out_specs=pl.BlockSpec((tile, 128), lambda i: (i, 0)),
        compiler_params=_cparams(),
        cost_estimate=pl.CostEstimate(
            flops=2 * mgp * 72 * 128, transcendentals=0,
            bytes_accessed=2 * (mgp * 72 + 72 * 128 + mgp * 128)),
    )(xp, w1p, b1p)
    return out.reshape(mgp * 8, 16)[:m]              # free row-major reshape


def conv2_maxpool(patches, w2cat, b2, *, tile=2048):
    """Fused conv2 + bias + ReLU + 2x2 maxpool over 4x4x16 window patches."""
    m, k = patches.shape
    tile = min(tile, _round_up(m, 16))
    mp = _round_up(m, tile)
    xp = jnp.pad(patches, ((0, mp - m), (0, 0)))
    out = pl.pallas_call(
        _conv2_pool_kernel,
        out_shape=jax.ShapeDtypeStruct((mp, 32), jnp.bfloat16),
        grid=(mp // tile,),
        in_specs=[pl.BlockSpec((tile, k), lambda i: (i, 0)),
                  pl.BlockSpec((k, 128), lambda i: (0, 0)),
                  pl.BlockSpec((1, 32), lambda i: (0, 0))],
        out_specs=pl.BlockSpec((tile, 32), lambda i: (i, 0)),
        compiler_params=_cparams(),
        cost_estimate=pl.CostEstimate(
            flops=2 * mp * k * 128, transcendentals=0,
            bytes_accessed=2 * (mp * k + k * 128 + mp * 32)),
    )(xp, w2cat, b2)
    return out[:m]


def mlp_head(x, w1, b1, w2, b2, *, tile=1024):
    """fc1 + ReLU + fc2 fused; weights lane-padded to 128, output sliced to 10."""
    m, k = x.shape
    tile = min(tile, _round_up(m, 16))
    mp = _round_up(m, tile)
    xp = jnp.pad(x, ((0, mp - m), (0, 0)))
    out = pl.pallas_call(
        _mlp_kernel,
        out_shape=jax.ShapeDtypeStruct((mp, 128), jnp.float32),
        grid=(mp // tile,),
        in_specs=[pl.BlockSpec((tile, k), lambda i: (i, 0)),
                  pl.BlockSpec((k, 128), lambda i: (0, 0)),
                  pl.BlockSpec((1, 128), lambda i: (0, 0)),
                  pl.BlockSpec((128, 128), lambda i: (0, 0)),
                  pl.BlockSpec((1, 128), lambda i: (0, 0))],
        out_specs=pl.BlockSpec((tile, 128), lambda i: (i, 0)),
        compiler_params=_cparams(_VMEM_LARGE),
        cost_estimate=pl.CostEstimate(
            flops=2 * mp * (k * 128 + 128 * 128), transcendentals=0,
            bytes_accessed=2 * (mp * k + k * 128 + 128 * 128) + 4 * mp * 128),
    )(xp, w1, b1, w2, b2)
    return out[:m, :10]


# ------------------------------ forward pass --------------------------------

def mnist_net_forward(x_nchw, kp):
    n = x_nchw.shape[0]
    x = x_nchw.reshape(n, 28, 28).astype(jnp.bfloat16)          # C=1, channels-last

    # conv1: im2col on the host (tiny input), packed matmul kernel.
    cols = [x[:, dy:dy + 26, dx:dx + 26] for dy in range(3) for dx in range(3)]
    p1 = jnp.stack(cols, axis=-1).reshape(n * 26 * 26, 9)
    a1 = conv1_packed(p1, kp["w1"], kp["b1"])                   # (N*676, 16)

    # conv2 + ReLU + 2x2 maxpool fused: 4x4x16 pooled-window patches (du,dv,c).
    a1 = a1.reshape(n, 26, 26, 16)
    parts = [a1[:, du:du + 24:2, dv:dv + 24:2, :]
             for du in range(4) for dv in range(4)]             # each (N,12,12,16)
    p2 = jnp.stack(parts, axis=3).reshape(n * 12 * 12, 4 * 4 * 16)
    pooled = conv2_maxpool(p2, kp["w2"], kp["b2"])              # (N*144, 32)

    # dropout1 / dropout2: identity (inference semantics)
    # TODO(synk): PyTorch Dropout training-mode masking not reproduced.
    flat = pooled.reshape(n, 12 * 12 * 32)                      # (h, w, c) flatten order
    return mlp_head(flat, kp["wfc1"], kp["bfc1"], kp["wfc2"], kp["bfc2"])


# ------------------------- parameter preparation ----------------------------

def prepare_params(p):
    """One-time conversion from PyTorch-layout params to the kernel layout."""
    f32, bf16 = jnp.float32, jnp.bfloat16

    # conv1: (16,1,3,3) -> (9,16) rows ordered (dy,dx), then block-diagonal
    # packed so 8 consecutive spatial positions map to one 128-lane row.
    w1_mat = p["w1"][:, 0].reshape(16, 9).T                     # (9, 16)
    w1p = jnp.zeros((8, 9, 8, 16), f32)
    for g in range(8):
        w1p = w1p.at[g, :, g, :].set(w1_mat)
    w1p = w1p.reshape(72, 128)
    b1p = jnp.tile(p["b1"], 8).reshape(1, 128)

    # conv2 fused with maxpool: one (256,32) weight per pool offset q=(ph,pw),
    # laid over the 4x4x16 window (zero outside the 3x3 tap footprint) and
    # concatenated along N -> (256, 128).
    w2 = p["w2"]                                                # (32,16,3,3)
    w2e = jnp.zeros((4, 4, 16, 4, 32), f32)                     # (wy,wx,ci,q,co)
    for q in range(4):
        ph, pw = q // 2, q % 2
        for dy in range(3):
            for dx in range(3):
                w2e = w2e.at[ph + dy, pw + dx, :, q, :].set(w2[:, :, dy, dx].T)
    w2cat = w2e.reshape(4 * 4 * 16, 4 * 32)

    # fc1: permute columns from torch (c,h,w) flatten to (h,w,c), transpose,
    # then zero-pad hidden 64 -> 128 lanes.
    wfc1 = p["wfc1"].reshape(64, 32, 12, 12).transpose(0, 2, 3, 1).reshape(64, 4608).T
    wfc1 = jnp.pad(wfc1, ((0, 0), (0, 64)))                     # (4608, 128)
    bfc1 = jnp.pad(p["bfc1"], (0, 64)).reshape(1, 128)
    # fc2: transpose, zero-pad 64 -> 128 rows and 10 -> 128 output lanes.
    wfc2 = jnp.pad(p["wfc2"].T, ((0, 64), (0, 118)))            # (128, 128)
    bfc2 = jnp.pad(p["bfc2"], (0, 118)).reshape(1, 128)

    return dict(
        w1=w1p.astype(bf16),    b1=b1p.astype(f32),
        w2=w2cat.astype(bf16),  b2=p["b2"].reshape(1, 32).astype(f32),
        wfc1=wfc1.astype(bf16), bfc1=bfc1.astype(f32),
        wfc2=wfc2.astype(bf16), bfc2=bfc2.astype(f32),
    )


def init_params(key):
    ks = jax.random.split(key, 8)

    def nrm(k, shape, scale):
        return scale * jax.random.normal(k, shape, jnp.float32)

    return dict(
        w1=nrm(ks[0], (16, 1, 3, 3), 0.1),   b1=nrm(ks[1], (16,), 0.1),
        w2=nrm(ks[2], (32, 16, 3, 3), 0.05), b2=nrm(ks[3], (32,), 0.1),
        wfc1=nrm(ks[4], (64, 4608), 0.02),   bfc1=nrm(ks[5], (64,), 0.1),
        wfc2=nrm(ks[6], (10, 64), 0.05),     bfc2=nrm(ks[7], (10,), 0.1),
    )


# --------------------------- pure-JAX reference -----------------------------

def reference_forward(x, p):
    dn1 = jax.lax.conv_dimension_numbers(x.shape, p["w1"].shape, ("NCHW", "OIHW", "NCHW"))
    y = jax.lax.conv_general_dilated(x, p["w1"], (1, 1), "VALID", dimension_numbers=dn1)
    y = jnp.maximum(y + p["b1"][None, :, None, None], 0.0)
    dn2 = jax.lax.conv_dimension_numbers(y.shape, p["w2"].shape, ("NCHW", "OIHW", "NCHW"))
    y = jax.lax.conv_general_dilated(y, p["w2"], (1, 1), "VALID", dimension_numbers=dn2)
    y = jnp.maximum(y + p["b2"][None, :, None, None], 0.0)
    n, c, h, w = y.shape
    y = y.reshape(n, c, h // 2, 2, w // 2, 2).max(axis=(3, 5))
    y = y.reshape(n, -1)
    y = jnp.maximum(y @ p["wfc1"].T + p["bfc1"], 0.0)
    return y @ p["wfc2"].T + p["bfc2"]


if __name__ == "__main__":
    key = jax.random.PRNGKey(0)
    k_x, k_p = jax.random.split(key)
    # MNIST-shaped input: fc1 (4608 -> 64) requires 1x28x28 inputs.
    x = jax.random.normal(k_x, (2, 1, 28, 28), jnp.float32)
    params = init_params(k_p)
    kparams = prepare_params(params)

    fwd = jax.jit(mnist_net_forward)
    out = jax.block_until_ready(fwd(x, kparams))
    ref = jax.block_until_ready(reference_forward(x, params))

    assert out.shape == (2, 10), out.shape
    max_err = float(jnp.max(jnp.abs(out - ref)))
    # bf16 matmul inputs (f32 accumulation) -> small, bounded deviation vs f32 ref.
    assert jnp.allclose(out, ref, atol=3e-2, rtol=3e-2), max_err

    print("KERNEL_OK")
</pallas_src>

<mosaic_0001>
module attributes {stable_mosaic.version = 11 : i64} {
  func.func @_matmul_bias_relu_kernel(%arg0: i32, %arg1: memref<176x72xbf16, #tpu.memory_space<vmem>>, %arg2: memref<72x128xbf16, #tpu.memory_space<vmem>>, %arg3: memref<1x128xf32, #tpu.memory_space<vmem>>, %arg4: memref<176x128xbf16, #tpu.memory_space<vmem>>) attributes {dimension_semantics = [#tpu.dimension_semantics<parallel>], iteration_bounds = array<i64: 1>, scalar_prefetch = 0 : i64, scratch_operands = 0 : i64, tpu.core_type = #tpu.core_type<tc>, window_params = [{transform_indices = @transform_0, window_bounds = array<i64: 176, 72>}, {pipeline_mode = #tpu.pipeline_mode<synchronous>, transform_indices = @transform_1, window_bounds = array<i64: 72, 128>}, {pipeline_mode = #tpu.pipeline_mode<synchronous>, transform_indices = @transform_2, window_bounds = array<i64: 1, 128>}, {transform_indices = @transform_3, window_bounds = array<i64: 176, 128>}]} {
    %c0 = arith.constant 0 : index
    %c0_0 = arith.constant 0 : index
    %0 = vector.load %arg1[%c0, %c0_0] : memref<176x72xbf16, #tpu.memory_space<vmem>>, vector<176x72xbf16>
    %c0_1 = arith.constant 0 : index
    %c0_2 = arith.constant 0 : index
    %1 = vector.load %arg2[%c0_1, %c0_2] : memref<72x128xbf16, #tpu.memory_space<vmem>>, vector<72x128xbf16>
    %cst = arith.constant dense<0.000000e+00> : vector<176x128xf32>
    %2 = tpu.matmul %0, %1, %cst {dimension_numbers = #tpu.dot_dimension_numbers<[1], [0], [0], [1], [0, 0, 1, 1], [], []>} : vector<176x72xbf16>, vector<72x128xbf16>, vector<176x128xf32> -> vector<176x128xf32>
    %c0_3 = arith.constant 0 : index
    %c0_4 = arith.constant 0 : index
    %3 = vector.load %arg3[%c0_3, %c0_4] : memref<1x128xf32, #tpu.memory_space<vmem>>, vector<1x128xf32>
    %4 = vector.broadcast %3 : vector<1x128xf32> to vector<176x128xf32>
    %5 = arith.addf %2, %4 : vector<176x128xf32>
    %cst_5 = arith.constant 0.000000e+00 : f32
    %6 = vector.broadcast %cst_5 : f32 to vector<176x128xf32>
    %7 = arith.maximumf %5, %6 : vector<176x128xf32>
    %8 = arith.truncf %7 : vector<176x128xf32> to vector<176x128xbf16>
    %c0_6 = arith.constant 0 : index
    %c0_7 = arith.constant 0 : index
    %9 = vector.load %arg4[%c0_6, %c0_7] : memref<176x128xbf16, #tpu.memory_space<vmem>>, vector<176x128xbf16>
    tpu.vector_store %arg4[%c0_6, %c0_7], %8 {strides = array<i32>} : memref<176x128xbf16, #tpu.memory_space<vmem>>, vector<176x128xbf16>,
    return
  }
  func.func @transform_0(%arg0: i32) -> (i32, i32) {
    %c0_i32 = arith.constant 0 : i32
    %c0_i32_0 = arith.constant 0 : i32
    return %arg0, %c0_i32 : i32, i32
  }
  func.func @transform_1(%arg0: i32) -> (i32, i32) {
    %c0_i32 = arith.constant 0 : i32
    %c0_i32_0 = arith.constant 0 : i32
    %c0_i32_1 = arith.constant 0 : i32
    return %c0_i32, %c0_i32_0 : i32, i32
  }
  func.func @transform_2(%arg0: i32) -> (i32, i32) {
    %c0_i32 = arith.constant 0 : i32
    %c0_i32_0 = arith.constant 0 : i32
    %c0_i32_1 = arith.constant 0 : i32
    return %c0_i32, %c0_i32_0 : i32, i32
  }
  func.func @transform_3(%arg0: i32) -> (i32, i32) {
    %c0_i32 = arith.constant 0 : i32
    %c0_i32_0 = arith.constant 0 : i32
    return %arg0, %c0_i32 : i32, i32
  }
}

module attributes {stable_mosaic.version = 11 : i64} {
  func.func @_conv2_pool_kernel(%arg0: i32, %arg1: memref<288x256xbf16, #tpu.memory_space<vmem>>, %arg2: memref<256x128xbf16, #tpu.memory_space<vmem>>, %arg3: memref<1x32xf32, #tpu.memory_space<vmem>>, %arg4: memref<288x32xbf16, #tpu.memory_space<vmem>>) attributes {dimension_semantics = [#tpu.dimension_semantics<parallel>], iteration_bounds = array<i64: 1>, scalar_prefetch = 0 : i64, scratch_operands = 0 : i64, tpu.core_type = #tpu.core_type<tc>, window_params = [{transform_indices = @transform_0, window_bounds = array<i64: 288, 256>}, {pipeline_mode = #tpu.pipeline_mode<synchronous>, transform_indices = @transform_1, window_bounds = array<i64: 256, 128>}, {pipeline_mode = #tpu.pipeline_mode<synchronous>, transform_indices = @transform_2, window_bounds = array<i64: 1, 32>}, {transform_indices = @transform_3, window_bounds = array<i64: 288, 32>}]} {
    %c0 = arith.constant 0 : index
    %c0_0 = arith.constant 0 : index
    %0 = vector.load %arg1[%c0, %c0_0] : memref<288x256xbf16, #tpu.memory_space<vmem>>, vector<288x256xbf16>
    %c0_1 = arith.constant 0 : index
    %c0_2 = arith.constant 0 : index
    %1 = vector.load %arg2[%c0_1, %c0_2] : memref<256x128xbf16, #tpu.memory_space<vmem>>, vector<256x128xbf16>
    %cst = arith.constant dense<0.000000e+00> : vector<288x128xf32>
    %2 = tpu.matmul %0, %1, %cst {dimension_numbers = #tpu.dot_dimension_numbers<[1], [0], [0], [1], [0, 0, 1, 1], [], []>} : vector<288x256xbf16>, vector<256x128xbf16>, vector<288x128xf32> -> vector<288x128xf32>
    %3 = vector.extract_strided_slice %2 {offsets = [0, 0], sizes = [288, 32], strides = [1, 1]} : vector<288x128xf32> to vector<288x32xf32>
    %4 = vector.extract_strided_slice %2 {offsets = [0, 32], sizes = [288, 32], strides = [1, 1]} : vector<288x128xf32> to vector<288x32xf32>
    %5 = arith.maximumf %3, %4 : vector<288x32xf32>
    %6 = vector.extract_strided_slice %2 {offsets = [0, 64], sizes = [288, 32], strides = [1, 1]} : vector<288x128xf32> to vector<288x32xf32>
    %7 = vector.extract_strided_slice %2 {offsets = [0, 96], sizes = [288, 32], strides = [1, 1]} : vector<288x128xf32> to vector<288x32xf32>
    %8 = arith.maximumf %6, %7 : vector<288x32xf32>
    %9 = arith.maximumf %5, %8 : vector<288x32xf32>
    %c0_3 = arith.constant 0 : index
    %c0_4 = arith.constant 0 : index
    %10 = vector.load %arg3[%c0_3, %c0_4] : memref<1x32xf32, #tpu.memory_space<vmem>>, vector<1x32xf32>
    %11 = vector.broadcast %10 : vector<1x32xf32> to vector<288x32xf32>
    %12 = arith.addf %9, %11 : vector<288x32xf32>
    %cst_5 = arith.constant 0.000000e+00 : f32
    %13 = vector.broadcast %cst_5 : f32 to vector<288x32xf32>
    %14 = arith.maximumf %12, %13 : vector<288x32xf32>
    %15 = arith.truncf %14 : vector<288x32xf32> to vector<288x32xbf16>
    %c0_6 = arith.constant 0 : index
    %c0_7 = arith.constant 0 : index
    %16 = vector.load %arg4[%c0_6, %c0_7] : memref<288x32xbf16, #tpu.memory_space<vmem>>, vector<288x32xbf16>
    tpu.vector_store %arg4[%c0_6, %c0_7], %15 {strides = array<i32>} : memref<288x32xbf16, #tpu.memory_space<vmem>>, vector<288x32xbf16>,
    return
  }
  func.func @transform_0(%arg0: i32) -> (i32, i32) {
    %c0_i32 = arith.constant 0 : i32
    %c0_i32_0 = arith.constant 0 : i32
    return %arg0, %c0_i32 : i32, i32
  }
  func.func @transform_1(%arg0: i32) -> (i32, i32) {
    %c0_i32 = arith.constant 0 : i32
    %c0_i32_0 = arith.constant 0 : i32
    %c0_i32_1 = arith.constant 0 : i32
    return %c0_i32, %c0_i32_0 : i32, i32
  }
  func.func @transform_2(%arg0: i32) -> (i32, i32) {
    %c0_i32 = arith.constant 0 : i32
    %c0_i32_0 = arith.constant 0 : i32
    %c0_i32_1 = arith.constant 0 : i32
    return %c0_i32, %c0_i32_0 : i32, i32
  }
  func.func @transform_3(%arg0: i32) -> (i32, i32) {
    %c0_i32 = arith.constant 0 : i32
    %c0_i32_0 = arith.constant 0 : i32
    return %arg0, %c0_i32 : i32, i32
  }
}

module attributes {stable_mosaic.version = 11 : i64} {
  func.func @_mlp_kernel(%arg0: i32, %arg1: memref<16x4608xbf16, #tpu.memory_space<vmem>>, %arg2: memref<4608x128xbf16, #tpu.memory_space<vmem>>, %arg3: memref<1x128xf32, #tpu.memory_space<vmem>>, %arg4: memref<128x128xbf16, #tpu.memory_space<vmem>>, %arg5: memref<1x128xf32, #tpu.memory_space<vmem>>, %arg6: memref<16x128xf32, #tpu.memory_space<vmem>>) attributes {dimension_semantics = [#tpu.dimension_semantics<parallel>], iteration_bounds = array<i64: 1>, scalar_prefetch = 0 : i64, scratch_operands = 0 : i64, tpu.core_type = #tpu.core_type<tc>, window_params = [{transform_indices = @transform_0, window_bounds = array<i64: 16, 4608>}, {pipeline_mode = #tpu.pipeline_mode<synchronous>, transform_indices = @transform_1, window_bounds = array<i64: 4608, 128>}, {pipeline_mode = #tpu.pipeline_mode<synchronous>, transform_indices = @transform_2, window_bounds = array<i64: 1, 128>}, {pipeline_mode = #tpu.pipeline_mode<synchronous>, transform_indices = @transform_3, window_bounds = array<i64: 128, 128>}, {pipeline_mode = #tpu.pipeline_mode<synchronous>, transform_indices = @transform_4, window_bounds = array<i64: 1, 128>}, {transform_indices = @transform_5, window_bounds = array<i64: 16, 128>}]} {
    %c0 = arith.constant 0 : index
    %c0_0 = arith.constant 0 : index
    %0 = vector.load %arg1[%c0, %c0_0] : memref<16x4608xbf16, #tpu.memory_space<vmem>>, vector<16x4608xbf16>
    %c0_1 = arith.constant 0 : index
    %c0_2 = arith.constant 0 : index
    %1 = vector.load %arg2[%c0_1, %c0_2] : memref<4608x128xbf16, #tpu.memory_space<vmem>>, vector<4608x128xbf16>
    %cst = arith.constant dense<0.000000e+00> : vector<16x128xf32>
    %2 = tpu.matmul %0, %1, %cst {dimension_numbers = #tpu.dot_dimension_numbers<[1], [0], [0], [1], [0, 0, 1, 1], [], []>} : vector<16x4608xbf16>, vector<4608x128xbf16>, vector<16x128xf32> -> vector<16x128xf32>
    %c0_3 = arith.constant 0 : index
    %c0_4 = arith.constant 0 : index
    %3 = vector.load %arg3[%c0_3, %c0_4] : memref<1x128xf32, #tpu.memory_space<vmem>>, vector<1x128xf32>
    %4 = vector.broadcast %3 : vector<1x128xf32> to vector<16x128xf32>
    %5 = arith.addf %2, %4 : vector<16x128xf32>
    %cst_5 = arith.constant 0.000000e+00 : f32
    %6 = vector.broadcast %cst_5 : f32 to vector<16x128xf32>
    %7 = arith.maximumf %5, %6 : vector<16x128xf32>
    %8 = arith.truncf %7 : vector<16x128xf32> to vector<16x128xbf16>
    %c0_6 = arith.constant 0 : index
    %c0_7 = arith.constant 0 : index
    %9 = vector.load %arg4[%c0_6, %c0_7] : memref<128x128xbf16, #tpu.memory_space<vmem>>, vector<128x128xbf16>
    %cst_8 = arith.constant dense<0.000000e+00> : vector<16x128xf32>
    %10 = tpu.matmul %8, %9, %cst_8 {dimension_numbers = #tpu.dot_dimension_numbers<[1], [0], [0], [1], [0, 0, 1, 1], [], []>} : vector<16x128xbf16>, vector<128x128xbf16>, vector<16x128xf32> -> vector<16x128xf32>
    %c0_9 = arith.constant 0 : index
    %c0_10 = arith.constant 0 : index
    %11 = vector.load %arg5[%c0_9, %c0_10] : memref<1x128xf32, #tpu.memory_space<vmem>>, vector<1x128xf32>
    %12 = vector.broadcast %11 : vector<1x128xf32> to vector<16x128xf32>
    %13 = arith.addf %10, %12 : vector<16x128xf32>
    %c0_11 = arith.constant 0 : index
    %c0_12 = arith.constant 0 : index
    %14 = vector.load %arg6[%c0_11, %c0_12] : memref<16x128xf32, #tpu.memory_space<vmem>>, vector<16x128xf32>
    tpu.vector_store %arg6[%c0_11, %c0_12], %13 {strides = array<i32>} : memref<16x128xf32, #tpu.memory_space<vmem>>, vector<16x128xf32>,
    return
  }
  func.func @transform_0(%arg0: i32) -> (i32, i32) {
    %c0_i32 = arith.constant 0 : i32
    %c0_i32_0 = arith.constant 0 : i32
    return %arg0, %c0_i32 : i32, i32
  }
  func.func @transform_1(%arg0: i32) -> (i32, i32) {
    %c0_i32 = arith.constant 0 : i32
    %c0_i32_0 = arith.constant 0 : i32
    %c0_i32_1 = arith.constant 0 : i32
    return %c0_i32, %c0_i32_0 : i32, i32
  }
  func.func @transform_2(%arg0: i32) -> (i32, i32) {
    %c0_i32 = arith.constant 0 : i32
    %c0_i32_0 = arith.constant 0 : i32
    %c0_i32_1 = arith.constant 0 : i32
    return %c0_i32, %c0_i32_0 : i32, i32
  }
  func.func @transform_3(%arg0: i32) -> (i32, i32) {
    %c0_i32 = arith.constant 0 : i32
    %c0_i32_0 = arith.constant 0 : i32
    %c0_i32_1 = arith.constant 0 : i32
    return %c0_i32, %c0_i32_0 : i32, i32
  }
  func.func @transform_4(%arg0: i32) -> (i32, i32) {
    %c0_i32 = arith.constant 0 : i32
    %c0_i32_0 = arith.constant 0 : i32
    %c0_i32_1 = arith.constant 0 : i32
    return %c0_i32, %c0_i32_0 : i32, i32
  }
  func.func @transform_5(%arg0: i32) -> (i32, i32) {
    %c0_i32 = arith.constant 0 : i32
    %c0_i32_0 = arith.constant 0 : i32
    return %arg0, %c0_i32 : i32, i32
  }
}

</mosaic_0001>

<llo_original>
// kernel: mnist_net_forward.3
$region0: #{mnist_net_forward.3}
  #allocation0 [shape = 'u32[]', space=smem, size = 0x4, offset = 0x4, fixed_abs, tag = 'smem constant byte address 0x4 - core index']
  #allocation1 [shape = 'u32[144,128]{1,0:T(1,128)}', space=vmem, size = 0x12000, scoped, tag = 'internal scratch']
  %s0 = inlined_call_operand.vmem [shape: bf16[176,72], index: 0, kind: input, shape index: {}]
  %s1 = inlined_call_operand.vmem [shape: bf16[72,128], index: 1, kind: input, shape index: {}]
  %s2 = inlined_call_operand.vmem [shape: f32[1,128], index: 2, kind: input, shape index: {}]
  %s3 = inlined_call_operand.vmem [shape: bf16[176,128], index: 3, kind: output, shape index: {}]
  %s4 = sld [smem:[#allocation0]]
  $region22: #{mnist_net_forward.3} parent=0
    _
  %s6 = ssub.s32 1, %s4
  %s7 = scalar_select 0, %s6, %s4
  // Predicated region
  $region2: #{mnist_net_forward.3} parent=0 // pred_check
    _
  $region3: #{mnist_net_forward.3} parent=0 // pred_check_branch
    %9 = sbr.rel (0) target = $region5
  $region4: #{mnist_net_forward.3} parent=0 // pred_region
    _
  $region5: #{mnist_net_forward.3} parent=0 // pred_fallthru
    _
  // Predicated region
  $region6: #{mnist_net_forward.3} parent=0 // pred_check
    _
  $region7: #{mnist_net_forward.3} parent=0 // pred_check_branch
    %11 = sbr.rel (0) target = $region9
  $region8: #{mnist_net_forward.3} parent=0 // pred_region
    _
  $region9: #{mnist_net_forward.3} parent=0 // pred_fallthru
    _
  // Predicated region
  $region10: #{mnist_net_forward.3} parent=0 // pred_check
    _
  $region11: #{mnist_net_forward.3} parent=0 // pred_check_branch
    %13 = sbr.rel (0) target = $region13
  $region12: #{mnist_net_forward.3} parent=0 // pred_region
    _
  $region13: #{mnist_net_forward.3} parent=0 // pred_fallthru
    _
  %v15 = vld [vmem:[%s0] sm:$0xf]
  %v16 = vld [vmem:[%s0 + $0x4] sm:$0xf]
  %v17 = vld [vmem:[%s0 + $0x8] sm:$0xf]
  %v18 = vld [vmem:[%s0 + $0xc] sm:$0xf]
  %v19 = vld [vmem:[%s0 + $0x10] sm:$0xf]
  %v20 = vld [vmem:[%s0 + $0x14] sm:$0xf]
  %v21 = vld [vmem:[%s0 + $0x18] sm:$0xf]
  %v22 = vld [vmem:[%s0 + $0x1c] sm:$0xf]
  %v23 = vld [vmem:[%s0 + $0x20] sm:$0xf]
  %v24 = vld [vmem:[%s0 + $0x24] sm:$0xf]
  %v25 = vld [vmem:[%s0 + $0x28] sm:$0xf]
  %v26 = vld [vmem:[%s0 + $0x2c] sm:$0xf]
  %v27 = vld [vmem:[%s0 + $0x30] sm:$0xf]
  %v28 = vld [vmem:[%s0 + $0x34] sm:$0xf]
  %v29 = vld [vmem:[%s0 + $0x38] sm:$0xf]
  %v30 = vld [vmem:[%s0 + $0x3c] sm:$0xf]
  %v31 = vld [vmem:[%s0 + $0x40] sm:$0xf]
  %v32 = vld [vmem:[%s0 + $0x44] sm:$0xf]
  %v33 = vld [vmem:[%s0 + $0x48] sm:$0xf]
  %v34 = vld [vmem:[%s0 + $0x4c] sm:$0xf]
  %v35 = vld [vmem:[%s0 + $0x50] sm:$0xf]
  %v36 = vld [vmem:[%s0 + $0x54] sm:$0xf]
  %v37 = vld [vmem:[%s1] sm:$0xf]
  %v38 = vld [vmem:[%s1 + $0x4] sm:$0xf]
  %v39 = vld [vmem:[%s1 + $0x8] sm:$0xf]
  %v40 = vld [vmem:[%s1 + $0xc] sm:$0xf]
  %v41 = vld [vmem:[%s1 + $0x10] sm:$0xf]
  %v42 = vld [vmem:[%s1 + $0x14] sm:$0xf]
  %v43 = vld [vmem:[%s1 + $0x18] sm:$0xf]
  %v44 = vld [vmem:[%s1 + $0x1c] sm:$0xf]
  %v45 = vld [vmem:[%s1 + $0x20] sm:$0xf]
  %v46 = vld [vmem:[%s2] sm:$0x1]
  %v48 = vlaneseq
  %v49 = vshrl.u32 %v48, 7
  %v50 = vsub.s32 0, %v49
  %v51 = vrot.slane %v46, %v50
  %v75 = vunpack.c.l.b16 %v15
  %v76 = vunpack.c.l.b16 %v16
  %v77 = vunpack.c.l.b16 %v17
  %v78 = vunpack.c.l.b16 %v18
  %v79 = vunpack.c.l.b16 %v19
  %v80 = vunpack.c.l.b16 %v20
  %v81 = vunpack.c.l.b16 %v21
  %v82 = vunpack.c.l.b16 %v22
  %v83 = vunpack.c.l.b16 %v23
  %v84 = vunpack.c.l.b16 %v24
  %v85 = vunpack.c.l.b16 %v25
  %v86 = vunpack.c.l.b16 %v26
  %v87 = vunpack.c.l.b16 %v27
  %v88 = vunpack.c.l.b16 %v28
  %v89 = vunpack.c.l.b16 %v29
  %v90 = vunpack.c.l.b16 %v30
  %v91 = vunpack.c.l.b16 %v31
  %v92 = vunpack.c.l.b16 %v32
  %v93 = vunpack.c.l.b16 %v33
  %v94 = vunpack.c.l.b16 %v34
  %v95 = vunpack.c.l.b16 %v35
  %v96 = vunpack.c.l.b16 %v36
  %v97 = vpack.c.b16 %v76, %v75
  %v98 = vpack.c.b16 %v78, %v77
  %v99 = vpack.c.b16 %v80, %v79
  %v100 = vpack.c.b16 %v82, %v81
  %v101 = vpack.c.b16 %v84, %v83
  %v102 = vpack.c.b16 %v86, %v85
  %v103 = vpack.c.b16 %v88, %v87
  %v104 = vpack.c.b16 %v90, %v89
  %v105 = vpack.c.b16 %v92, %v91
  %v106 = vpack.c.b16 %v94, %v93
  %v107 = vpack.c.b16 %v96, %v95
  %v117 = vunpack.c.l.b16 %v37
  %v118 = vunpack.c.l.b16 %v38
  %v119 = vunpack.c.l.b16 %v39
  %v120 = vunpack.c.l.b16 %v40
  %v121 = vunpack.c.l.b16 %v41
  %v122 = vunpack.c.l.b16 %v42
  %v123 = vunpack.c.l.b16 %v43
  %v124 = vunpack.c.l.b16 %v44
  %v125 = vunpack.c.l.b16 %v45
  %v126 = vpack.c.b16 %v118, %v117
  %v127 = vpack.c.b16 %v120, %v119
  %v128 = vpack.c.b16 %v122, %v121
  %v129 = vpack.c.b16 %v124, %v123
  %v130 = vpack.c.b16 %v125, %v125
  %vm135 = vcmask 588800
  %v137 = vsel %vm135, %v97, 0
  %v140 = vsel %vm135, %v98, 0
  %v143 = vsel %vm135, %v99, 0
  %v146 = vsel %vm135, %v100, 0
  %v149 = vsel %vm135, %v101, 0
  %v152 = vsel %vm135, %v102, 0
  %v155 = vsel %vm135, %v103, 0
  %v158 = vsel %vm135, %v104, 0
  %v161 = vsel %vm135, %v105, 0
  %v164 = vsel %vm135, %v106, 0
  %v167 = vsel %vm135, %v107, 0
  %vm169 = vcmask 1043456
  %v171 = vsel %vm169, %v130, 0
  %173 = vmatprep.subr.bf16.mxu0 0
  %174 = vmatpush1.bf16.msra.mxu0 %v126
  %175 = vmatprep.subr.bf16.mxu0 0
  %176 = vmatpush1.bf16.msra.mxu0 %v127
  %177 = vmatprep.subr.bf16.mxu0 0
  %178 = vmatpush1.bf16.msra.mxu0 %v128
  %179 = vmatprep.subr.bf16.mxu0 0
  %180 = vmatpush1.bf16.msra.mxu0 %v129
  %181 = vmatprep.subr.bf16.mxu0 0
  %182 = vmatpush1.bf16.msra.mxu0 %v171
  %183 = vmatprep.subr.bf16.mxu0 0
  %184 = vmatpush1.bf16.msra.mxu0 0
  %185 = vmatprep.subr.bf16.mxu0 0
  %186 = vmatpush1.bf16.msra.mxu0 0
  %187 = vmatprep.subr.bf16.mxu0 0
  %188 = vmatpush1.bf16.msra.mxu0 0
  %189 = vmatprep.subr.bf16.mxu0 0
  %190 = vmatpush1.bf16.msra.mxu0 0
  %191 = vmatprep.subr.bf16.mxu0 0
  %192 = vmatpush1.bf16.msra.mxu0 0
  %193 = vmatprep.subr.bf16.mxu0 0
  %194 = vmatpush1.bf16.msra.mxu0 0
  %195 = vmatprep.subr.bf16.mxu0 0
  %196 = vmatpush1.bf16.msra.mxu0 0
  %197 = vmatprep.subr.bf16.mxu0 0
  %198 = vmatpush1.bf16.msra.mxu0 0
  %199 = vmatprep.subr.bf16.mxu0 0
  %200 = vmatpush1.bf16.msra.mxu0 0
  %201 = vmatprep.subr.bf16.mxu0 0
  %202 = vmatpush1.bf16.msra.mxu0 0
  %203 = vmatprep.subr.bf16.mxu0 0
  %204 = vmatpush1.bf16.msra.mxu0 0
  %205 = vmatprep.mubr.bf16.mxu0 0
  %206 = vmatmul.mubr.bf16.gmra.mrb[0].mxu0 %v137
  %v207 = vpop.f32.mrb[0].mxu0
  %v208 = vadd.f32 %v51, %v207
  %v209 = vpop.f32.mrb[0].mxu0
  %v210 = vpop.f32.mrb[0].mxu0
  %v211 = vadd.f32 %v51, %v210
  %v212 = vpop.f32.mrb[0].mxu0
  %213 = vmatprep.mubr.bf16.mxu0 0
  %214 = vmatmul.mubr.bf16.gmra.mrb[0].mxu0 %v140
  %v215 = vpop.f32.mrb[0].mxu0
  %v216 = vadd.f32 %v51, %v215
  %v217 = vpop.f32.mrb[0].mxu0
  %v218 = vpop.f32.mrb[0].mxu0
  %v219 = vadd.f32 %v51, %v218
  %v220 = vpop.f32.mrb[0].mxu0
  %221 = vmatprep.mubr.bf16.mxu0 0
  %222 = vmatmul.mubr.bf16.gmra.mrb[0].mxu0 %v143
  %v223 = vpop.f32.mrb[0].mxu0
  %v224 = vadd.f32 %v51, %v223
  %v225 = vpop.f32.mrb[0].mxu0
  %v226 = vpop.f32.mrb[0].mxu0
  %v227 = vadd.f32 %v51, %v226
  %v228 = vpop.f32.mrb[0].mxu0
  %229 = vmatprep.mubr.bf16.mxu0 0
  %230 = vmatmul.mubr.bf16.gmra.mrb[0].mxu0 %v146
  %v231 = vpop.f32.mrb[0].mxu0
  %v232 = vadd.f32 %v51, %v231
  %v233 = vpop.f32.mrb[0].mxu0
  %v234 = vpop.f32.mrb[0].mxu0
  %v235 = vadd.f32 %v51, %v234
  %v236 = vpop.f32.mrb[0].mxu0
  %237 = vmatprep.mubr.bf16.mxu0 0
  %238 = vmatmul.mubr.bf16.gmra.mrb[0].mxu0 %v149
  %v239 = vpop.f32.mrb[0].mxu0
  %v240 = vadd.f32 %v51, %v239
  %v241 = vpop.f32.mrb[0].mxu0
  %v242 = vpop.f32.mrb[0].mxu0
  %v243 = vadd.f32 %v51, %v242
  %v244 = vpop.f32.mrb[0].mxu0
  %245 = vmatprep.mubr.bf16.mxu0 0
  %246 = vmatmul.mubr.bf16.gmra.mrb[0].mxu0 %v152
  %v247 = vpop.f32.mrb[0].mxu0
  %v248 = vadd.f32 %v51, %v247
  %v249 = vpop.f32.mrb[0].mxu0
  %v250 = vpop.f32.mrb[0].mxu0
  %v251 = vadd.f32 %v51, %v250
  %v252 = vpop.f32.mrb[0].mxu0
  %253 = vmatprep.mubr.bf16.mxu0 0
  %254 = vmatmul.mubr.bf16.gmra.mrb[0].mxu0 %v155
  %v255 = vpop.f32.mrb[0].mxu0
  %v256 = vadd.f32 %v51, %v255
  %v257 = vpop.f32.mrb[0].mxu0
  %v258 = vpop.f32.mrb[0].mxu0
  %v259 = vadd.f32 %v51, %v258
  %v260 = vpop.f32.mrb[0].mxu0
  %261 = vmatprep.mubr.bf16.mxu0 0
  %262 = vmatmul.mubr.bf16.gmra.mrb[0].mxu0 %v158
  %v263 = vpop.f32.mrb[0].mxu0
  %v264 = vadd.f32 %v51, %v263
  %v265 = vpop.f32.mrb[0].mxu0
  %v266 = vpop.f32.mrb[0].mxu0
  %v267 = vadd.f32 %v51, %v266
  %v268 = vpop.f32.mrb[0].mxu0
  %269 = vmatprep.mubr.bf16.mxu0 0
  %270 = vmatmul.mubr.bf16.gmra.mrb[0].mxu0 %v161
  %v271 = vpop.f32.mrb[0].mxu0
  %v272 = vadd.f32 %v51, %v271
  %v273 = vpop.f32.mrb[0].mxu0
  %v274 = vpop.f32.mrb[0].mxu0
  %v275 = vadd.f32 %v51, %v274
  %v276 = vpop.f32.mrb[0].mxu0
  %277 = vmatprep.mubr.bf16.mxu0 0
  %278 = vmatmul.mubr.bf16.gmra.mrb[0].mxu0 %v164
  %v279 = vpop.f32.mrb[0].mxu0
  %v280 = vadd.f32 %v51, %v279
  %v281 = vpop.f32.mrb[0].mxu0
  %v282 = vpop.f32.mrb[0].mxu0
  %v283 = vadd.f32 %v51, %v282
  %v284 = vpop.f32.mrb[0].mxu0
  %285 = vmatprep.mubr.bf16.mxu0 0
  %286 = vmatmul.mubr.bf16.gmra.mrb[0].mxu0 %v167
  %v287 = vpop.f32.mrb[0].mxu0
  %v288 = vadd.f32 %v51, %v287
  %v289 = vpop.f32.mrb[0].mxu0
  %v290 = vpop.f32.mrb[0].mxu0
  %v291 = vadd.f32 %v51, %v290
  %v292 = vpop.f32.mrb[0].mxu0
  %293 = vdwg.mxu0
  %v294 = vmax.f32 %v208, 0.0
  %v295 = vmax.f32 %v211, 0.0
  %v296 = vmax.f32 %v216, 0.0
  %v297 = vmax.f32 %v219, 0.0
  %v298 = vmax.f32 %v224, 0.0
  %v299 = vmax.f32 %v227, 0.0
  %v300 = vmax.f32 %v232, 0.0
  %v301 = vmax.f32 %v235, 0.0
  %v302 = vmax.f32 %v240, 0.0
  %v303 = vmax.f32 %v243, 0.0
  %v304 = vmax.f32 %v248, 0.0
  %v305 = vmax.f32 %v251, 0.0
  %v306 = vmax.f32 %v256, 0.0
  %v307 = vmax.f32 %v259, 0.0
  %v308 = vmax.f32 %v264, 0.0
  %v309 = vmax.f32 %v267, 0.0
  %v310 = vmax.f32 %v272, 0.0
  %v311 = vmax.f32 %v275, 0.0
  %v312 = vmax.f32 %v280, 0.0
  %v313 = vmax.f32 %v283, 0.0
  %v314 = vmax.f32 %v288, 0.0
  %v315 = vmax.f32 %v291, 0.0
  %v316 = vpack.c.bf16 %v295, %v294
  %v317 = vpack.c.bf16 %v297, %v296
  %v318 = vpack.c.bf16 %v299, %v298
  %v319 = vpack.c.bf16 %v301, %v300
  %v320 = vpack.c.bf16 %v303, %v302
  %v321 = vpack.c.bf16 %v305, %v304
  %v322 = vpack.c.bf16 %v307, %v306
  %v323 = vpack.c.bf16 %v309, %v308
  %v324 = vpack.c.bf16 %v311, %v310
  %v325 = vpack.c.bf16 %v313, %v312
  %v326 = vpack.c.bf16 %v315, %v314
  %v338 = vunpack.c.l.b16 %v316
  %v339 = vunpack.c.h.b16 %v316
  %v340 = vunpack.c.l.b16 %v317
  %v341 = vunpack.c.h.b16 %v317
  %v342 = vunpack.c.l.b16 %v318
  %v343 = vunpack.c.h.b16 %v318
  %v344 = vunpack.c.l.b16 %v319
  %v345 = vunpack.c.h.b16 %v319
  %v346 = vunpack.c.l.b16 %v320
  %v347 = vunpack.c.h.b16 %v320
  %v348 = vunpack.c.l.b16 %v321
  %v349 = vunpack.c.h.b16 %v321
  %v350 = vunpack.c.l.b16 %v322
  %v351 = vunpack.c.h.b16 %v322
  %v352 = vunpack.c.l.b16 %v323
  %v353 = vunpack.c.h.b16 %v323
  %v354 = vunpack.c.l.b16 %v324
  %v355 = vunpack.c.h.b16 %v324
  %v356 = vunpack.c.l.b16 %v325
  %v357 = vunpack.c.h.b16 %v325
  %v358 = vunpack.c.l.b16 %v326
  %v359 = vunpack.c.h.b16 %v326
  %v360 = vpack.c.b16 %v338, %v338
  %v361 = vpack.c.b16 %v339, %v339
  %v362 = vpack.c.b16 %v340, %v340
  %v363 = vpack.c.b16 %v341, %v341
  %v364 = vpack.c.b16 %v342, %v342
  %v365 = vpack.c.b16 %v343, %v343
  %v366 = vpack.c.b16 %v344, %v344
  %v367 = vpack.c.b16 %v345, %v345
  %v368 = vpack.c.b16 %v346, %v346
  %v369 = vpack.c.b16 %v347, %v347
  %v370 = vpack.c.b16 %v348, %v348
  %v371 = vpack.c.b16 %v349, %v349
  %v372 = vpack.c.b16 %v350, %v350
  %v373 = vpack.c.b16 %v351, %v351
  %v374 = vpack.c.b16 %v352, %v352
  %v375 = vpack.c.b16 %v353, %v353
  %v376 = vpack.c.b16 %v354, %v354
  %v377 = vpack.c.b16 %v355, %v355
  %v378 = vpack.c.b16 %v356, %v356
  %v379 = vpack.c.b16 %v357, %v357
  %v380 = vpack.c.b16 %v358, %v358
  %v381 = vpack.c.b16 %v359, %v359
  %404 = vst [vmem:[%s3] sm:$0xf] %v360
  %405 = vst [vmem:[%s3 + $0x4] sm:$0xf] %v361
  %406 = vst [vmem:[%s3 + $0x8] sm:$0xf] %v362
  %407 = vst [vmem:[%s3 + $0xc] sm:$0xf] %v363
  %408 = vst [vmem:[%s3 + $0x10] sm:$0xf] %v364
  %409 = vst [vmem:[%s3 + $0x14] sm:$0xf] %v365
  %410 = vst [vmem:[%s3 + $0x18] sm:$0xf] %v366
  %411 = vst [vmem:[%s3 + $0x1c] sm:$0xf] %v367
  %412 = vst [vmem:[%s3 + $0x20] sm:$0xf] %v368
  %413 = vst [vmem:[%s3 + $0x24] sm:$0xf] %v369
  %414 = vst [vmem:[%s3 + $0x28] sm:$0xf] %v370
  %415 = vst [vmem:[%s3 + $0x2c] sm:$0xf] %v371
  %416 = vst [vmem:[%s3 + $0x30] sm:$0xf] %v372
  %417 = vst [vmem:[%s3 + $0x34] sm:$0xf] %v373
  %418 = vst [vmem:[%s3 + $0x38] sm:$0xf] %v374
  %419 = vst [vmem:[%s3 + $0x3c] sm:$0xf] %v375
  %420 = vst [vmem:[%s3 + $0x40] sm:$0xf] %v376
  %421 = vst [vmem:[%s3 + $0x44] sm:$0xf] %v377
  %422 = vst [vmem:[%s3 + $0x48] sm:$0xf] %v378
  %423 = vst [vmem:[%s3 + $0x4c] sm:$0xf] %v379
  %424 = vst [vmem:[%s3 + $0x50] sm:$0xf] %v380
  %425 = vst [vmem:[%s3 + $0x54] sm:$0xf] %v381
  // Predicated region
  $region14: #{mnist_net_forward.3} parent=0 // pred_check
    _
  $region15: #{mnist_net_forward.3} parent=0 // pred_check_branch
    %427 = sbr.rel (0) target = $region17
  $region16: #{mnist_net_forward.3} parent=0 // pred_region
    _
  $region17: #{mnist_net_forward.3} parent=0 // pred_fallthru
    _
  // Predicated region
  $region18: #{mnist_net_forward.3} parent=0 // pred_check
    _
  $region19: #{mnist_net_forward.3} parent=0 // pred_check_branch
    %429 = sbr.rel (0) target = $region21
  $region20: #{mnist_net_forward.3} parent=0 // pred_region
    _
  $region21: #{mnist_net_forward.3} parent=0 // pred_fallthru
    _

// kernel: mnist_net_forward.4
$region0: #{mnist_net_forward.4}
  #allocation0 [shape = 'u32[]', space=smem, size = 0x4, offset = 0x4, fixed_abs, tag = 'smem constant byte address 0x4 - core index']
  #allocation1 [shape = 'u32[144,128]{1,0:T(1,128)}', space=vmem, size = 0x12000, scoped, tag = 'internal scratch']
  %s0 = inlined_call_operand.vmem [shape: bf16[288,256], index: 0, kind: input, shape index: {}]
  %s1 = inlined_call_operand.vmem [shape: bf16[256,128], index: 1, kind: input, shape index: {}]
  %s2 = inlined_call_operand.vmem [shape: f32[1,32], index: 2, kind: input, shape index: {}]
  %s3 = inlined_call_operand.vmem [shape: bf16[288,32], index: 3, kind: output, shape index: {}]
  %s4 = sld [smem:[#allocation0]]
  $region22: #{mnist_net_forward.4} parent=0
    _
  %s6 = ssub.s32 1, %s4
  %s7 = scalar_select 0, %s6, %s4
  // Predicated region
  $region2: #{mnist_net_forward.4} parent=0 // pred_check
    _
  $region3: #{mnist_net_forward.4} parent=0 // pred_check_branch
    %9 = sbr.rel (0) target = $region5
  $region4: #{mnist_net_forward.4} parent=0 // pred_region
    _
  $region5: #{mnist_net_forward.4} parent=0 // pred_fallthru
    _
  // Predicated region
  $region6: #{mnist_net_forward.4} parent=0 // pred_check
    _
  $region7: #{mnist_net_forward.4} parent=0 // pred_check_branch
    %11 = sbr.rel (0) target = $region9
  $region8: #{mnist_net_forward.4} parent=0 // pred_region
    _
  $region9: #{mnist_net_forward.4} parent=0 // pred_fallthru
    _
  // Predicated region
  $region10: #{mnist_net_forward.4} parent=0 // pred_check
    _
  $region11: #{mnist_net_forward.4} parent=0 // pred_check_branch
    %13 = sbr.rel (0) target = $region13
  $region12: #{mnist_net_forward.4} parent=0 // pred_region
    _
  $region13: #{mnist_net_forward.4} parent=0 // pred_fallthru
    _
  %v15 = vld [vmem:[%s0] sm:$0xff]
  %v16 = vld [vmem:[%s0 + $0x8] sm:$0xff]
  %v17 = vld [vmem:[%s0 + $0x10] sm:$0xff]
  %v18 = vld [vmem:[%s0 + $0x18] sm:$0xff]
  %v19 = vld [vmem:[%s0 + $0x20] sm:$0xff]
  %v20 = vld [vmem:[%s0 + $0x28] sm:$0xff]
  %v21 = vld [vmem:[%s0 + $0x30] sm:$0xff]
  %v22 = vld [vmem:[%s0 + $0x38] sm:$0xff]
  %v23 = vld [vmem:[%s0 + $0x40] sm:$0xff]
  %v24 = vld [vmem:[%s0 + $0x48] sm:$0xff]
  %v25 = vld [vmem:[%s0 + $0x50] sm:$0xff]
  %v26 = vld [vmem:[%s0 + $0x58] sm:$0xff]
  %v27 = vld [vmem:[%s0 + $0x60] sm:$0xff]
  %v28 = vld [vmem:[%s0 + $0x68] sm:$0xff]
  %v29 = vld [vmem:[%s0 + $0x70] sm:$0xff]
  %v30 = vld [vmem:[%s0 + $0x78] sm:$0xff]
  %v31 = vld [vmem:[%s0 + $0x80] sm:$0xff]
  %v32 = vld [vmem:[%s0 + $0x88] sm:$0xff]
  %v33 = vld [vmem:[%s0 + $0x90] sm:$0xff]
  %v34 = vld [vmem:[%s0 + $0x98] sm:$0xff]
  %v35 = vld [vmem:[%s0 + $0xa0] sm:$0xff]
  %v36 = vld [vmem:[%s0 + $0xa8] sm:$0xff]
  %v37 = vld [vmem:[%s0 + $0xb0] sm:$0xff]
  %v38 = vld [vmem:[%s0 + $0xb8] sm:$0xff]
  %v39 = vld [vmem:[%s0 + $0xc0] sm:$0xff]
  %v40 = vld [vmem:[%s0 + $0xc8] sm:$0xff]
  %v41 = vld [vmem:[%s0 + $0xd0] sm:$0xff]
  %v42 = vld [vmem:[%s0 + $0xd8] sm:$0xff]
  %v43 = vld [vmem:[%s0 + $0xe0] sm:$0xff]
  %v44 = vld [vmem:[%s0 + $0xe8] sm:$0xff]
  %v45 = vld [vmem:[%s0 + $0xf0] sm:$0xff]
  %v46 = vld [vmem:[%s0 + $0xf8] sm:$0xff]
  %v47 = vld [vmem:[%s0 + $0x100] sm:$0xff]
  %v48 = vld [vmem:[%s0 + $0x108] sm:$0xff]
  %v49 = vld [vmem:[%s0 + $0x110] sm:$0xff]
  %v50 = vld [vmem:[%s0 + $0x118] sm:$0xff]
  %v51 = vld [vmem:[%s1] sm:$0xf]
  %v52 = vld [vmem:[%s1 + $0x4] sm:$0xf]
  %v53 = vld [vmem:[%s1 + $0x8] sm:$0xf]
  %v54 = vld [vmem:[%s1 + $0xc] sm:$0xf]
  %v55 = vld [vmem:[%s1 + $0x10] sm:$0xf]
  %v56 = vld [vmem:[%s1 + $0x14] sm:$0xf]
  %v57 = vld [vmem:[%s1 + $0x18] sm:$0xf]
  %v58 = vld [vmem:[%s1 + $0x1c] sm:$0xf]
  %v59 = vld [vmem:[%s1 + $0x20] sm:$0xf]
  %v60 = vld [vmem:[%s1 + $0x24] sm:$0xf]
  %v61 = vld [vmem:[%s1 + $0x28] sm:$0xf]
  %v62 = vld [vmem:[%s1 + $0x2c] sm:$0xf]
  %v63 = vld [vmem:[%s1 + $0x30] sm:$0xf]
  %v64 = vld [vmem:[%s1 + $0x34] sm:$0xf]
  %v65 = vld [vmem:[%s1 + $0x38] sm:$0xf]
  %v66 = vld [vmem:[%s1 + $0x3c] sm:$0xf]
  %v67 = vld [vmem:[%s1 + $0x40] sm:$0xf]
  %v68 = vld [vmem:[%s1 + $0x44] sm:$0xf]
  %v69 = vld [vmem:[%s1 + $0x48] sm:$0xf]
  %v70 = vld [vmem:[%s1 + $0x4c] sm:$0xf]
  %v71 = vld [vmem:[%s1 + $0x50] sm:$0xf]
  %v72 = vld [vmem:[%s1 + $0x54] sm:$0xf]
  %v73 = vld [vmem:[%s1 + $0x58] sm:$0xf]
  %v74 = vld [vmem:[%s1 + $0x5c] sm:$0xf]
  %v75 = vld [vmem:[%s1 + $0x60] sm:$0xf]
  %v76 = vld [vmem:[%s1 + $0x64] sm:$0xf]
  %v77 = vld [vmem:[%s1 + $0x68] sm:$0xf]
  %v78 = vld [vmem:[%s1 + $0x6c] sm:$0xf]
  %v79 = vld [vmem:[%s1 + $0x70] sm:$0xf]
  %v80 = vld [vmem:[%s1 + $0x74] sm:$0xf]
  %v81 = vld [vmem:[%s1 + $0x78] sm:$0xf]
  %v82 = vld [vmem:[%s1 + $0x7c] sm:$0xf]
  %v119 = vunpack.c.l.b16 %v15
  %v120 = vunpack.c.h.b16 %v15
  %v121 = vunpack.c.l.b16 %v16
  %v122 = vunpack.c.h.b16 %v16
  %v123 = vunpack.c.l.b16 %v17
  %v124 = vunpack.c.h.b16 %v17
  %v125 = vunpack.c.l.b16 %v18
  %v126 = vunpack.c.h.b16 %v18
  %v127 = vunpack.c.l.b16 %v19
  %v128 = vunpack.c.h.b16 %v19
  %v129 = vunpack.c.l.b16 %v20
  %v130 = vunpack.c.h.b16 %v20
  %v131 = vunpack.c.l.b16 %v21
  %v132 = vunpack.c.h.b16 %v21
  %v133 = vunpack.c.l.b16 %v22
  %v134 = vunpack.c.h.b16 %v22
  %v135 = vunpack.c.l.b16 %v23
  %v136 = vunpack.c.h.b16 %v23
  %v137 = vunpack.c.l.b16 %v24
  %v138 = vunpack.c.h.b16 %v24
  %v139 = vunpack.c.l.b16 %v25
  %v140 = vunpack.c.h.b16 %v25
  %v141 = vunpack.c.l.b16 %v26
  %v142 = vunpack.c.h.b16 %v26
  %v143 = vunpack.c.l.b16 %v27
  %v144 = vunpack.c.h.b16 %v27
  %v145 = vunpack.c.l.b16 %v28
  %v146 = vunpack.c.h.b16 %v28
  %v147 = vunpack.c.l.b16 %v29
  %v148 = vunpack.c.h.b16 %v29
  %v149 = vunpack.c.l.b16 %v30
  %v150 = vunpack.c.h.b16 %v30
  %v151 = vunpack.c.l.b16 %v31
  %v152 = vunpack.c.h.b16 %v31
  %v153 = vunpack.c.l.b16 %v32
  %v154 = vunpack.c.h.b16 %v32
  %v155 = vunpack.c.l.b16 %v33
  %v156 = vunpack.c.h.b16 %v33
  %v157 = vunpack.c.l.b16 %v34
  %v158 = vunpack.c.h.b16 %v34
  %v159 = vunpack.c.l.b16 %v35
  %v160 = vunpack.c.h.b16 %v35
  %v161 = vunpack.c.l.b16 %v36
  %v162 = vunpack.c.h.b16 %v36
  %v163 = vunpack.c.l.b16 %v37
  %v164 = vunpack.c.h.b16 %v37
  %v165 = vunpack.c.l.b16 %v38
  %v166 = vunpack.c.h.b16 %v38
  %v167 = vunpack.c.l.b16 %v39
  %v168 = vunpack.c.h.b16 %v39
  %v169 = vunpack.c.l.b16 %v40
  %v170 = vunpack.c.h.b16 %v40
  %v171 = vunpack.c.l.b16 %v41
  %v172 = vunpack.c.h.b16 %v41
  %v173 = vunpack.c.l.b16 %v42
  %v174 = vunpack.c.h.b16 %v42
  %v175 = vunpack.c.l.b16 %v43
  %v176 = vunpack.c.h.b16 %v43
  %v177 = vunpack.c.l.b16 %v44
  %v178 = vunpack.c.h.b16 %v44
  %v179 = vunpack.c.l.b16 %v45
  %v180 = vunpack.c.h.b16 %v45
  %v181 = vunpack.c.l.b16 %v46
  %v182 = vunpack.c.h.b16 %v46
  %v183 = vunpack.c.l.b16 %v47
  %v184 = vunpack.c.h.b16 %v47
  %v185 = vunpack.c.l.b16 %v48
  %v186 = vunpack.c.h.b16 %v48
  %v187 = vunpack.c.l.b16 %v49
  %v188 = vunpack.c.h.b16 %v49
  %v189 = vunpack.c.l.b16 %v50
  %v190 = vunpack.c.h.b16 %v50
  %v191 = vpack.c.b16 %v121, %v119
  %v192 = vpack.c.b16 %v122, %v120
  %v193 = vpack.c.b16 %v125, %v123
  %v194 = vpack.c.b16 %v126, %v124
  %v195 = vpack.c.b16 %v129, %v127
  %v196 = vpack.c.b16 %v130, %v128
  %v197 = vpack.c.b16 %v133, %v131
  %v198 = vpack.c.b16 %v134, %v132
  %v199 = vpack.c.b16 %v137, %v135
  %v200 = vpack.c.b16 %v138, %v136
  %v201 = vpack.c.b16 %v141, %v139
  %v202 = vpack.c.b16 %v142, %v140
  %v203 = vpack.c.b16 %v145, %v143
  %v204 = vpack.c.b16 %v146, %v144
  %v205 = vpack.c.b16 %v149, %v147
  %v206 = vpack.c.b16 %v150, %v148
  %v207 = vpack.c.b16 %v153, %v151
  %v208 = vpack.c.b16 %v154, %v152
  %v209 = vpack.c.b16 %v157, %v155
  %v210 = vpack.c.b16 %v158, %v156
  %v211 = vpack.c.b16 %v161, %v159
  %v212 = vpack.c.b16 %v162, %v160
  %v213 = vpack.c.b16 %v165, %v163
  %v214 = vpack.c.b16 %v166, %v164
  %v215 = vpack.c.b16 %v169, %v167
  %v216 = vpack.c.b16 %v170, %v168
  %v217 = vpack.c.b16 %v173, %v171
  %v218 = vpack.c.b16 %v174, %v172
  %v219 = vpack.c.b16 %v177, %v175
  %v220 = vpack.c.b16 %v178, %v176
  %v221 = vpack.c.b16 %v181, %v179
  %v222 = vpack.c.b16 %v182, %v180
  %v223 = vpack.c.b16 %v185, %v183
  %v224 = vpack.c.b16 %v186, %v184
  %v225 = vpack.c.b16 %v189, %v187
  %v226 = vpack.c.b16 %v190, %v188
  %v295 = vunpack.c.l.b16 %v51
  %v296 = vunpack.c.l.b16 %v52
  %v297 = vunpack.c.l.b16 %v53
  %v298 = vunpack.c.l.b16 %v54
  %v299 = vunpack.c.l.b16 %v55
  %v300 = vunpack.c.l.b16 %v56
  %v301 = vunpack.c.l.b16 %v57
  %v302 = vunpack.c.l.b16 %v58
  %v303 = vunpack.c.l.b16 %v59
  %v304 = vunpack.c.l.b16 %v60
  %v305 = vunpack.c.l.b16 %v61
  %v306 = vunpack.c.l.b16 %v62
  %v307 = vunpack.c.l.b16 %v63
  %v308 = vunpack.c.l.b16 %v64
  %v309 = vunpack.c.l.b16 %v65
  %v310 = vunpack.c.l.b16 %v66
  %v311 = vunpack.c.l.b16 %v67
  %v312 = vunpack.c.l.b16 %v68
  %v313 = vunpack.c.l.b16 %v69
  %v314 = vunpack.c.l.b16 %v70
  %v315 = vunpack.c.l.b16 %v71
  %v316 = vunpack.c.l.b16 %v72
  %v317 = vunpack.c.l.b16 %v73
  %v318 = vunpack.c.l.b16 %v74
  %v319 = vunpack.c.l.b16 %v75
  %v320 = vunpack.c.l.b16 %v76
  %v321 = vunpack.c.l.b16 %v77
  %v322 = vunpack.c.l.b16 %v78
  %v323 = vunpack.c.l.b16 %v79
  %v324 = vunpack.c.l.b16 %v80
  %v325 = vunpack.c.l.b16 %v81
  %v326 = vunpack.c.l.b16 %v82
  %v327 = vpack.c.b16 %v296, %v295
  %v328 = vpack.c.b16 %v298, %v297
  %v329 = vpack.c.b16 %v300, %v299
  %v330 = vpack.c.b16 %v302, %v301
  %v331 = vpack.c.b16 %v304, %v303
  %v332 = vpack.c.b16 %v306, %v305
  %v333 = vpack.c.b16 %v308, %v307
  %v334 = vpack.c.b16 %v310, %v309
  %v335 = vpack.c.b16 %v312, %v311
  %v336 = vpack.c.b16 %v314, %v313
  %v337 = vpack.c.b16 %v316, %v315
  %v338 = vpack.c.b16 %v318, %v317
  %v339 = vpack.c.b16 %v320, %v319
  %v340 = vpack.c.b16 %v322, %v321
  %v341 = vpack.c.b16 %v324, %v323
  %v342 = vpack.c.b16 %v326, %v325
  %359 = vmatprep.subr.bf16.mxu0 0
  %360 = vmatpush1.bf16.msra.mxu0 %v327
  %361 = vmatprep.subr.bf16.mxu0 0
  %362 = vmatpush1.bf16.msra.mxu0 %v328
  %363 = vmatprep.subr.bf16.mxu0 0
  %364 = vmatpush1.bf16.msra.mxu0 %v329
  %365 = vmatprep.subr.bf16.mxu0 0
  %366 = vmatpush1.bf16.msra.mxu0 %v330
  %367 = vmatprep.subr.bf16.mxu0 0
  %368 = vmatpush1.bf16.msra.mxu0 %v331
  %369 = vmatprep.subr.bf16.mxu0 0
  %370 = vmatpush1.bf16.msra.mxu0 %v332
  %371 = vmatprep.subr.bf16.mxu0 0
  %372 = vmatpush1.bf16.msra.mxu0 %v333
  %373 = vmatprep.subr.bf16.mxu0 0
  %374 = vmatpush1.bf16.msra.mxu0 %v334
  %375 = vmatprep.subr.bf16.mxu0 0
  %376 = vmatpush1.bf16.msra.mxu0 %v335
  %377 = vmatprep.subr.bf16.mxu0 0
  %378 = vmatpush1.bf16.msra.mxu0 %v336
  %379 = vmatprep.subr.bf16.mxu0 0
  %380 = vmatpush1.bf16.msra.mxu0 %v337
  %381 = vmatprep.subr.bf16.mxu0 0
  %382 = vmatpush1.bf16.msra.mxu0 %v338
  %383 = vmatprep.subr.bf16.mxu0 0
  %384 = vmatpush1.bf16.msra.mxu0 %v339
  %385 = vmatprep.subr.bf16.mxu0 0
  %386 = vmatpush1.bf16.msra.mxu0 %v340
  %387 = vmatprep.subr.bf16.mxu0 0
  %388 = vmatpush1.bf16.msra.mxu0 %v341
  %389 = vmatprep.subr.bf16.mxu0 0
  %390 = vmatpush1.bf16.msra.mxu0 %v342
  %391 = vmatprep.mubr.bf16.mxu0 %v192
  %392 = vmatmul.mubr.bf16.gmra.mrb[0].mxu0 %v191
  %v393 = vpop.f32.mrb[0].mxu0
  %v394 = vadd.f32 0.0, %v393
  %v395 = vpop.f32.mrb[0].mxu0
  %v396 = vpop.f32.mrb[0].mxu0
  %v397 = vadd.f32 0.0, %v396
  %v398 = vpop.f32.mrb[0].mxu0
  %399 = vmatprep.mubr.bf16.mxu0 %v194
  %400 = vmatmul.mubr.bf16.gmra.mrb[0].mxu0 %v193
  %v401 = vpop.f32.mrb[0].mxu0
  %v402 = vadd.f32 0.0, %v401
  %v403 = vpop.f32.mrb[0].mxu0
  %v404 = vpop.f32.mrb[0].mxu0
  %v405 = vadd.f32 0.0, %v404
  %v406 = vpop.f32.mrb[0].mxu0
  %407 = vmatprep.mubr.bf16.mxu0 %v196
  %408 = vmatmul.mubr.bf16.gmra.mrb[0].mxu0 %v195
  %v409 = vpop.f32.mrb[0].mxu0
  %v410 = vadd.f32 0.0, %v409
  %v411 = vpop.f32.mrb[0].mxu0
  %v412 = vpop.f32.mrb[0].mxu0
  %v413 = vadd.f32 0.0, %v412
  %v414 = vpop.f32.mrb[0].mxu0
  %415 = vmatprep.mubr.bf16.mxu0 %v198
  %416 = vmatmul.mubr.bf16.gmra.mrb[0].mxu0 %v197
  %v417 = vpop.f32.mrb[0].mxu0
  %v418 = vadd.f32 0.0, %v417
  %v419 = vpop.f32.mrb[0].mxu0
  %v420 = vpop.f32.mrb[0].mxu0
  %v421 = vadd.f32 0.0, %v420
  %v422 = vpop.f32.mrb[0].mxu0
  %423 = vmatprep.mubr.bf16.mxu0 %v200
  %424 = vmatmul.mubr.bf16.gmra.mrb[0].mxu0 %v199
  %v425 = vpop.f32.mrb[0].mxu0
  %v426 = vadd.f32 0.0, %v425
  %v427 = vpop.f32.mrb[0].mxu0
  %v428 = vpop.f32.mrb[0].mxu0
  %v429 = vadd.f32 0.0, %v428
  %v430 = vpop.f32.mrb[0].mxu0
  %431 = vmatprep.mubr.bf16.mxu0 %v202
  %432 = vmatmul.mubr.bf16.gmra.mrb[0].mxu0 %v201
  %v433 = vpop.f32.mrb[0].mxu0
  %v434 = vadd.f32 0.0, %v433
  %v435 = vpop.f32.mrb[0].mxu0
  %v436 = vpop.f32.mrb[0].mxu0
  %v437 = vadd.f32 0.0, %v436
  %v438 = vpop.f32.mrb[0].mxu0
  %439 = vmatprep.mubr.bf16.mxu0 %v204
  %440 = vmatmul.mubr.bf16.gmra.mrb[0].mxu0 %v203
  %v441 = vpop.f32.mrb[0].mxu0
  %v442 = vadd.f32 0.0, %v441
  %v443 = vpop.f32.mrb[0].mxu0
  %v444 = vpop.f32.mrb[0].mxu0
  %v445 = vadd.f32 0.0, %v444
  %v446 = vpop.f32.mrb[0].mxu0
  %447 = vmatprep.mubr.bf16.mxu0 %v206
  %448 = vmatmul.mubr.bf16.gmra.mrb[0].mxu0 %v205
  %v449 = vpop.f32.mrb[0].mxu0
  %v450 = vadd.f32 0.0, %v449
  %v451 = vpop.f32.mrb[0].mxu0
  %v452 = vpop.f32.mrb[0].mxu0
  %v453 = vadd.f32 0.0, %v452
  %v454 = vpop.f32.mrb[0].mxu0
  %455 = vmatprep.mubr.bf16.mxu0 %v208
  %456 = vmatmul.mubr.bf16.gmra.mrb[0].mxu0 %v207
  %v457 = vpop.f32.mrb[0].mxu0
  %v458 = vadd.f32 0.0, %v457
  %v459 = vpop.f32.mrb[0].mxu0
  %v460 = vpop.f32.mrb[0].mxu0
  %v461 = vadd.f32 0.0, %v460
  %v462 = vpop.f32.mrb[0].mxu0
  %463 = vmatprep.mubr.bf16.mxu0 %v210
  %464 = vmatmul.mubr.bf16.gmra.mrb[0].mxu0 %v209
  %v465 = vpop.f32.mrb[0].mxu0
  %v466 = vadd.f32 0.0, %v465
  %v467 = vpop.f32.mrb[0].mxu0
  %v468 = vpop.f32.mrb[0].mxu0
  %v469 = vadd.f32 0.0, %v468
  %v470 = vpop.f32.mrb[0].mxu0
  %471 = vmatprep.mubr.bf16.mxu0 %v212
  %472 = vmatmul.mubr.bf16.gmra.mrb[0].mxu0 %v211
  %v473 = vpop.f32.mrb[0].mxu0
  %v474 = vadd.f32 0.0, %v473
  %v475 = vpop.f32.mrb[0].mxu0
  %v476 = vpop.f32.mrb[0].mxu0
  %v477 = vadd.f32 0.0, %v476
  %v478 = vpop.f32.mrb[0].mxu0
  %479 = vmatprep.mubr.bf16.mxu0 %v214
  %480 = vmatmul.mubr.bf16.gmra.mrb[0].mxu0 %v213
  %v481 = vpop.f32.mrb[0].mxu0
  %v482 = vadd.f32 0.0, %v481
  %v483 = vpop.f32.mrb[0].mxu0
  %v484 = vpop.f32.mrb[0].mxu0
  %v485 = vadd.f32 0.0, %v484
  %v486 = vpop.f32.mrb[0].mxu0
  %487 = vmatprep.mubr.bf16.mxu0 %v216
  %488 = vmatmul.mubr.bf16.gmra.mrb[0].mxu0 %v215
  %v489 = vpop.f32.mrb[0].mxu0
  %v490 = vadd.f32 0.0, %v489
  %v491 = vpop.f32.mrb[0].mxu0
  %v492 = vpop.f32.mrb[0].mxu0
  %v493 = vadd.f32 0.0, %v492
  %v494 = vpop.f32.mrb[0].mxu0
  %495 = vmatprep.mubr.bf16.mxu0 %v218
  %496 = vmatmul.mubr.bf16.gmra.mrb[0].mxu0 %v217
  %v497 = vpop.f32.mrb[0].mxu0
  %v498 = vadd.f32 0.0, %v497
  %v499 = vpop.f32.mrb[0].mxu0
  %v500 = vpop.f32.mrb[0].mxu0
  %v501 = vadd.f32 0.0, %v500
  %v502 = vpop.f32.mrb[0].mxu0
  %503 = vmatprep.mubr.bf16.mxu0 %v220
  %504 = vmatmul.mubr.bf16.gmra.mrb[0].mxu0 %v219
  %v505 = vpop.f32.mrb[0].mxu0
  %v506 = vadd.f32 0.0, %v505
  %v507 = vpop.f32.mrb[0].mxu0
  %v508 = vpop.f32.mrb[0].mxu0
  %v509 = vadd.f32 0.0, %v508
  %v510 = vpop.f32.mrb[0].mxu0
  %511 = vmatprep.mubr.bf16.mxu0 %v222
  %512 = vmatmul.mubr.bf16.gmra.mrb[0].mxu0 %v221
  %v513 = vpop.f32.mrb[0].mxu0
  %v514 = vadd.f32 0.0, %v513
  %v515 = vpop.f32.mrb[0].mxu0
  %v516 = vpop.f32.mrb[0].mxu0
  %v517 = vadd.f32 0.0, %v516
  %v518 = vpop.f32.mrb[0].mxu0
  %519 = vmatprep.mubr.bf16.mxu0 %v224
  %520 = vmatmul.mubr.bf16.gmra.mrb[0].mxu0 %v223
  %v521 = vpop.f32.mrb[0].mxu0
  %v522 = vadd.f32 0.0, %v521
  %v523 = vpop.f32.mrb[0].mxu0
  %v524 = vpop.f32.mrb[0].mxu0
  %v525 = vadd.f32 0.0, %v524
  %v526 = vpop.f32.mrb[0].mxu0
  %527 = vmatprep.mubr.bf16.mxu0 %v226
  %528 = vmatmul.mubr.bf16.gmra.mrb[0].mxu0 %v225
  %v529 = vpop.f32.mrb[0].mxu0
  %v530 = vadd.f32 0.0, %v529
  %v531 = vpop.f32.mrb[0].mxu0
  %v532 = vpop.f32.mrb[0].mxu0
  %v533 = vadd.f32 0.0, %v532
  %v534 = vpop.f32.mrb[0].mxu0
  %535 = vdwg.mxu0
  %572 = vrot.lane.b32.xlu0 %v394, 96
  %v573 = vpop.permute.xlu0 %572
  %574 = vrot.lane.b32.xlu0 %v397, 96
  %v575 = vpop.permute.xlu0 %574
  %576 = vrot.lane.b32.xlu0 %v402, 96
  %v577 = vpop.permute.xlu0 %576
  %578 = vrot.lane.b32.xlu0 %v405, 96
  %v579 = vpop.permute.xlu0 %578
  %580 = vrot.lane.b32.xlu0 %v410, 96
  %v581 = vpop.permute.xlu0 %580
  %582 = vrot.lane.b32.xlu0 %v413, 96
  %v583 = vpop.permute.xlu0 %582
  %584 = vrot.lane.b32.xlu0 %v418, 96
  %v585 = vpop.permute.xlu0 %584
  %586 = vrot.lane.b32.xlu0 %v421, 96
  %v587 = vpop.permute.xlu0 %586
  %588 = vrot.lane.b32.xlu0 %v426, 96
  %v589 = vpop.permute.xlu0 %588
  %590 = vrot.lane.b32.xlu0 %v429, 96
  %v591 = vpop.permute.xlu0 %590
  %592 = vrot.lane.b32.xlu0 %v434, 96
  %v593 = vpop.permute.xlu0 %592
  %594 = vrot.lane.b32.xlu0 %v437, 96
  %v595 = vpop.permute.xlu0 %594
  %596 = vrot.lane.b32.xlu0 %v442, 96
  %v597 = vpop.permute.xlu0 %596
  %598 = vrot.lane.b32.xlu0 %v445, 96
  %v599 = vpop.permute.xlu0 %598
  %600 = vrot.lane.b32.xlu0 %v450, 96
  %v601 = vpop.permute.xlu0 %600
  %602 = vrot.lane.b32.xlu0 %v453, 96
  %v603 = vpop.permute.xlu0 %602
  %604 = vrot.lane.b32.xlu0 %v458, 96
  %v605 = vpop.permute.xlu0 %604
  %606 = vrot.lane.b32.xlu0 %v461, 96
  %v607 = vpop.permute.xlu0 %606
  %608 = vrot.lane.b32.xlu0 %v466, 96
  %v609 = vpop.permute.xlu0 %608
  %610 = vrot.lane.b32.xlu0 %v469, 96
  %v611 = vpop.permute.xlu0 %610
  %612 = vrot.lane.b32.xlu0 %v474, 96
  %v613 = vpop.permute.xlu0 %612
  %614 = vrot.lane.b32.xlu0 %v477, 96
  %v615 = vpop.permute.xlu0 %614
  %616 = vrot.lane.b32.xlu0 %v482, 96
  %v617 = vpop.permute.xlu0 %616
  %618 = vrot.lane.b32.xlu0 %v485, 96
  %v619 = vpop.permute.xlu0 %618
  %620 = vrot.lane.b32.xlu0 %v490, 96
  %v621 = vpop.permute.xlu0 %620
  %622 = vrot.lane.b32.xlu0 %v493, 96
  %v623 = vpop.permute.xlu0 %622
  %624 = vrot.lane.b32.xlu0 %v498, 96
  %v625 = vpop.permute.xlu0 %624
  %626 = vrot.lane.b32.xlu0 %v501, 96
  %v627 = vpop.permute.xlu0 %626
  %628 = vrot.lane.b32.xlu0 %v506, 96
  %v629 = vpop.permute.xlu0 %628
  %630 = vrot.lane.b32.xlu0 %v509, 96
  %v631 = vpop.permute.xlu0 %630
  %632 = vrot.lane.b32.xlu0 %v514, 96
  %v633 = vpop.permute.xlu0 %632
  %634 = vrot.lane.b32.xlu0 %v517, 96
  %v635 = vpop.permute.xlu0 %634
  %636 = vrot.lane.b32.xlu0 %v522, 96
  %v637 = vpop.permute.xlu0 %636
  %638 = vrot.lane.b32.xlu0 %v525, 96
  %v639 = vpop.permute.xlu0 %638
  %640 = vrot.lane.b32.xlu0 %v530, 96
  %v641 = vpop.permute.xlu0 %640
  %642 = vrot.lane.b32.xlu0 %v533, 96
  %v643 = vpop.permute.xlu0 %642
  %v680 = vmax.f32 %v394, %v573
  %v681 = vmax.f32 %v397, %v575
  %v682 = vmax.f32 %v402, %v577
  %v683 = vmax.f32 %v405, %v579
  %v684 = vmax.f32 %v410, %v581
  %v685 = vmax.f32 %v413, %v583
  %v686 = vmax.f32 %v418, %v585
  %v687 = vmax.f32 %v421, %v587
  %v688 = vmax.f32 %v426, %v589
  %v689 = vmax.f32 %v429, %v591
  %v690 = vmax.f32 %v434, %v593
  %v691 = vmax.f32 %v437, %v595
  %v692 = vmax.f32 %v442, %v597
  %v693 = vmax.f32 %v445, %v599
  %v694 = vmax.f32 %v450, %v601
  %v695 = vmax.f32 %v453, %v603
  %v696 = vmax.f32 %v458, %v605
  %v697 = vmax.f32 %v461, %v607
  %v698 = vmax.f32 %v466, %v609
  %v699 = vmax.f32 %v469, %v611
  %v700 = vmax.f32 %v474, %v613
  %v701 = vmax.f32 %v477, %v615
  %v702 = vmax.f32 %v482, %v617
  %v703 = vmax.f32 %v485, %v619
  %v704 = vmax.f32 %v490, %v621
  %v705 = vmax.f32 %v493, %v623
  %v706 = vmax.f32 %v498, %v625
  %v707 = vmax.f32 %v501, %v627
  %v708 = vmax.f32 %v506, %v629
  %v709 = vmax.f32 %v509, %v631
  %v710 = vmax.f32 %v514, %v633
  %v711 = vmax.f32 %v517, %v635
  %v712 = vmax.f32 %v522, %v637
  %v713 = vmax.f32 %v525, %v639
  %v714 = vmax.f32 %v530, %v641
  %v715 = vmax.f32 %v533, %v643
  %752 = vrot.lane.b32.xlu0 %v680, 64
  %v753 = vpop.permute.xlu0 %752
  %754 = vrot.lane.b32.xlu0 %v681, 64
  %v755 = vpop.permute.xlu0 %754
  %756 = vrot.lane.b32.xlu0 %v682, 64
  %v757 = vpop.permute.xlu0 %756
  %758 = vrot.lane.b32.xlu0 %v683, 64
  %v759 = vpop.permute.xlu0 %758
  %760 = vrot.lane.b32.xlu0 %v684, 64
  %v761 = vpop.permute.xlu0 %760
  %762 = vrot.lane.b32.xlu0 %v685, 64
  %v763 = vpop.permute.xlu0 %762
  %764 = vrot.lane.b32.xlu0 %v686, 64
  %v765 = vpop.permute.xlu0 %764
  %766 = vrot.lane.b32.xlu0 %v687, 64
  %v767 = vpop.permute.xlu0 %766
  %768 = vrot.lane.b32.xlu0 %v688, 64
  %v769 = vpop.permute.xlu0 %768
  %770 = vrot.lane.b32.xlu0 %v689, 64
  %v771 = vpop.permute.xlu0 %770
  %772 = vrot.lane.b32.xlu0 %v690, 64
  %v773 = vpop.permute.xlu0 %772
  %774 = vrot.lane.b32.xlu0 %v691, 64
  %v775 = vpop.permute.xlu0 %774
  %776 = vrot.lane.b32.xlu0 %v692, 64
  %v777 = vpop.permute.xlu0 %776
  %778 = vrot.lane.b32.xlu0 %v693, 64
  %v779 = vpop.permute.xlu0 %778
  %780 = vrot.lane.b32.xlu0 %v694, 64
  %v781 = vpop.permute.xlu0 %780
  %782 = vrot.lane.b32.xlu0 %v695, 64
  %v783 = vpop.permute.xlu0 %782
  %784 = vrot.lane.b32.xlu0 %v696, 64
  %v785 = vpop.permute.xlu0 %784
  %786 = vrot.lane.b32.xlu0 %v697, 64
  %v787 = vpop.permute.xlu0 %786
  %788 = vrot.lane.b32.xlu0 %v698, 64
  %v789 = vpop.permute.xlu0 %788
  %790 = vrot.lane.b32.xlu0 %v699, 64
  %v791 = vpop.permute.xlu0 %790
  %792 = vrot.lane.b32.xlu0 %v700, 64
  %v793 = vpop.permute.xlu0 %792
  %794 = vrot.lane.b32.xlu0 %v701, 64
  %v795 = vpop.permute.xlu0 %794
  %796 = vrot.lane.b32.xlu0 %v702, 64
  %v797 = vpop.permute.xlu0 %796
  %798 = vrot.lane.b32.xlu0 %v703, 64
  %v799 = vpop.permute.xlu0 %798
  %800 = vrot.lane.b32.xlu0 %v704, 64
  %v801 = vpop.permute.xlu0 %800
  %802 = vrot.lane.b32.xlu0 %v705, 64
  %v803 = vpop.permute.xlu0 %802
  %804 = vrot.lane.b32.xlu0 %v706, 64
  %v805 = vpop.permute.xlu0 %804
  %806 = vrot.lane.b32.xlu0 %v707, 64
  %v807 = vpop.permute.xlu0 %806
  %808 = vrot.lane.b32.xlu0 %v708, 64
  %v809 = vpop.permute.xlu0 %808
  %810 = vrot.lane.b32.xlu0 %v709, 64
  %v811 = vpop.permute.xlu0 %810
  %812 = vrot.lane.b32.xlu0 %v710, 64
  %v813 = vpop.permute.xlu0 %812
  %814 = vrot.lane.b32.xlu0 %v711, 64
  %v815 = vpop.permute.xlu0 %814
  %816 = vrot.lane.b32.xlu0 %v712, 64
  %v817 = vpop.permute.xlu0 %816
  %818 = vrot.lane.b32.xlu0 %v713, 64
  %v819 = vpop.permute.xlu0 %818
  %820 = vrot.lane.b32.xlu0 %v714, 64
  %v821 = vpop.permute.xlu0 %820
  %822 = vrot.lane.b32.xlu0 %v715, 64
  %v823 = vpop.permute.xlu0 %822
  %v860 = vmax.f32 %v680, %v753
  %v861 = vmax.f32 %v681, %v755
  %v862 = vmax.f32 %v682, %v757
  %v863 = vmax.f32 %v683, %v759
  %v864 = vmax.f32 %v684, %v761
  %v865 = vmax.f32 %v685, %v763
  %v866 = vmax.f32 %v686, %v765
  %v867 = vmax.f32 %v687, %v767
  %v868 = vmax.f32 %v688, %v769
  %v869 = vmax.f32 %v689, %v771
  %v870 = vmax.f32 %v690, %v773
  %v871 = vmax.f32 %v691, %v775
  %v872 = vmax.f32 %v692, %v777
  %v873 = vmax.f32 %v693, %v779
  %v874 = vmax.f32 %v694, %v781
  %v875 = vmax.f32 %v695, %v783
  %v876 = vmax.f32 %v696, %v785
  %v877 = vmax.f32 %v697, %v787
  %v878 = vmax.f32 %v698, %v789
  %v879 = vmax.f32 %v699, %v791
  %v880 = vmax.f32 %v700, %v793
  %v881 = vmax.f32 %v701, %v795
  %v882 = vmax.f32 %v702, %v797
  %v883 = vmax.f32 %v703, %v799
  %v884 = vmax.f32 %v704, %v801
  %v885 = vmax.f32 %v705, %v803
  %v886 = vmax.f32 %v706, %v805
  %v887 = vmax.f32 %v707, %v807
  %v888 = vmax.f32 %v708, %v809
  %v889 = vmax.f32 %v709, %v811
  %v890 = vmax.f32 %v710, %v813
  %v891 = vmax.f32 %v711, %v815
  %v892 = vmax.f32 %v712, %v817
  %v893 = vmax.f32 %v713, %v819
  %v894 = vmax.f32 %v714, %v821
  %v895 = vmax.f32 %v715, %v823
  %v896 = vld [vmem:[%s2] sm:$0x1]
  %v898 = vlaneseq
  %v899 = vshrl.u32 %v898, 7
  %v900 = vsub.s32 0, %v899
  %v901 = vrot.slane %v896, %v900
  %v903 = vadd.f32 %v860, %v901
  %v904 = vadd.f32 %v861, %v901
  %v905 = vadd.f32 %v862, %v901
  %v906 = vadd.f32 %v863, %v901
  %v907 = vadd.f32 %v864, %v901
  %v908 = vadd.f32 %v865, %v901
  %v909 = vadd.f32 %v866, %v901
  %v910 = vadd.f32 %v867, %v901
  %v911 = vadd.f32 %v868, %v901
  %v912 = vadd.f32 %v869, %v901
  %v913 = vadd.f32 %v870, %v901
  %v914 = vadd.f32 %v871, %v901
  %v915 = vadd.f32 %v872, %v901
  %v916 = vadd.f32 %v873, %v901
  %v917 = vadd.f32 %v874, %v901
  %v918 = vadd.f32 %v875, %v901
  %v919 = vadd.f32 %v876, %v901
  %v920 = vadd.f32 %v877, %v901
  %v921 = vadd.f32 %v878, %v901
  %v922 = vadd.f32 %v879, %v901
  %v923 = vadd.f32 %v880, %v901
  %v924 = vadd.f32 %v881, %v901
  %v925 = vadd.f32 %v882, %v901
  %v926 = vadd.f32 %v883, %v901
  %v927 = vadd.f32 %v884, %v901
  %v928 = vadd.f32 %v885, %v901
  %v929 = vadd.f32 %v886, %v901
  %v930 = vadd.f32 %v887, %v901
  %v931 = vadd.f32 %v888, %v901
  %v932 = vadd.f32 %v889, %v901
  %v933 = vadd.f32 %v890, %v901
  %v934 = vadd.f32 %v891, %v901
  %v935 = vadd.f32 %v892, %v901
  %v936 = vadd.f32 %v893, %v901
  %v937 = vadd.f32 %v894, %v901
  %v938 = vadd.f32 %v895, %v901
  %v939 = vmax.f32 %v903, 0.0
  %v940 = vmax.f32 %v904, 0.0
  %v941 = vmax.f32 %v905, 0.0
  %v942 = vmax.f32 %v906, 0.0
  %v943 = vmax.f32 %v907, 0.0
  %v944 = vmax.f32 %v908, 0.0
  %v945 = vmax.f32 %v909, 0.0
  %v946 = vmax.f32 %v910, 0.0
  %v947 = vmax.f32 %v911, 0.0
  %v948 = vmax.f32 %v912, 0.0
  %v949 = vmax.f32 %v913, 0.0
  %v950 = vmax.f32 %v914, 0.0
  %v951 = vmax.f32 %v915, 0.0
  %v952 = vmax.f32 %v916, 0.0
  %v953 = vmax.f32 %v917, 0.0
  %v954 = vmax.f32 %v918, 0.0
  %v955 = vmax.f32 %v919, 0.0
  %v956 = vmax.f32 %v920, 0.0
  %v957 = vmax.f32 %v921, 0.0
  %v958 = vmax.f32 %v922, 0.0
  %v959 = vmax.f32 %v923, 0.0
  %v960 = vmax.f32 %v924, 0.0
  %v961 = vmax.f32 %v925, 0.0
  %v962 = vmax.f32 %v926, 0.0
  %v963 = vmax.f32 %v927, 0.0
  %v964 = vmax.f32 %v928, 0.0
  %v965 = vmax.f32 %v929, 0.0
  %v966 = vmax.f32 %v930, 0.0
  %v967 = vmax.f32 %v931, 0.0
  %v968 = vmax.f32 %v932, 0.0
  %v969 = vmax.f32 %v933, 0.0
  %v970 = vmax.f32 %v934, 0.0
  %v971 = vmax.f32 %v935, 0.0
  %v972 = vmax.f32 %v936, 0.0
  %v973 = vmax.f32 %v937, 0.0
  %v974 = vmax.f32 %v938, 0.0
  %v975 = vpack.c.bf16 %v940, %v939
  %v976 = vpack.c.bf16 %v942, %v941
  %v977 = vpack.c.bf16 %v944, %v943
  %v978 = vpack.c.bf16 %v946, %v945
  %v979 = vpack.c.bf16 %v948, %v947
  %v980 = vpack.c.bf16 %v950, %v949
  %v981 = vpack.c.bf16 %v952, %v951
  %v982 = vpack.c.bf16 %v954, %v953
  %v983 = vpack.c.bf16 %v956, %v955
  %v984 = vpack.c.bf16 %v958, %v957
  %v985 = vpack.c.bf16 %v960, %v959
  %v986 = vpack.c.bf16 %v962, %v961
  %v987 = vpack.c.bf16 %v964, %v963
  %v988 = vpack.c.bf16 %v966, %v965
  %v989 = vpack.c.bf16 %v968, %v967
  %v990 = vpack.c.bf16 %v970, %v969
  %v991 = vpack.c.bf16 %v972, %v971
  %v992 = vpack.c.bf16 %v974, %v973
  %v1011 = vunpack.c.l.b16 %v975
  %v1012 = vunpack.c.h.b16 %v975
  %v1013 = vunpack.c.l.b16 %v976
  %v1014 = vunpack.c.h.b16 %v976
  %v1015 = vunpack.c.l.b16 %v977
  %v1016 = vunpack.c.h.b16 %v977
  %v1017 = vunpack.c.l.b16 %v978
  %v1018 = vunpack.c.h.b16 %v978
  %v1019 = vunpack.c.l.b16 %v979
  %v1020 = vunpack.c.h.b16 %v979
  %v1021 = vunpack.c.l.b16 %v980
  %v1022 = vunpack.c.h.b16 %v980
  %v1023 = vunpack.c.l.b16 %v981
  %v1024 = vunpack.c.h.b16 %v981
  %v1025 = vunpack.c.l.b16 %v982
  %v1026 = vunpack.c.h.b16 %v982
  %v1027 = vunpack.c.l.b16 %v983
  %v1028 = vunpack.c.h.b16 %v983
  %v1029 = vunpack.c.l.b16 %v984
  %v1030 = vunpack.c.h.b16 %v984
  %v1031 = vunpack.c.l.b16 %v985
  %v1032 = vunpack.c.h.b16 %v985
  %v1033 = vunpack.c.l.b16 %v986
  %v1034 = vunpack.c.h.b16 %v986
  %v1035 = vunpack.c.l.b16 %v987
  %v1036 = vunpack.c.h.b16 %v987
  %v1037 = vunpack.c.l.b16 %v988
  %v1038 = vunpack.c.h.b16 %v988
  %v1039 = vunpack.c.l.b16 %v989
  %v1040 = vunpack.c.h.b16 %v989
  %v1041 = vunpack.c.l.b16 %v990
  %v1042 = vunpack.c.h.b16 %v990
  %v1043 = vunpack.c.l.b16 %v991
  %v1044 = vunpack.c.h.b16 %v991
  %v1045 = vunpack.c.l.b16 %v992
  %v1046 = vunpack.c.h.b16 %v992
  %v1047 = vpack.c.b16 %v1011, %v1011
  %v1048 = vpack.c.b16 %v1012, %v1012
  %v1049 = vpack.c.b16 %v1013, %v1013
  %v1050 = vpack.c.b16 %v1014, %v1014
  %v1051 = vpack.c.b16 %v1015, %v1015
  %v1052 = vpack.c.b16 %v1016, %v1016
  %v1053 = vpack.c.b16 %v1017, %v1017
  %v1054 = vpack.c.b16 %v1018, %v1018
  %v1055 = vpack.c.b16 %v1019, %v1019
  %v1056 = vpack.c.b16 %v1020, %v1020
  %v1057 = vpack.c.b16 %v1021, %v1021
  %v1058 = vpack.c.b16 %v1022, %v1022
  %v1059 = vpack.c.b16 %v1023, %v1023
  %v1060 = vpack.c.b16 %v1024, %v1024
  %v1061 = vpack.c.b16 %v1025, %v1025
  %v1062 = vpack.c.b16 %v1026, %v1026
  %v1063 = vpack.c.b16 %v1027, %v1027
  %v1064 = vpack.c.b16 %v1028, %v1028
  %v1065 = vpack.c.b16 %v1029, %v1029
  %v1066 = vpack.c.b16 %v1030, %v1030
  %v1067 = vpack.c.b16 %v1031, %v1031
  %v1068 = vpack.c.b16 %v1032, %v1032
  %v1069 = vpack.c.b16 %v1033, %v1033
  %v1070 = vpack.c.b16 %v1034, %v1034
  %v1071 = vpack.c.b16 %v1035, %v1035
  %v1072 = vpack.c.b16 %v1036, %v1036
  %v1073 = vpack.c.b16 %v1037, %v1037
  %v1074 = vpack.c.b16 %v1038, %v1038
  %v1075 = vpack.c.b16 %v1039, %v1039
  %v1076 = vpack.c.b16 %v1040, %v1040
  %v1077 = vpack.c.b16 %v1041, %v1041
  %v1078 = vpack.c.b16 %v1042, %v1042
  %v1079 = vpack.c.b16 %v1043, %v1043
  %v1080 = vpack.c.b16 %v1044, %v1044
  %v1081 = vpack.c.b16 %v1045, %v1045
  %v1082 = vpack.c.b16 %v1046, %v1046
  %vm1119 = vcmask 257024
  %1120 = vst.msk [vmem:[%s3] sm:$0xf] %vm1119, %v1047
  %1121 = vst.msk [vmem:[%s3 + $0x4] sm:$0xf] %vm1119, %v1048
  %1122 = vst.msk [vmem:[%s3 + $0x8] sm:$0xf] %vm1119, %v1049
  %1123 = vst.msk [vmem:[%s3 + $0xc] sm:$0xf] %vm1119, %v1050
  %1124 = vst.msk [vmem:[%s3 + $0x10] sm:$0xf] %vm1119, %v1051
  %1125 = vst.msk [vmem:[%s3 + $0x14] sm:$0xf] %vm1119, %v1052
  %1126 = vst.msk [vmem:[%s3 + $0x18] sm:$0xf] %vm1119, %v1053
  %1127 = vst.msk [vmem:[%s3 + $0x1c] sm:$0xf] %vm1119, %v1054
  %1128 = vst.msk [vmem:[%s3 + $0x20] sm:$0xf] %vm1119, %v1055
  %1129 = vst.msk [vmem:[%s3 + $0x24] sm:$0xf] %vm1119, %v1056
  %1130 = vst.msk [vmem:[%s3 + $0x28] sm:$0xf] %vm1119, %v1057
  %1131 = vst.msk [vmem:[%s3 + $0x2c] sm:$0xf] %vm1119, %v1058
  %1132 = vst.msk [vmem:[%s3 + $0x30] sm:$0xf] %vm1119, %v1059
  %1133 = vst.msk [vmem:[%s3 + $0x34] sm:$0xf] %vm1119, %v1060
  %1134 = vst.msk [vmem:[%s3 + $0x38] sm:$0xf] %vm1119, %v1061
  %1135 = vst.msk [vmem:[%s3 + $0x3c] sm:$0xf] %vm1119, %v1062
  %1136 = vst.msk [vmem:[%s3 + $0x40] sm:$0xf] %vm1119, %v1063
  %1137 = vst.msk [vmem:[%s3 + $0x44] sm:$0xf] %vm1119, %v1064
  %1138 = vst.msk [vmem:[%s3 + $0x48] sm:$0xf] %vm1119, %v1065
  %1139 = vst.msk [vmem:[%s3 + $0x4c] sm:$0xf] %vm1119, %v1066
  %1140 = vst.msk [vmem:[%s3 + $0x50] sm:$0xf] %vm1119, %v1067
  %1141 = vst.msk [vmem:[%s3 + $0x54] sm:$0xf] %vm1119, %v1068
  %1142 = vst.msk [vmem:[%s3 + $0x58] sm:$0xf] %vm1119, %v1069
  %1143 = vst.msk [vmem:[%s3 + $0x5c] sm:$0xf] %vm1119, %v1070
  %1144 = vst.msk [vmem:[%s3 + $0x60] sm:$0xf] %vm1119, %v1071
  %1145 = vst.msk [vmem:[%s3 + $0x64] sm:$0xf] %vm1119, %v1072
  %1146 = vst.msk [vmem:[%s3 + $0x68] sm:$0xf] %vm1119, %v1073
  %1147 = vst.msk [vmem:[%s3 + $0x6c] sm:$0xf] %vm1119, %v1074
  %1148 = vst.msk [vmem:[%s3 + $0x70] sm:$0xf] %vm1119, %v1075
  %1149 = vst.msk [vmem:[%s3 + $0x74] sm:$0xf] %vm1119, %v1076
  %1150 = vst.msk [vmem:[%s3 + $0x78] sm:$0xf] %vm1119, %v1077
  %1151 = vst.msk [vmem:[%s3 + $0x7c] sm:$0xf] %vm1119, %v1078
  %1152 = vst.msk [vmem:[%s3 + $0x80] sm:$0xf] %vm1119, %v1079
  %1153 = vst.msk [vmem:[%s3 + $0x84] sm:$0xf] %vm1119, %v1080
  %1154 = vst.msk [vmem:[%s3 + $0x88] sm:$0xf] %vm1119, %v1081
  %1155 = vst.msk [vmem:[%s3 + $0x8c] sm:$0xf] %vm1119, %v1082
  // Predicated region
  $region14: #{mnist_net_forward.4} parent=0 // pred_check
    _
  $region15: #{mnist_net_forward.4} parent=0 // pred_check_branch
    %1157 = sbr.rel (0) target = $region17
  $region16: #{mnist_net_forward.4} parent=0 // pred_region
    _
  $region17: #{mnist_net_forward.4} parent=0 // pred_fallthru
    _
  // Predicated region
  $region18: #{mnist_net_forward.4} parent=0 // pred_check
    _
  $region19: #{mnist_net_forward.4} parent=0 // pred_check_branch
    %1159 = sbr.rel (0) target = $region21
  $region20: #{mnist_net_forward.4} parent=0 // pred_region
    _
  $region21: #{mnist_net_forward.4} parent=0 // pred_fallthru
    _

// kernel: mnist_net_forward.5
$region0: #{mnist_net_forward.5}
  #allocation0 [shape = 'u32[]', space=smem, size = 0x4, offset = 0x4, fixed_abs, tag = 'smem constant byte address 0x4 - core index']
  #allocation1 [shape = 'u32[144,128]{1,0:T(1,128)}', space=vmem, size = 0x12000, scoped, tag = 'internal scratch']
  %s0 = inlined_call_operand.vmem [shape: bf16[16,4608], index: 0, kind: input, shape index: {}]
  %s1 = inlined_call_operand.vmem [shape: bf16[4608,128], index: 1, kind: input, shape index: {}]
  %s2 = inlined_call_operand.vmem [shape: f32[1,128], index: 2, kind: input, shape index: {}]
  %s3 = inlined_call_operand.vmem [shape: bf16[128,128], index: 3, kind: input, shape index: {}]
  %s4 = inlined_call_operand.vmem [shape: f32[1,128], index: 4, kind: input, shape index: {}]
  %s5 = inlined_call_operand.vmem [shape: f32[16,128], index: 5, kind: output, shape index: {}]
  %s6 = sld [smem:[#allocation0]]
  $region30: #{mnist_net_forward.5} parent=0
    _
  %s8 = ssub.s32 1, %s6
  %s9 = scalar_select 0, %s8, %s6
  // Predicated region
  $region2: #{mnist_net_forward.5} parent=0 // pred_check
    _
  $region3: #{mnist_net_forward.5} parent=0 // pred_check_branch
    %11 = sbr.rel (0) target = $region5
  $region4: #{mnist_net_forward.5} parent=0 // pred_region
    _
  $region5: #{mnist_net_forward.5} parent=0 // pred_fallthru
    _
  // Predicated region
  $region6: #{mnist_net_forward.5} parent=0 // pred_check
    _
  $region7: #{mnist_net_forward.5} parent=0 // pred_check_branch
    %13 = sbr.rel (0) target = $region9
  $region8: #{mnist_net_forward.5} parent=0 // pred_region
    _
  $region9: #{mnist_net_forward.5} parent=0 // pred_fallthru
    _
  // Predicated region
  $region10: #{mnist_net_forward.5} parent=0 // pred_check
    _
  $region11: #{mnist_net_forward.5} parent=0 // pred_check_branch
    %15 = sbr.rel (0) target = $region13
  $region12: #{mnist_net_forward.5} parent=0 // pred_region
    _
  $region13: #{mnist_net_forward.5} parent=0 // pred_fallthru
    _
  // Predicated region
  $region14: #{mnist_net_forward.5} parent=0 // pred_check
    _
  $region15: #{mnist_net_forward.5} parent=0 // pred_check_branch
    %17 = sbr.rel (0) target = $region17
  $region16: #{mnist_net_forward.5} parent=0 // pred_region
    _
  $region17: #{mnist_net_forward.5} parent=0 // pred_fallthru
    _
  // Predicated region
  $region18: #{mnist_net_forward.5} parent=0 // pred_check
    _
  $region19: #{mnist_net_forward.5} parent=0 // pred_check_branch
    %19 = sbr.rel (0) target = $region21
  $region20: #{mnist_net_forward.5} parent=0 // pred_region
    _
  $region21: #{mnist_net_forward.5} parent=0 // pred_fallthru
    _
  %v21 = vld [vmem:[%s0] sm:$0xff]
  %v22 = vld [vmem:[%s0 + $0x8] sm:$0xff]
  %v23 = vld [vmem:[%s0 + $0x10] sm:$0xff]
  %v24 = vld [vmem:[%s0 + $0x18] sm:$0xff]
  %v25 = vld [vmem:[%s0 + $0x20] sm:$0xff]
  %v26 = vld [vmem:[%s0 + $0x28] sm:$0xff]
  %v27 = vld [vmem:[%s0 + $0x30] sm:$0xff]
  %v28 = vld [vmem:[%s0 + $0x38] sm:$0xff]
  %v29 = vld [vmem:[%s0 + $0x40] sm:$0xff]
  %v30 = vld [vmem:[%s0 + $0x48] sm:$0xff]
  %v31 = vld [vmem:[%s0 + $0x50] sm:$0xff]
  %v32 = vld [vmem:[%s0 + $0x58] sm:$0xff]
  %v33 = vld [vmem:[%s0 + $0x60] sm:$0xff]
  %v34 = vld [vmem:[%s0 + $0x68] sm:$0xff]
  %v35 = vld [vmem:[%s0 + $0x70] sm:$0xff]
  %v36 = vld [vmem:[%s0 + $0x78] sm:$0xff]
  %v37 = vld [vmem:[%s0 + $0x80] sm:$0xff]
  %v38 = vld [vmem:[%s0 + $0x88] sm:$0xff]
  %v39 = vld [vmem:[%s0 + $0x90] sm:$0xff]
  %v40 = vld [vmem:[%s0 + $0x98] sm:$0xff]
  %v41 = vld [vmem:[%s0 + $0xa0] sm:$0xff]
  %v42 = vld [vmem:[%s0 + $0xa8] sm:$0xff]
  %v43 = vld [vmem:[%s0 + $0xb0] sm:$0xff]
  %v44 = vld [vmem:[%s0 + $0xb8] sm:$0xff]
  %v45 = vld [vmem:[%s0 + $0xc0] sm:$0xff]
  %v46 = vld [vmem:[%s0 + $0xc8] sm:$0xff]
  %v47 = vld [vmem:[%s0 + $0xd0] sm:$0xff]
  %v48 = vld [vmem:[%s0 + $0xd8] sm:$0xff]
  %v49 = vld [vmem:[%s0 + $0xe0] sm:$0xff]
  %v50 = vld [vmem:[%s0 + $0xe8] sm:$0xff]
  %v51 = vld [vmem:[%s0 + $0xf0] sm:$0xff]
  %v52 = vld [vmem:[%s0 + $0xf8] sm:$0xff]
  %v53 = vld [vmem:[%s0 + $0x100] sm:$0xff]
  %v54 = vld [vmem:[%s0 + $0x108] sm:$0xff]
  %v55 = vld [vmem:[%s0 + $0x110] sm:$0xff]
  %v56 = vld [vmem:[%s0 + $0x118] sm:$0xff]
  %v57 = vld [vmem:[%s1] sm:$0xf]
  %v58 = vld [vmem:[%s1 + $0x4] sm:$0xf]
  %v59 = vld [vmem:[%s1 + $0x8] sm:$0xf]
  %v60 = vld [vmem:[%s1 + $0xc] sm:$0xf]
  %v61 = vld [vmem:[%s1 + $0x10] sm:$0xf]
  %v62 = vld [vmem:[%s1 + $0x14] sm:$0xf]
  %v63 = vld [vmem:[%s1 + $0x18] sm:$0xf]
  %v64 = vld [vmem:[%s1 + $0x1c] sm:$0xf]
  %v65 = vld [vmem:[%s1 + $0x20] sm:$0xf]
  %v66 = vld [vmem:[%s1 + $0x24] sm:$0xf]
  %v67 = vld [vmem:[%s1 + $0x28] sm:$0xf]
  %v68 = vld [vmem:[%s1 + $0x2c] sm:$0xf]
  %v69 = vld [vmem:[%s1 + $0x30] sm:$0xf]
  %v70 = vld [vmem:[%s1 + $0x34] sm:$0xf]
  %v71 = vld [vmem:[%s1 + $0x38] sm:$0xf]
  %v72 = vld [vmem:[%s1 + $0x3c] sm:$0xf]
  %v73 = vld [vmem:[%s1 + $0x40] sm:$0xf]
  %v74 = vld [vmem:[%s1 + $0x44] sm:$0xf]
  %v75 = vld [vmem:[%s1 + $0x48] sm:$0xf]
  %v76 = vld [vmem:[%s1 + $0x4c] sm:$0xf]
  %v77 = vld [vmem:[%s1 + $0x50] sm:$0xf]
  %v78 = vld [vmem:[%s1 + $0x54] sm:$0xf]
  %v79 = vld [vmem:[%s1 + $0x58] sm:$0xf]
  %v80 = vld [vmem:[%s1 + $0x5c] sm:$0xf]
  %v81 = vld [vmem:[%s1 + $0x60] sm:$0xf]
  %v82 = vld [vmem:[%s1 + $0x64] sm:$0xf]
  %v83 = vld [vmem:[%s1 + $0x68] sm:$0xf]
  %v84 = vld [vmem:[%s1 + $0x6c] sm:$0xf]
  %v85 = vld [vmem:[%s1 + $0x70] sm:$0xf]
  %v86 = vld [vmem:[%s1 + $0x74] sm:$0xf]
  %v87 = vld [vmem:[%s1 + $0x78] sm:$0xf]
  %v88 = vld [vmem:[%s1 + $0x7c] sm:$0xf]
  %v89 = vld [vmem:[%s1 + $0x80] sm:$0xf]
  %v90 = vld [vmem:[%s1 + $0x84] sm:$0xf]
  %v91 = vld [vmem:[%s1 + $0x88] sm:$0xf]
  %v92 = vld [vmem:[%s1 + $0x8c] sm:$0xf]
  %v93 = vld [vmem:[%s1 + $0x90] sm:$0xf]
  %v94 = vld [vmem:[%s1 + $0x94] sm:$0xf]
  %v95 = vld [vmem:[%s1 + $0x98] sm:$0xf]
  %v96 = vld [vmem:[%s1 + $0x9c] sm:$0xf]
  %v97 = vld [vmem:[%s1 + $0xa0] sm:$0xf]
  %v98 = vld [vmem:[%s1 + $0xa4] sm:$0xf]
  %v99 = vld [vmem:[%s1 + $0xa8] sm:$0xf]
  %v100 = vld [vmem:[%s1 + $0xac] sm:$0xf]
  %v101 = vld [vmem:[%s1 + $0xb0] sm:$0xf]
  %v102 = vld [vmem:[%s1 + $0xb4] sm:$0xf]
  %v103 = vld [vmem:[%s1 + $0xb8] sm:$0xf]
  %v104 = vld [vmem:[%s1 + $0xbc] sm:$0xf]
  %v105 = vld [vmem:[%s1 + $0xc0] sm:$0xf]
  %v106 = vld [vmem:[%s1 + $0xc4] sm:$0xf]
  %v107 = vld [vmem:[%s1 + $0xc8] sm:$0xf]
  %v108 = vld [vmem:[%s1 + $0xcc] sm:$0xf]
  %v109 = vld [vmem:[%s1 + $0xd0] sm:$0xf]
  %v110 = vld [vmem:[%s1 + $0xd4] sm:$0xf]
  %v111 = vld [vmem:[%s1 + $0xd8] sm:$0xf]
  %v112 = vld [vmem:[%s1 + $0xdc] sm:$0xf]
  %v113 = vld [vmem:[%s1 + $0xe0] sm:$0xf]
  %v114 = vld [vmem:[%s1 + $0xe4] sm:$0xf]
  %v115 = vld [vmem:[%s1 + $0xe8] sm:$0xf]
  %v116 = vld [vmem:[%s1 + $0xec] sm:$0xf]
  %v117 = vld [vmem:[%s1 + $0xf0] sm:$0xf]
  %v118 = vld [vmem:[%s1 + $0xf4] sm:$0xf]
  %v119 = vld [vmem:[%s1 + $0xf8] sm:$0xf]
  %v120 = vld [vmem:[%s1 + $0xfc] sm:$0xf]
  %v121 = vld [vmem:[%s1 + $0x100] sm:$0xf]
  %v122 = vld [vmem:[%s1 + $0x104] sm:$0xf]
  %v123 = vld [vmem:[%s1 + $0x108] sm:$0xf]
  %v124 = vld [vmem:[%s1 + $0x10c] sm:$0xf]
  %v125 = vld [vmem:[%s1 + $0x110] sm:$0xf]
  %v126 = vld [vmem:[%s1 + $0x114] sm:$0xf]
  %v127 = vld [vmem:[%s1 + $0x118] sm:$0xf]
  %v128 = vld [vmem:[%s1 + $0x11c] sm:$0xf]
  %v129 = vld [vmem:[%s1 + $0x120] sm:$0xf]
  %v130 = vld [vmem:[%s1 + $0x124] sm:$0xf]
  %v131 = vld [vmem:[%s1 + $0x128] sm:$0xf]
  %v132 = vld [vmem:[%s1 + $0x12c] sm:$0xf]
  %v133 = vld [vmem:[%s1 + $0x130] sm:$0xf]
  %v134 = vld [vmem:[%s1 + $0x134] sm:$0xf]
  %v135 = vld [vmem:[%s1 + $0x138] sm:$0xf]
  %v136 = vld [vmem:[%s1 + $0x13c] sm:$0xf]
  %v137 = vld [vmem:[%s1 + $0x140] sm:$0xf]
  %v138 = vld [vmem:[%s1 + $0x144] sm:$0xf]
  %v139 = vld [vmem:[%s1 + $0x148] sm:$0xf]
  %v140 = vld [vmem:[%s1 + $0x14c] sm:$0xf]
  %v141 = vld [vmem:[%s1 + $0x150] sm:$0xf]
  %v142 = vld [vmem:[%s1 + $0x154] sm:$0xf]
  %v143 = vld [vmem:[%s1 + $0x158] sm:$0xf]
  %v144 = vld [vmem:[%s1 + $0x15c] sm:$0xf]
  %v145 = vld [vmem:[%s1 + $0x160] sm:$0xf]
  %v146 = vld [vmem:[%s1 + $0x164] sm:$0xf]
  %v147 = vld [vmem:[%s1 + $0x168] sm:$0xf]
  %v148 = vld [vmem:[%s1 + $0x16c] sm:$0xf]
  %v149 = vld [vmem:[%s1 + $0x170] sm:$0xf]
  %v150 = vld [vmem:[%s1 + $0x174] sm:$0xf]
  %v151 = vld [vmem:[%s1 + $0x178] sm:$0xf]
  %v152 = vld [vmem:[%s1 + $0x17c] sm:$0xf]
  %v153 = vld [vmem:[%s1 + $0x180] sm:$0xf]
  %v154 = vld [vmem:[%s1 + $0x184] sm:$0xf]
  %v155 = vld [vmem:[%s1 + $0x188] sm:$0xf]
  %v156 = vld [vmem:[%s1 + $0x18c] sm:$0xf]
  %v157 = vld [vmem:[%s1 + $0x190] sm:$0xf]
  %v158 = vld [vmem:[%s1 + $0x194] sm:$0xf]
  %v159 = vld [vmem:[%s1 + $0x198] sm:$0xf]
  %v160 = vld [vmem:[%s1 + $0x19c] sm:$0xf]
  %v161 = vld [vmem:[%s1 + $0x1a0] sm:$0xf]
  %v162 = vld [vmem:[%s1 + $0x1a4] sm:$0xf]
  %v163 = vld [vmem:[%s1 + $0x1a8] sm:$0xf]
  %v164 = vld [vmem:[%s1 + $0x1ac] sm:$0xf]
  %v165 = vld [vmem:[%s1 + $0x1b0] sm:$0xf]
  %v166 = vld [vmem:[%s1 + $0x1b4] sm:$0xf]
  %v167 = vld [vmem:[%s1 + $0x1b8] sm:$0xf]
  %v168 = vld [vmem:[%s1 + $0x1bc] sm:$0xf]
  %v169 = vld [vmem:[%s1 + $0x1c0] sm:$0xf]
  %v170 = vld [vmem:[%s1 + $0x1c4] sm:$0xf]
  %v171 = vld [vmem:[%s1 + $0x1c8] sm:$0xf]
  %v172 = vld [vmem:[%s1 + $0x1cc] sm:$0xf]
  %v173 = vld [vmem:[%s1 + $0x1d0] sm:$0xf]
  %v174 = vld [vmem:[%s1 + $0x1d4] sm:$0xf]
  %v175 = vld [vmem:[%s1 + $0x1d8] sm:$0xf]
  %v176 = vld [vmem:[%s1 + $0x1dc] sm:$0xf]
  %v177 = vld [vmem:[%s1 + $0x1e0] sm:$0xf]
  %v178 = vld [vmem:[%s1 + $0x1e4] sm:$0xf]
  %v179 = vld [vmem:[%s1 + $0x1e8] sm:$0xf]
  %v180 = vld [vmem:[%s1 + $0x1ec] sm:$0xf]
  %v181 = vld [vmem:[%s1 + $0x1f0] sm:$0xf]
  %v182 = vld [vmem:[%s1 + $0x1f4] sm:$0xf]
  %v183 = vld [vmem:[%s1 + $0x1f8] sm:$0xf]
  %v184 = vld [vmem:[%s1 + $0x1fc] sm:$0xf]
  %v185 = vld [vmem:[%s1 + $0x200] sm:$0xf]
  %v186 = vld [vmem:[%s1 + $0x204] sm:$0xf]
  %v187 = vld [vmem:[%s1 + $0x208] sm:$0xf]
  %v188 = vld [vmem:[%s1 + $0x20c] sm:$0xf]
  %v189 = vld [vmem:[%s1 + $0x210] sm:$0xf]
  %v190 = vld [vmem:[%s1 + $0x214] sm:$0xf]
  %v191 = vld [vmem:[%s1 + $0x218] sm:$0xf]
  %v192 = vld [vmem:[%s1 + $0x21c] sm:$0xf]
  %v193 = vld [vmem:[%s1 + $0x220] sm:$0xf]
  %v194 = vld [vmem:[%s1 + $0x224] sm:$0xf]
  %v195 = vld [vmem:[%s1 + $0x228] sm:$0xf]
  %v196 = vld [vmem:[%s1 + $0x22c] sm:$0xf]
  %v197 = vld [vmem:[%s1 + $0x230] sm:$0xf]
  %v198 = vld [vmem:[%s1 + $0x234] sm:$0xf]
  %v199 = vld [vmem:[%s1 + $0x238] sm:$0xf]
  %v200 = vld [vmem:[%s1 + $0x23c] sm:$0xf]
  %v201 = vld [vmem:[%s1 + $0x240] sm:$0xf]
  %v202 = vld [vmem:[%s1 + $0x244] sm:$0xf]
  %v203 = vld [vmem:[%s1 + $0x248] sm:$0xf]
  %v204 = vld [vmem:[%s1 + $0x24c] sm:$0xf]
  %v205 = vld [vmem:[%s1 + $0x250] sm:$0xf]
  %v206 = vld [vmem:[%s1 + $0x254] sm:$0xf]
  %v207 = vld [vmem:[%s1 + $0x258] sm:$0xf]
  %v208 = vld [vmem:[%s1 + $0x25c] sm:$0xf]
  %v209 = vld [vmem:[%s1 + $0x260] sm:$0xf]
  %v210 = vld [vmem:[%s1 + $0x264] sm:$0xf]
  %v211 = vld [vmem:[%s1 + $0x268] sm:$0xf]
  %v212 = vld [vmem:[%s1 + $0x26c] sm:$0xf]
  %v213 = vld [vmem:[%s1 + $0x270] sm:$0xf]
  %v214 = vld [vmem:[%s1 + $0x274] sm:$0xf]
  %v215 = vld [vmem:[%s1 + $0x278] sm:$0xf]
  %v216 = vld [vmem:[%s1 + $0x27c] sm:$0xf]
  %v217 = vld [vmem:[%s1 + $0x280] sm:$0xf]
  %v218 = vld [vmem:[%s1 + $0x284] sm:$0xf]
  %v219 = vld [vmem:[%s1 + $0x288] sm:$0xf]
  %v220 = vld [vmem:[%s1 + $0x28c] sm:$0xf]
  %v221 = vld [vmem:[%s1 + $0x290] sm:$0xf]
  %v222 = vld [vmem:[%s1 + $0x294] sm:$0xf]
  %v223 = vld [vmem:[%s1 + $0x298] sm:$0xf]
  %v224 = vld [vmem:[%s1 + $0x29c] sm:$0xf]
  %v225 = vld [vmem:[%s1 + $0x2a0] sm:$0xf]
  %v226 = vld [vmem:[%s1 + $0x2a4] sm:$0xf]
  %v227 = vld [vmem:[%s1 + $0x2a8] sm:$0xf]
  %v228 = vld [vmem:[%s1 + $0x2ac] sm:$0xf]
  %v229 = vld [vmem:[%s1 + $0x2b0] sm:$0xf]
  %v230 = vld [vmem:[%s1 + $0x2b4] sm:$0xf]
  %v231 = vld [vmem:[%s1 + $0x2b8] sm:$0xf]
  %v232 = vld [vmem:[%s1 + $0x2bc] sm:$0xf]
  %v233 = vld [vmem:[%s1 + $0x2c0] sm:$0xf]
  %v234 = vld [vmem:[%s1 + $0x2c4] sm:$0xf]
  %v235 = vld [vmem:[%s1 + $0x2c8] sm:$0xf]
  %v236 = vld [vmem:[%s1 + $0x2cc] sm:$0xf]
  %v237 = vld [vmem:[%s1 + $0x2d0] sm:$0xf]
  %v238 = vld [vmem:[%s1 + $0x2d4] sm:$0xf]
  %v239 = vld [vmem:[%s1 + $0x2d8] sm:$0xf]
  %v240 = vld [vmem:[%s1 + $0x2dc] sm:$0xf]
  %v241 = vld [vmem:[%s1 + $0x2e0] sm:$0xf]
  %v242 = vld [vmem:[%s1 + $0x2e4] sm:$0xf]
  %v243 = vld [vmem:[%s1 + $0x2e8] sm:$0xf]
  %v244 = vld [vmem:[%s1 + $0x2ec] sm:$0xf]
  %v245 = vld [vmem:[%s1 + $0x2f0] sm:$0xf]
  %v246 = vld [vmem:[%s1 + $0x2f4] sm:$0xf]
  %v247 = vld [vmem:[%s1 + $0x2f8] sm:$0xf]
  %v248 = vld [vmem:[%s1 + $0x2fc] sm:$0xf]
  %v249 = vld [vmem:[%s1 + $0x300] sm:$0xf]
  %v250 = vld [vmem:[%s1 + $0x304] sm:$0xf]
  %v251 = vld [vmem:[%s1 + $0x308] sm:$0xf]
  %v252 = vld [vmem:[%s1 + $0x30c] sm:$0xf]
  %v253 = vld [vmem:[%s1 + $0x310] sm:$0xf]
  %v254 = vld [vmem:[%s1 + $0x314] sm:$0xf]
  %v255 = vld [vmem:[%s1 + $0x318] sm:$0xf]
  %v256 = vld [vmem:[%s1 + $0x31c] sm:$0xf]
  %v257 = vld [vmem:[%s1 + $0x320] sm:$0xf]
  %v258 = vld [vmem:[%s1 + $0x324] sm:$0xf]
  %v259 = vld [vmem:[%s1 + $0x328] sm:$0xf]
  %v260 = vld [vmem:[%s1 + $0x32c] sm:$0xf]
  %v261 = vld [vmem:[%s1 + $0x330] sm:$0xf]
  %v262 = vld [vmem:[%s1 + $0x334] sm:$0xf]
  %v263 = vld [vmem:[%s1 + $0x338] sm:$0xf]
  %v264 = vld [vmem:[%s1 + $0x33c] sm:$0xf]
  %v265 = vld [vmem:[%s1 + $0x340] sm:$0xf]
  %v266 = vld [vmem:[%s1 + $0x344] sm:$0xf]
  %v267 = vld [vmem:[%s1 + $0x348] sm:$0xf]
  %v268 = vld [vmem:[%s1 + $0x34c] sm:$0xf]
  %v269 = vld [vmem:[%s1 + $0x350] sm:$0xf]
  %v270 = vld [vmem:[%s1 + $0x354] sm:$0xf]
  %v271 = vld [vmem:[%s1 + $0x358] sm:$0xf]
  %v272 = vld [vmem:[%s1 + $0x35c] sm:$0xf]
  %v273 = vld [vmem:[%s1 + $0x360] sm:$0xf]
  %v274 = vld [vmem:[%s1 + $0x364] sm:$0xf]
  %v275 = vld [vmem:[%s1 + $0x368] sm:$0xf]
  %v276 = vld [vmem:[%s1 + $0x36c] sm:$0xf]
  %v277 = vld [vmem:[%s1 + $0x370] sm:$0xf]
  %v278 = vld [vmem:[%s1 + $0x374] sm:$0xf]
  %v279 = vld [vmem:[%s1 + $0x378] sm:$0xf]
  %v280 = vld [vmem:[%s1 + $0x37c] sm:$0xf]
  %v281 = vld [vmem:[%s1 + $0x380] sm:$0xf]
  %v282 = vld [vmem:[%s1 + $0x384] sm:$0xf]
  %v283 = vld [vmem:[%s1 + $0x388] sm:$0xf]
  %v284 = vld [vmem:[%s1 + $0x38c] sm:$0xf]
  %v285 = vld [vmem:[%s1 + $0x390] sm:$0xf]
  %v286 = vld [vmem:[%s1 + $0x394] sm:$0xf]
  %v287 = vld [vmem:[%s1 + $0x398] sm:$0xf]
  %v288 = vld [vmem:[%s1 + $0x39c] sm:$0xf]
  %v289 = vld [vmem:[%s1 + $0x3a0] sm:$0xf]
  %v290 = vld [vmem:[%s1 + $0x3a4] sm:$0xf]
  %v291 = vld [vmem:[%s1 + $0x3a8] sm:$0xf]
  %v292 = vld [vmem:[%s1 + $0x3ac] sm:$0xf]
  %v293 = vld [vmem:[%s1 + $0x3b0] sm:$0xf]
  %v294 = vld [vmem:[%s1 + $0x3b4] sm:$0xf]
  %v295 = vld [vmem:[%s1 + $0x3b8] sm:$0xf]
  %v296 = vld [vmem:[%s1 + $0x3bc] sm:$0xf]
  %v297 = vld [vmem:[%s1 + $0x3c0] sm:$0xf]
  %v298 = vld [vmem:[%s1 + $0x3c4] sm:$0xf]
  %v299 = vld [vmem:[%s1 + $0x3c8] sm:$0xf]
  %v300 = vld [vmem:[%s1 + $0x3cc] sm:$0xf]
  %v301 = vld [vmem:[%s1 + $0x3d0] sm:$0xf]
  %v302 = vld [vmem:[%s1 + $0x3d4] sm:$0xf]
  %v303 = vld [vmem:[%s1 + $0x3d8] sm:$0xf]
  %v304 = vld [vmem:[%s1 + $0x3dc] sm:$0xf]
  %v305 = vld [vmem:[%s1 + $0x3e0] sm:$0xf]
  %v306 = vld [vmem:[%s1 + $0x3e4] sm:$0xf]
  %v307 = vld [vmem:[%s1 + $0x3e8] sm:$0xf]
  %v308 = vld [vmem:[%s1 + $0x3ec] sm:$0xf]
  %v309 = vld [vmem:[%s1 + $0x3f0] sm:$0xf]
  %v310 = vld [vmem:[%s1 + $0x3f4] sm:$0xf]
  %v311 = vld [vmem:[%s1 + $0x3f8] sm:$0xf]
  %v312 = vld [vmem:[%s1 + $0x3fc] sm:$0xf]
  %v313 = vld [vmem:[%s1 + $0x400] sm:$0xf]
  %v314 = vld [vmem:[%s1 + $0x404] sm:$0xf]
  %v315 = vld [vmem:[%s1 + $0x408] sm:$0xf]
  %v316 = vld [vmem:[%s1 + $0x40c] sm:$0xf]
  %v317 = vld [vmem:[%s1 + $0x410] sm:$0xf]
  %v318 = vld [vmem:[%s1 + $0x414] sm:$0xf]
  %v319 = vld [vmem:[%s1 + $0x418] sm:$0xf]
  %v320 = vld [vmem:[%s1 + $0x41c] sm:$0xf]
  %v321 = vld [vmem:[%s1 + $0x420] sm:$0xf]
  %v322 = vld [vmem:[%s1 + $0x424] sm:$0xf]
  %v323 = vld [vmem:[%s1 + $0x428] sm:$0xf]
  %v324 = vld [vmem:[%s1 + $0x42c] sm:$0xf]
  %v325 = vld [vmem:[%s1 + $0x430] sm:$0xf]
  %v326 = vld [vmem:[%s1 + $0x434] sm:$0xf]
  %v327 = vld [vmem:[%s1 + $0x438] sm:$0xf]
  %v328 = vld [vmem:[%s1 + $0x43c] sm:$0xf]
  %v329 = vld [vmem:[%s1 + $0x440] sm:$0xf]
  %v330 = vld [vmem:[%s1 + $0x444] sm:$0xf]
  %v331 = vld [vmem:[%s1 + $0x448] sm:$0xf]
  %v332 = vld [vmem:[%s1 + $0x44c] sm:$0xf]
  %v333 = vld [vmem:[%s1 + $0x450] sm:$0xf]
  %v334 = vld [vmem:[%s1 + $0x454] sm:$0xf]
  %v335 = vld [vmem:[%s1 + $0x458] sm:$0xf]
  %v336 = vld [vmem:[%s1 + $0x45c] sm:$0xf]
  %v337 = vld [vmem:[%s1 + $0x460] sm:$0xf]
  %v338 = vld [vmem:[%s1 + $0x464] sm:$0xf]
  %v339 = vld [vmem:[%s1 + $0x468] sm:$0xf]
  %v340 = vld [vmem:[%s1 + $0x46c] sm:$0xf]
  %v341 = vld [vmem:[%s1 + $0x470] sm:$0xf]
  %v342 = vld [vmem:[%s1 + $0x474] sm:$0xf]
  %v343 = vld [vmem:[%s1 + $0x478] sm:$0xf]
  %v344 = vld [vmem:[%s1 + $0x47c] sm:$0xf]
  %v345 = vld [vmem:[%s1 + $0x480] sm:$0xf]
  %v346 = vld [vmem:[%s1 + $0x484] sm:$0xf]
  %v347 = vld [vmem:[%s1 + $0x488] sm:$0xf]
  %v348 = vld [vmem:[%s1 + $0x48c] sm:$0xf]
  %v349 = vld [vmem:[%s1 + $0x490] sm:$0xf]
  %v350 = vld [vmem:[%s1 + $0x494] sm:$0xf]
  %v351 = vld [vmem:[%s1 + $0x498] sm:$0xf]
  %v352 = vld [vmem:[%s1 + $0x49c] sm:$0xf]
  %v353 = vld [vmem:[%s1 + $0x4a0] sm:$0xf]
  %v354 = vld [vmem:[%s1 + $0x4a4] sm:$0xf]
  %v355 = vld [vmem:[%s1 + $0x4a8] sm:$0xf]
  %v356 = vld [vmem:[%s1 + $0x4ac] sm:$0xf]
  %v357 = vld [vmem:[%s1 + $0x4b0] sm:$0xf]
  %v358 = vld [vmem:[%s1 + $0x4b4] sm:$0xf]
  %v359 = vld [vmem:[%s1 + $0x4b8] sm:$0xf]
  %v360 = vld [vmem:[%s1 + $0x4bc] sm:$0xf]
  %v361 = vld [vmem:[%s1 + $0x4c0] sm:$0xf]
  %v362 = vld [vmem:[%s1 + $0x4c4] sm:$0xf]
  %v363 = vld [vmem:[%s1 + $0x4c8] sm:$0xf]
  %v364 = vld [vmem:[%s1 + $0x4cc] sm:$0xf]
  %v365 = vld [vmem:[%s1 + $0x4d0] sm:$0xf]
  %v366 = vld [vmem:[%s1 + $0x4d4] sm:$0xf]
  %v367 = vld [vmem:[%s1 + $0x4d8] sm:$0xf]
  %v368 = vld [vmem:[%s1 + $0x4dc] sm:$0xf]
  %v369 = vld [vmem:[%s1 + $0x4e0] sm:$0xf]
  %v370 = vld [vmem:[%s1 + $0x4e4] sm:$0xf]
  %v371 = vld [vmem:[%s1 + $0x4e8] sm:$0xf]
  %v372 = vld [vmem:[%s1 + $0x4ec] sm:$0xf]
  %v373 = vld [vmem:[%s1 + $0x4f0] sm:$0xf]
  %v374 = vld [vmem:[%s1 + $0x4f4] sm:$0xf]
  %v375 = vld [vmem:[%s1 + $0x4f8] sm:$0xf]
  %v376 = vld [vmem:[%s1 + $0x4fc] sm:$0xf]
  %v377 = vld [vmem:[%s1 + $0x500] sm:$0xf]
  %v378 = vld [vmem:[%s1 + $0x504] sm:$0xf]
  %v379 = vld [vmem:[%s1 + $0x508] sm:$0xf]
  %v380 = vld [vmem:[%s1 + $0x50c] sm:$0xf]
  %v381 = vld [vmem:[%s1 + $0x510] sm:$0xf]
  %v382 = vld [vmem:[%s1 + $0x514] sm:$0xf]
  %v383 = vld [vmem:[%s1 + $0x518] sm:$0xf]
  %v384 = vld [vmem:[%s1 + $0x51c] sm:$0xf]
  %v385 = vld [vmem:[%s1 + $0x520] sm:$0xf]
  %v386 = vld [vmem:[%s1 + $0x524] sm:$0xf]
  %v387 = vld [vmem:[%s1 + $0x528] sm:$0xf]
  %v388 = vld [vmem:[%s1 + $0x52c] sm:$0xf]
  %v389 = vld [vmem:[%s1 + $0x530] sm:$0xf]
  %v390 = vld [vmem:[%s1 + $0x534] sm:$0xf]
  %v391 = vld [vmem:[%s1 + $0x538] sm:$0xf]
  %v392 = vld [vmem:[%s1 + $0x53c] sm:$0xf]
  %v393 = vld [vmem:[%s1 + $0x540] sm:$0xf]
  %v394 = vld [vmem:[%s1 + $0x544] sm:$0xf]
  %v395 = vld [vmem:[%s1 + $0x548] sm:$0xf]
  %v396 = vld [vmem:[%s1 + $0x54c] sm:$0xf]
  %v397 = vld [vmem:[%s1 + $0x550] sm:$0xf]
  %v398 = vld [vmem:[%s1 + $0x554] sm:$0xf]
  %v399 = vld [vmem:[%s1 + $0x558] sm:$0xf]
  %v400 = vld [vmem:[%s1 + $0x55c] sm:$0xf]
  %v401 = vld [vmem:[%s1 + $0x560] sm:$0xf]
  %v402 = vld [vmem:[%s1 + $0x564] sm:$0xf]
  %v403 = vld [vmem:[%s1 + $0x568] sm:$0xf]
  %v404 = vld [vmem:[%s1 + $0x56c] sm:$0xf]
  %v405 = vld [vmem:[%s1 + $0x570] sm:$0xf]
  %v406 = vld [vmem:[%s1 + $0x574] sm:$0xf]
  %v407 = vld [vmem:[%s1 + $0x578] sm:$0xf]
  %v408 = vld [vmem:[%s1 + $0x57c] sm:$0xf]
  %v409 = vld [vmem:[%s1 + $0x580] sm:$0xf]
  %v410 = vld [vmem:[%s1 + $0x584] sm:$0xf]
  %v411 = vld [vmem:[%s1 + $0x588] sm:$0xf]
  %v412 = vld [vmem:[%s1 + $0x58c] sm:$0xf]
  %v413 = vld [vmem:[%s1 + $0x590] sm:$0xf]
  %v414 = vld [vmem:[%s1 + $0x594] sm:$0xf]
  %v415 = vld [vmem:[%s1 + $0x598] sm:$0xf]
  %v416 = vld [vmem:[%s1 + $0x59c] sm:$0xf]
  %v417 = vld [vmem:[%s1 + $0x5a0] sm:$0xf]
  %v418 = vld [vmem:[%s1 + $0x5a4] sm:$0xf]
  %v419 = vld [vmem:[%s1 + $0x5a8] sm:$0xf]
  %v420 = vld [vmem:[%s1 + $0x5ac] sm:$0xf]
  %v421 = vld [vmem:[%s1 + $0x5b0] sm:$0xf]
  %v422 = vld [vmem:[%s1 + $0x5b4] sm:$0xf]
  %v423 = vld [vmem:[%s1 + $0x5b8] sm:$0xf]
  %v424 = vld [vmem:[%s1 + $0x5bc] sm:$0xf]
  %v425 = vld [vmem:[%s1 + $0x5c0] sm:$0xf]
  %v426 = vld [vmem:[%s1 + $0x5c4] sm:$0xf]
  %v427 = vld [vmem:[%s1 + $0x5c8] sm:$0xf]
  %v428 = vld [vmem:[%s1 + $0x5cc] sm:$0xf]
  %v429 = vld [vmem:[%s1 + $0x5d0] sm:$0xf]
  %v430 = vld [vmem:[%s1 + $0x5d4] sm:$0xf]
  %v431 = vld [vmem:[%s1 + $0x5d8] sm:$0xf]
  %v432 = vld [vmem:[%s1 + $0x5dc] sm:$0xf]
  %v433 = vld [vmem:[%s1 + $0x5e0] sm:$0xf]
  %v434 = vld [vmem:[%s1 + $0x5e4] sm:$0xf]
  %v435 = vld [vmem:[%s1 + $0x5e8] sm:$0xf]
  %v436 = vld [vmem:[%s1 + $0x5ec] sm:$0xf]
  %v437 = vld [vmem:[%s1 + $0x5f0] sm:$0xf]
  %v438 = vld [vmem:[%s1 + $0x5f4] sm:$0xf]
  %v439 = vld [vmem:[%s1 + $0x5f8] sm:$0xf]
  %v440 = vld [vmem:[%s1 + $0x5fc] sm:$0xf]
  %v441 = vld [vmem:[%s1 + $0x600] sm:$0xf]
  %v442 = vld [vmem:[%s1 + $0x604] sm:$0xf]
  %v443 = vld [vmem:[%s1 + $0x608] sm:$0xf]
  %v444 = vld [vmem:[%s1 + $0x60c] sm:$0xf]
  %v445 = vld [vmem:[%s1 + $0x610] sm:$0xf]
  %v446 = vld [vmem:[%s1 + $0x614] sm:$0xf]
  %v447 = vld [vmem:[%s1 + $0x618] sm:$0xf]
  %v448 = vld [vmem:[%s1 + $0x61c] sm:$0xf]
  %v449 = vld [vmem:[%s1 + $0x620] sm:$0xf]
  %v450 = vld [vmem:[%s1 + $0x624] sm:$0xf]
  %v451 = vld [vmem:[%s1 + $0x628] sm:$0xf]
  %v452 = vld [vmem:[%s1 + $0x62c] sm:$0xf]
  %v453 = vld [vmem:[%s1 + $0x630] sm:$0xf]
  %v454 = vld [vmem:[%s1 + $0x634] sm:$0xf]
  %v455 = vld [vmem:[%s1 + $0x638] sm:$0xf]
  %v456 = vld [vmem:[%s1 + $0x63c] sm:$0xf]
  %v457 = vld [vmem:[%s1 + $0x640] sm:$0xf]
  %v458 = vld [vmem:[%s1 + $0x644] sm:$0xf]
  %v459 = vld [vmem:[%s1 + $0x648] sm:$0xf]
  %v460 = vld [vmem:[%s1 + $0x64c] sm:$0xf]
  %v461 = vld [vmem:[%s1 + $0x650] sm:$0xf]
  %v462 = vld [vmem:[%s1 + $0x654] sm:$0xf]
  %v463 = vld [vmem:[%s1 + $0x658] sm:$0xf]
  %v464 = vld [vmem:[%s1 + $0x65c] sm:$0xf]
  %v465 = vld [vmem:[%s1 + $0x660] sm:$0xf]
  %v466 = vld [vmem:[%s1 + $0x664] sm:$0xf]
  %v467 = vld [vmem:[%s1 + $0x668] sm:$0xf]
  %v468 = vld [vmem:[%s1 + $0x66c] sm:$0xf]
  %v469 = vld [vmem:[%s1 + $0x670] sm:$0xf]
  %v470 = vld [vmem:[%s1 + $0x674] sm:$0xf]
  %v471 = vld [vmem:[%s1 + $0x678] sm:$0xf]
  %v472 = vld [vmem:[%s1 + $0x67c] sm:$0xf]
  %v473 = vld [vmem:[%s1 + $0x680] sm:$0xf]
  %v474 = vld [vmem:[%s1 + $0x684] sm:$0xf]
  %v475 = vld [vmem:[%s1 + $0x688] sm:$0xf]
  %v476 = vld [vmem:[%s1 + $0x68c] sm:$0xf]
  %v477 = vld [vmem:[%s1 + $0x690] sm:$0xf]
  %v478 = vld [vmem:[%s1 + $0x694] sm:$0xf]
  %v479 = vld [vmem:[%s1 + $0x698] sm:$0xf]
  %v480 = vld [vmem:[%s1 + $0x69c] sm:$0xf]
  %v481 = vld [vmem:[%s1 + $0x6a0] sm:$0xf]
  %v482 = vld [vmem:[%s1 + $0x6a4] sm:$0xf]
  %v483 = vld [vmem:[%s1 + $0x6a8] sm:$0xf]
  %v484 = vld [vmem:[%s1 + $0x6ac] sm:$0xf]
  %v485 = vld [vmem:[%s1 + $0x6b0] sm:$0xf]
  %v486 = vld [vmem:[%s1 + $0x6b4] sm:$0xf]
  %v487 = vld [vmem:[%s1 + $0x6b8] sm:$0xf]
  %v488 = vld [vmem:[%s1 + $0x6bc] sm:$0xf]
  %v489 = vld [vmem:[%s1 + $0x6c0] sm:$0xf]
  %v490 = vld [vmem:[%s1 + $0x6c4] sm:$0xf]
  %v491 = vld [vmem:[%s1 + $0x6c8] sm:$0xf]
  %v492 = vld [vmem:[%s1 + $0x6cc] sm:$0xf]
  %v493 = vld [vmem:[%s1 + $0x6d0] sm:$0xf]
  %v494 = vld [vmem:[%s1 + $0x6d4] sm:$0xf]
  %v495 = vld [vmem:[%s1 + $0x6d8] sm:$0xf]
  %v496 = vld [vmem:[%s1 + $0x6dc] sm:$0xf]
  %v497 = vld [vmem:[%s1 + $0x6e0] sm:$0xf]
  %v498 = vld [vmem:[%s1 + $0x6e4] sm:$0xf]
  %v499 = vld [vmem:[%s1 + $0x6e8] sm:$0xf]
  %v500 = vld [vmem:[%s1 + $0x6ec] sm:$0xf]
  %v501 = vld [vmem:[%s1 + $0x6f0] sm:$0xf]
  %v502 = vld [vmem:[%s1 + $0x6f4] sm:$0xf]
  %v503 = vld [vmem:[%s1 + $0x6f8] sm:$0xf]
  %v504 = vld [vmem:[%s1 + $0x6fc] sm:$0xf]
  %v505 = vld [vmem:[%s1 + $0x700] sm:$0xf]
  %v506 = vld [vmem:[%s1 + $0x704] sm:$0xf]
  %v507 = vld [vmem:[%s1 + $0x708] sm:$0xf]
  %v508 = vld [vmem:[%s1 + $0x70c] sm:$0xf]
  %v509 = vld [vmem:[%s1 + $0x710] sm:$0xf]
  %v510 = vld [vmem:[%s1 + $0x714] sm:$0xf]
  %v511 = vld [vmem:[%s1 + $0x718] sm:$0xf]
  %v512 = vld [vmem:[%s1 + $0x71c] sm:$0xf]
  %v513 = vld [vmem:[%s1 + $0x720] sm:$0xf]
  %v514 = vld [vmem:[%s1 + $0x724] sm:$0xf]
  %v515 = vld [vmem:[%s1 + $0x728] sm:$0xf]
  %v516 = vld [vmem:[%s1 + $0x72c] sm:$0xf]
  %v517 = vld [vmem:[%s1 + $0x730] sm:$0xf]
  %v518 = vld [vmem:[%s1 + $0x734] sm:$0xf]
  %v519 = vld [vmem:[%s1 + $0x738] sm:$0xf]
  %v520 = vld [vmem:[%s1 + $0x73c] sm:$0xf]
  %v521 = vld [vmem:[%s1 + $0x740] sm:$0xf]
  %v522 = vld [vmem:[%s1 + $0x744] sm:$0xf]
  %v523 = vld [vmem:[%s1 + $0x748] sm:$0xf]
  %v524 = vld [vmem:[%s1 + $0x74c] sm:$0xf]
  %v525 = vld [vmem:[%s1 + $0x750] sm:$0xf]
  %v526 = vld [vmem:[%s1 + $0x754] sm:$0xf]
  %v527 = vld [vmem:[%s1 + $0x758] sm:$0xf]
  %v528 = vld [vmem:[%s1 + $0x75c] sm:$0xf]
  %v529 = vld [vmem:[%s1 + $0x760] sm:$0xf]
  %v530 = vld [vmem:[%s1 + $0x764] sm:$0xf]
  %v531 = vld [vmem:[%s1 + $0x768] sm:$0xf]
  %v532 = vld [vmem:[%s1 + $0x76c] sm:$0xf]
  %v533 = vld [vmem:[%s1 + $0x770] sm:$0xf]
  %v534 = vld [vmem:[%s1 + $0x774] sm:$0xf]
  %v535 = vld [vmem:[%s1 + $0x778] sm:$0xf]
  %v536 = vld [vmem:[%s1 + $0x77c] sm:$0xf]
  %v537 = vld [vmem:[%s1 + $0x780] sm:$0xf]
  %v538 = vld [vmem:[%s1 + $0x784] sm:$0xf]
  %v539 = vld [vmem:[%s1 + $0x788] sm:$0xf]
  %v540 = vld [vmem:[%s1 + $0x78c] sm:$0xf]
  %v541 = vld [vmem:[%s1 + $0x790] sm:$0xf]
  %v542 = vld [vmem:[%s1 + $0x794] sm:$0xf]
  %v543 = vld [vmem:[%s1 + $0x798] sm:$0xf]
  %v544 = vld [vmem:[%s1 + $0x79c] sm:$0xf]
  %v545 = vld [vmem:[%s1 + $0x7a0] sm:$0xf]
  %v546 = vld [vmem:[%s1 + $0x7a4] sm:$0xf]
  %v547 = vld [vmem:[%s1 + $0x7a8] sm:$0xf]
  %v548 = vld [vmem:[%s1 + $0x7ac] sm:$0xf]
  %v549 = vld [vmem:[%s1 + $0x7b0] sm:$0xf]
  %v550 = vld [vmem:[%s1 + $0x7b4] sm:$0xf]
  %v551 = vld [vmem:[%s1 + $0x7b8] sm:$0xf]
  %v552 = vld [vmem:[%s1 + $0x7bc] sm:$0xf]
  %v553 = vld [vmem:[%s1 + $0x7c0] sm:$0xf]
  %v554 = vld [vmem:[%s1 + $0x7c4] sm:$0xf]
  %v555 = vld [vmem:[%s1 + $0x7c8] sm:$0xf]
  %v556 = vld [vmem:[%s1 + $0x7cc] sm:$0xf]
  %v557 = vld [vmem:[%s1 + $0x7d0] sm:$0xf]
  %v558 = vld [vmem:[%s1 + $0x7d4] sm:$0xf]
  %v559 = vld [vmem:[%s1 + $0x7d8] sm:$0xf]
  %v560 = vld [vmem:[%s1 + $0x7dc] sm:$0xf]
  %v561 = vld [vmem:[%s1 + $0x7e0] sm:$0xf]
  %v562 = vld [vmem:[%s1 + $0x7e4] sm:$0xf]
  %v563 = vld [vmem:[%s1 + $0x7e8] sm:$0xf]
  %v564 = vld [vmem:[%s1 + $0x7ec] sm:$0xf]
  %v565 = vld [vmem:[%s1 + $0x7f0] sm:$0xf]
  %v566 = vld [vmem:[%s1 + $0x7f4] sm:$0xf]
  %v567 = vld [vmem:[%s1 + $0x7f8] sm:$0xf]
  %v568 = vld [vmem:[%s1 + $0x7fc] sm:$0xf]
  %v569 = vld [vmem:[%s1 + $0x800] sm:$0xf]
  %v570 = vld [vmem:[%s1 + $0x804] sm:$0xf]
  %v571 = vld [vmem:[%s1 + $0x808] sm:$0xf]
  %v572 = vld [vmem:[%s1 + $0x80c] sm:$0xf]
  %v573 = vld [vmem:[%s1 + $0x810] sm:$0xf]
  %v574 = vld [vmem:[%s1 + $0x814] sm:$0xf]
  %v575 = vld [vmem:[%s1 + $0x818] sm:$0xf]
  %v576 = vld [vmem:[%s1 + $0x81c] sm:$0xf]
  %v577 = vld [vmem:[%s1 + $0x820] sm:$0xf]
  %v578 = vld [vmem:[%s1 + $0x824] sm:$0xf]
  %v579 = vld [vmem:[%s1 + $0x828] sm:$0xf]
  %v580 = vld [vmem:[%s1 + $0x82c] sm:$0xf]
  %v581 = vld [vmem:[%s1 + $0x830] sm:$0xf]
  %v582 = vld [vmem:[%s1 + $0x834] sm:$0xf]
  %v583 = vld [vmem:[%s1 + $0x838] sm:$0xf]
  %v584 = vld [vmem:[%s1 + $0x83c] sm:$0xf]
  %v585 = vld [vmem:[%s1 + $0x840] sm:$0xf]
  %v586 = vld [vmem:[%s1 + $0x844] sm:$0xf]
  %v587 = vld [vmem:[%s1 + $0x848] sm:$0xf]
  %v588 = vld [vmem:[%s1 + $0x84c] sm:$0xf]
  %v589 = vld [vmem:[%s1 + $0x850] sm:$0xf]
  %v590 = vld [vmem:[%s1 + $0x854] sm:$0xf]
  %v591 = vld [vmem:[%s1 + $0x858] sm:$0xf]
  %v592 = vld [vmem:[%s1 + $0x85c] sm:$0xf]
  %v593 = vld [vmem:[%s1 + $0x860] sm:$0xf]
  %v594 = vld [vmem:[%s1 + $0x864] sm:$0xf]
  %v595 = vld [vmem:[%s1 + $0x868] sm:$0xf]
  %v596 = vld [vmem:[%s1 + $0x86c] sm:$0xf]
  %v597 = vld [vmem:[%s1 + $0x870] sm:$0xf]
  %v598 = vld [vmem:[%s1 + $0x874] sm:$0xf]
  %v599 = vld [vmem:[%s1 + $0x878] sm:$0xf]
  %v600 = vld [vmem:[%s1 + $0x87c] sm:$0xf]
  %v601 = vld [vmem:[%s1 + $0x880] sm:$0xf]
  %v602 = vld [vmem:[%s1 + $0x884] sm:$0xf]
  %v603 = vld [vmem:[%s1 + $0x888] sm:$0xf]
  %v604 = vld [vmem:[%s1 + $0x88c] sm:$0xf]
  %v605 = vld [vmem:[%s1 + $0x890] sm:$0xf]
  %v606 = vld [vmem:[%s1 + $0x894] sm:$0xf]
  %v607 = vld [vmem:[%s1 + $0x898] sm:$0xf]
  %v608 = vld [vmem:[%s1 + $0x89c] sm:$0xf]
  %v609 = vld [vmem:[%s1 + $0x8a0] sm:$0xf]
  %v610 = vld [vmem:[%s1 + $0x8a4] sm:$0xf]
  %v611 = vld [vmem:[%s1 + $0x8a8] sm:$0xf]
  %v612 = vld [vmem:[%s1 + $0x8ac] sm:$0xf]
  %v613 = vld [vmem:[%s1 + $0x8b0] sm:$0xf]
  %v614 = vld [vmem:[%s1 + $0x8b4] sm:$0xf]
  %v615 = vld [vmem:[%s1 + $0x8b8] sm:$0xf]
  %v616 = vld [vmem:[%s1 + $0x8bc] sm:$0xf]
  %v617 = vld [vmem:[%s1 + $0x8c0] sm:$0xf]
  %v618 = vld [vmem:[%s1 + $0x8c4] sm:$0xf]
  %v619 = vld [vmem:[%s1 + $0x8c8] sm:$0xf]
  %v620 = vld [vmem:[%s1 + $0x8cc] sm:$0xf]
  %v621 = vld [vmem:[%s1 + $0x8d0] sm:$0xf]
  %v622 = vld [vmem:[%s1 + $0x8d4] sm:$0xf]
  %v623 = vld [vmem:[%s1 + $0x8d8] sm:$0xf]
  %v624 = vld [vmem:[%s1 + $0x8dc] sm:$0xf]
  %v625 = vld [vmem:[%s1 + $0x8e0] sm:$0xf]
  %v626 = vld [vmem:[%s1 + $0x8e4] sm:$0xf]
  %v627 = vld [vmem:[%s1 + $0x8e8] sm:$0xf]
  %v628 = vld [vmem:[%s1 + $0x8ec] sm:$0xf]
  %v629 = vld [vmem:[%s1 + $0x8f0] sm:$0xf]
  %v630 = vld [vmem:[%s1 + $0x8f4] sm:$0xf]
  %v631 = vld [vmem:[%s1 + $0x8f8] sm:$0xf]
  %v632 = vld [vmem:[%s1 + $0x8fc] sm:$0xf]
  %v633 = vld [vmem:[%s2] sm:$0x1]
  %v635 = vlaneseq
  %v636 = vshrl.u32 %v635, 7
  %v637 = vsub.s32 0, %v636
  %v638 = vrot.slane %v633, %v637
  %v676 = vunpack.c.l.b16 %v21
  %v677 = vunpack.c.h.b16 %v21
  %v678 = vunpack.c.l.b16 %v22
  %v679 = vunpack.c.h.b16 %v22
  %v680 = vunpack.c.l.b16 %v23
  %v681 = vunpack.c.h.b16 %v23
  %v682 = vunpack.c.l.b16 %v24
  %v683 = vunpack.c.h.b16 %v24
  %v684 = vunpack.c.l.b16 %v25
  %v685 = vunpack.c.h.b16 %v25
  %v686 = vunpack.c.l.b16 %v26
  %v687 = vunpack.c.h.b16 %v26
  %v688 = vunpack.c.l.b16 %v27
  %v689 = vunpack.c.h.b16 %v27
  %v690 = vunpack.c.l.b16 %v28
  %v691 = vunpack.c.h.b16 %v28
  %v692 = vunpack.c.l.b16 %v29
  %v693 = vunpack.c.h.b16 %v29
  %v694 = vunpack.c.l.b16 %v30
  %v695 = vunpack.c.h.b16 %v30
  %v696 = vunpack.c.l.b16 %v31
  %v697 = vunpack.c.h.b16 %v31
  %v698 = vunpack.c.l.b16 %v32
  %v699 = vunpack.c.h.b16 %v32
  %v700 = vunpack.c.l.b16 %v33
  %v701 = vunpack.c.h.b16 %v33
  %v702 = vunpack.c.l.b16 %v34
  %v703 = vunpack.c.h.b16 %v34
  %v704 = vunpack.c.l.b16 %v35
  %v705 = vunpack.c.h.b16 %v35
  %v706 = vunpack.c.l.b16 %v36
  %v707 = vunpack.c.h.b16 %v36
  %v708 = vunpack.c.l.b16 %v37
  %v709 = vunpack.c.h.b16 %v37
  %v710 = vunpack.c.l.b16 %v38
  %v711 = vunpack.c.h.b16 %v38
  %v712 = vunpack.c.l.b16 %v39
  %v713 = vunpack.c.h.b16 %v39
  %v714 = vunpack.c.l.b16 %v40
  %v715 = vunpack.c.h.b16 %v40
  %v716 = vunpack.c.l.b16 %v41
  %v717 = vunpack.c.h.b16 %v41
  %v718 = vunpack.c.l.b16 %v42
  %v719 = vunpack.c.h.b16 %v42
  %v720 = vunpack.c.l.b16 %v43
  %v721 = vunpack.c.h.b16 %v43
  %v722 = vunpack.c.l.b16 %v44
  %v723 = vunpack.c.h.b16 %v44
  %v724 = vunpack.c.l.b16 %v45
  %v725 = vunpack.c.h.b16 %v45
  %v726 = vunpack.c.l.b16 %v46
  %v727 = vunpack.c.h.b16 %v46
  %v728 = vunpack.c.l.b16 %v47
  %v729 = vunpack.c.h.b16 %v47
  %v730 = vunpack.c.l.b16 %v48
  %v731 = vunpack.c.h.b16 %v48
  %v732 = vunpack.c.l.b16 %v49
  %v733 = vunpack.c.h.b16 %v49
  %v734 = vunpack.c.l.b16 %v50
  %v735 = vunpack.c.h.b16 %v50
  %v736 = vunpack.c.l.b16 %v51
  %v737 = vunpack.c.h.b16 %v51
  %v738 = vunpack.c.l.b16 %v52
  %v739 = vunpack.c.h.b16 %v52
  %v740 = vunpack.c.l.b16 %v53
  %v741 = vunpack.c.h.b16 %v53
  %v742 = vunpack.c.l.b16 %v54
  %v743 = vunpack.c.h.b16 %v54
  %v744 = vunpack.c.l.b16 %v55
  %v745 = vunpack.c.h.b16 %v55
  %v746 = vunpack.c.l.b16 %v56
  %v747 = vunpack.c.h.b16 %v56
  %v748 = vpack.c.b16 %v712, %v676
  %v749 = vpack.c.b16 %v713, %v677
  %v750 = vpack.c.b16 %v714, %v678
  %v751 = vpack.c.b16 %v715, %v679
  %v752 = vpack.c.b16 %v716, %v680
  %v753 = vpack.c.b16 %v717, %v681
  %v754 = vpack.c.b16 %v718, %v682
  %v755 = vpack.c.b16 %v719, %v683
  %v756 = vpack.c.b16 %v720, %v684
  %v757 = vpack.c.b16 %v721, %v685
  %v758 = vpack.c.b16 %v722, %v686
  %v759 = vpack.c.b16 %v723, %v687
  %v760 = vpack.c.b16 %v724, %v688
  %v761 = vpack.c.b16 %v725, %v689
  %v762 = vpack.c.b16 %v726, %v690
  %v763 = vpack.c.b16 %v727, %v691
  %v764 = vpack.c.b16 %v728, %v692
  %v765 = vpack.c.b16 %v729, %v693
  %v766 = vpack.c.b16 %v730, %v694
  %v767 = vpack.c.b16 %v731, %v695
  %v768 = vpack.c.b16 %v732, %v696
  %v769 = vpack.c.b16 %v733, %v697
  %v770 = vpack.c.b16 %v734, %v698
  %v771 = vpack.c.b16 %v735, %v699
  %v772 = vpack.c.b16 %v736, %v700
  %v773 = vpack.c.b16 %v737, %v701
  %v774 = vpack.c.b16 %v738, %v702
  %v775 = vpack.c.b16 %v739, %v703
  %v776 = vpack.c.b16 %v740, %v704
  %v777 = vpack.c.b16 %v741, %v705
  %v778 = vpack.c.b16 %v742, %v706
  %v779 = vpack.c.b16 %v743, %v707
  %v780 = vpack.c.b16 %v744, %v708
  %v781 = vpack.c.b16 %v745, %v709
  %v782 = vpack.c.b16 %v746, %v710
  %v783 = vpack.c.b16 %v747, %v711
  %v1396 = vunpack.c.l.b16 %v57
  %v1397 = vunpack.c.l.b16 %v58
  %v1398 = vunpack.c.l.b16 %v59
  %v1399 = vunpack.c.l.b16 %v60
  %v1400 = vunpack.c.l.b16 %v61
  %v1401 = vunpack.c.l.b16 %v62
  %v1402 = vunpack.c.l.b16 %v63
  %v1403 = vunpack.c.l.b16 %v64
  %v1404 = vunpack.c.l.b16 %v65
  %v1405 = vunpack.c.l.b16 %v66
  %v1406 = vunpack.c.l.b16 %v67
  %v1407 = vunpack.c.l.b16 %v68
  %v1408 = vunpack.c.l.b16 %v69
  %v1409 = vunpack.c.l.b16 %v70
  %v1410 = vunpack.c.l.b16 %v71
  %v1411 = vunpack.c.l.b16 %v72
  %v1412 = vunpack.c.l.b16 %v73
  %v1413 = vunpack.c.l.b16 %v74
  %v1414 = vunpack.c.l.b16 %v75
  %v1415 = vunpack.c.l.b16 %v76
  %v1416 = vunpack.c.l.b16 %v77
  %v1417 = vunpack.c.l.b16 %v78
  %v1418 = vunpack.c.l.b16 %v79
  %v1419 = vunpack.c.l.b16 %v80
  %v1420 = vunpack.c.l.b16 %v81
  %v1421 = vunpack.c.l.b16 %v82
  %v1422 = vunpack.c.l.b16 %v83
  %v1423 = vunpack.c.l.b16 %v84
  %v1424 = vunpack.c.l.b16 %v85
  %v1425 = vunpack.c.l.b16 %v86
  %v1426 = vunpack.c.l.b16 %v87
  %v1427 = vunpack.c.l.b16 %v88
  %v1428 = vunpack.c.l.b16 %v89
  %v1429 = vunpack.c.l.b16 %v90
  %v1430 = vunpack.c.l.b16 %v91
  %v1431 = vunpack.c.l.b16 %v92
  %v1432 = vunpack.c.l.b16 %v93
  %v1433 = vunpack.c.l.b16 %v94
  %v1434 = vunpack.c.l.b16 %v95
  %v1435 = vunpack.c.l.b16 %v96
  %v1436 = vunpack.c.l.b16 %v97
  %v1437 = vunpack.c.l.b16 %v98
  %v1438 = vunpack.c.l.b16 %v99
  %v1439 = vunpack.c.l.b16 %v100
  %v1440 = vunpack.c.l.b16 %v101
  %v1441 = vunpack.c.l.b16 %v102
  %v1442 = vunpack.c.l.b16 %v103
  %v1443 = vunpack.c.l.b16 %v104
  %v1444 = vunpack.c.l.b16 %v105
  %v1445 = vunpack.c.l.b16 %v106
  %v1446 = vunpack.c.l.b16 %v107
  %v1447 = vunpack.c.l.b16 %v108
  %v1448 = vunpack.c.l.b16 %v109
  %v1449 = vunpack.c.l.b16 %v110
  %v1450 = vunpack.c.l.b16 %v111
  %v1451 = vunpack.c.l.b16 %v112
  %v1452 = vunpack.c.l.b16 %v113
  %v1453 = vunpack.c.l.b16 %v114
  %v1454 = vunpack.c.l.b16 %v115
  %v1455 = vunpack.c.l.b16 %v116
  %v1456 = vunpack.c.l.b16 %v117
  %v1457 = vunpack.c.l.b16 %v118
  %v1458 = vunpack.c.l.b16 %v119
  %v1459 = vunpack.c.l.b16 %v120
  %v1460 = vunpack.c.l.b16 %v121
  %v1461 = vunpack.c.l.b16 %v122
  %v1462 = vunpack.c.l.b16 %v123
  %v1463 = vunpack.c.l.b16 %v124
  %v1464 = vunpack.c.l.b16 %v125
  %v1465 = vunpack.c.l.b16 %v126
  %v1466 = vunpack.c.l.b16 %v127
  %v1467 = vunpack.c.l.b16 %v128
  %v1468 = vunpack.c.l.b16 %v129
  %v1469 = vunpack.c.l.b16 %v130
  %v1470 = vunpack.c.l.b16 %v131
  %v1471 = vunpack.c.l.b16 %v132
  %v1472 = vunpack.c.l.b16 %v133
  %v1473 = vunpack.c.l.b16 %v134
  %v1474 = vunpack.c.l.b16 %v135
  %v1475 = vunpack.c.l.b16 %v136
  %v1476 = vunpack.c.l.b16 %v137
  %v1477 = vunpack.c.l.b16 %v138
  %v1478 = vunpack.c.l.b16 %v139
  %v1479 = vunpack.c.l.b16 %v140
  %v1480 = vunpack.c.l.b16 %v141
  %v1481 = vunpack.c.l.b16 %v142
  %v1482 = vunpack.c.l.b16 %v143
  %v1483 = vunpack.c.l.b16 %v144
  %v1484 = vunpack.c.l.b16 %v145
  %v1485 = vunpack.c.l.b16 %v146
  %v1486 = vunpack.c.l.b16 %v147
  %v1487 = vunpack.c.l.b16 %v148
  %v1488 = vunpack.c.l.b16 %v149
  %v1489 = vunpack.c.l.b16 %v150
  %v1490 = vunpack.c.l.b16 %v151
  %v1491 = vunpack.c.l.b16 %v152
  %v1492 = vunpack.c.l.b16 %v153
  %v1493 = vunpack.c.l.b16 %v154
  %v1494 = vunpack.c.l.b16 %v155
  %v1495 = vunpack.c.l.b16 %v156
  %v1496 = vunpack.c.l.b16 %v157
  %v1497 = vunpack.c.l.b16 %v158
  %v1498 = vunpack.c.l.b16 %v159
  %v1499 = vunpack.c.l.b16 %v160
  %v1500 = vunpack.c.l.b16 %v161
  %v1501 = vunpack.c.l.b16 %v162
  %v1502 = vunpack.c.l.b16 %v163
  %v1503 = vunpack.c.l.b16 %v164
  %v1504 = vunpack.c.l.b16 %v165
  %v1505 = vunpack.c.l.b16 %v166
  %v1506 = vunpack.c.l.b16 %v167
  %v1507 = vunpack.c.l.b16 %v168
  %v1508 = vunpack.c.l.b16 %v169
  %v1509 = vunpack.c.l.b16 %v170
  %v1510 = vunpack.c.l.b16 %v171
  %v1511 = vunpack.c.l.b16 %v172
  %v1512 = vunpack.c.l.b16 %v173
  %v1513 = vunpack.c.l.b16 %v174
  %v1514 = vunpack.c.l.b16 %v175
  %v1515 = vunpack.c.l.b16 %v176
  %v1516 = vunpack.c.l.b16 %v177
  %v1517 = vunpack.c.l.b16 %v178
  %v1518 = vunpack.c.l.b16 %v179
  %v1519 = vunpack.c.l.b16 %v180
  %v1520 = vunpack.c.l.b16 %v181
  %v1521 = vunpack.c.l.b16 %v182
  %v1522 = vunpack.c.l.b16 %v183
  %v1523 = vunpack.c.l.b16 %v184
  %v1524 = vunpack.c.l.b16 %v185
  %v1525 = vunpack.c.l.b16 %v186
  %v1526 = vunpack.c.l.b16 %v187
  %v1527 = vunpack.c.l.b16 %v188
  %v1528 = vunpack.c.l.b16 %v189
  %v1529 = vunpack.c.l.b16 %v190
  %v1530 = vunpack.c.l.b16 %v191
  %v1531 = vunpack.c.l.b16 %v192
  %v1532 = vunpack.c.l.b16 %v193
  %v1533 = vunpack.c.l.b16 %v194
  %v1534 = vunpack.c.l.b16 %v195
  %v1535 = vunpack.c.l.b16 %v196
  %v1536 = vunpack.c.l.b16 %v197
  %v1537 = vunpack.c.l.b16 %v198
  %v1538 = vunpack.c.l.b16 %v199
  %v1539 = vunpack.c.l.b16 %v200
  %v1540 = vunpack.c.l.b16 %v201
  %v1541 = vunpack.c.l.b16 %v202
  %v1542 = vunpack.c.l.b16 %v203
  %v1543 = vunpack.c.l.b16 %v204
  %v1544 = vunpack.c.l.b16 %v205
  %v1545 = vunpack.c.l.b16 %v206
  %v1546 = vunpack.c.l.b16 %v207
  %v1547 = vunpack.c.l.b16 %v208
  %v1548 = vunpack.c.l.b16 %v209
  %v1549 = vunpack.c.l.b16 %v210
  %v1550 = vunpack.c.l.b16 %v211
  %v1551 = vunpack.c.l.b16 %v212
  %v1552 = vunpack.c.l.b16 %v213
  %v1553 = vunpack.c.l.b16 %v214
  %v1554 = vunpack.c.l.b16 %v215
  %v1555 = vunpack.c.l.b16 %v216
  %v1556 = vunpack.c.l.b16 %v217
  %v1557 = vunpack.c.l.b16 %v218
  %v1558 = vunpack.c.l.b16 %v219
  %v1559 = vunpack.c.l.b16 %v220
  %v1560 = vunpack.c.l.b16 %v221
  %v1561 = vunpack.c.l.b16 %v222
  %v1562 = vunpack.c.l.b16 %v223
  %v1563 = vunpack.c.l.b16 %v224
  %v1564 = vunpack.c.l.b16 %v225
  %v1565 = vunpack.c.l.b16 %v226
  %v1566 = vunpack.c.l.b16 %v227
  %v1567 = vunpack.c.l.b16 %v228
  %v1568 = vunpack.c.l.b16 %v229
  %v1569 = vunpack.c.l.b16 %v230
  %v1570 = vunpack.c.l.b16 %v231
  %v1571 = vunpack.c.l.b16 %v232
  %v1572 = vunpack.c.l.b16 %v233
  %v1573 = vunpack.c.l.b16 %v234
  %v1574 = vunpack.c.l.b16 %v235
  %v1575 = vunpack.c.l.b16 %v236
  %v1576 = vunpack.c.l.b16 %v237
  %v1577 = vunpack.c.l.b16 %v238
  %v1578 = vunpack.c.l.b16 %v239
  %v1579 = vunpack.c.l.b16 %v240
  %v1580 = vunpack.c.l.b16 %v241
  %v1581 = vunpack.c.l.b16 %v242
  %v1582 = vunpack.c.l.b16 %v243
  %v1583 = vunpack.c.l.b16 %v244
  %v1584 = vunpack.c.l.b16 %v245
  %v1585 = vunpack.c.l.b16 %v246
  %v1586 = vunpack.c.l.b16 %v247
  %v1587 = vunpack.c.l.b16 %v248
  %v1588 = vunpack.c.l.b16 %v249
  %v1589 = vunpack.c.l.b16 %v250
  %v1590 = vunpack.c.l.b16 %v251
  %v1591 = vunpack.c.l.b16 %v252
  %v1592 = vunpack.c.l.b16 %v253
  %v1593 = vunpack.c.l.b16 %v254
  %v1594 = vunpack.c.l.b16 %v255
  %v1595 = vunpack.c.l.b16 %v256
  %v1596 = vunpack.c.l.b16 %v257
  %v1597 = vunpack.c.l.b16 %v258
  %v1598 = vunpack.c.l.b16 %v259
  %v1599 = vunpack.c.l.b16 %v260
  %v1600 = vunpack.c.l.b16 %v261
  %v1601 = vunpack.c.l.b16 %v262
  %v1602 = vunpack.c.l.b16 %v263
  %v1603 = vunpack.c.l.b16 %v264
  %v1604 = vunpack.c.l.b16 %v265
  %v1605 = vunpack.c.l.b16 %v266
  %v1606 = vunpack.c.l.b16 %v267
  %v1607 = vunpack.c.l.b16 %v268
  %v1608 = vunpack.c.l.b16 %v269
  %v1609 = vunpack.c.l.b16 %v270
  %v1610 = vunpack.c.l.b16 %v271
  %v1611 = vunpack.c.l.b16 %v272
  %v1612 = vunpack.c.l.b16 %v273
  %v1613 = vunpack.c.l.b16 %v274
  %v1614 = vunpack.c.l.b16 %v275
  %v1615 = vunpack.c.l.b16 %v276
  %v1616 = vunpack.c.l.b16 %v277
  %v1617 = vunpack.c.l.b16 %v278
  %v1618 = vunpack.c.l.b16 %v279
  %v1619 = vunpack.c.l.b16 %v280
  %v1620 = vunpack.c.l.b16 %v281
  %v1621 = vunpack.c.l.b16 %v282
  %v1622 = vunpack.c.l.b16 %v283
  %v1623 = vunpack.c.l.b16 %v284
  %v1624 = vunpack.c.l.b16 %v285
  %v1625 = vunpack.c.l.b16 %v286
  %v1626 = vunpack.c.l.b16 %v287
  %v1627 = vunpack.c.l.b16 %v288
  %v1628 = vunpack.c.l.b16 %v289
  %v1629 = vunpack.c.l.b16 %v290
  %v1630 = vunpack.c.l.b16 %v291
  %v1631 = vunpack.c.l.b16 %v292
  %v1632 = vunpack.c.l.b16 %v293
  %v1633 = vunpack.c.l.b16 %v294
  %v1634 = vunpack.c.l.b16 %v295
  %v1635 = vunpack.c.l.b16 %v296
  %v1636 = vunpack.c.l.b16 %v297
  %v1637 = vunpack.c.l.b16 %v298
  %v1638 = vunpack.c.l.b16 %v299
  %v1639 = vunpack.c.l.b16 %v300
  %v1640 = vunpack.c.l.b16 %v301
  %v1641 = vunpack.c.l.b16 %v302
  %v1642 = vunpack.c.l.b16 %v303
  %v1643 = vunpack.c.l.b16 %v304
  %v1644 = vunpack.c.l.b16 %v305
  %v1645 = vunpack.c.l.b16 %v306
  %v1646 = vunpack.c.l.b16 %v307
  %v1647 = vunpack.c.l.b16 %v308
  %v1648 = vunpack.c.l.b16 %v309
  %v1649 = vunpack.c.l.b16 %v310
  %v1650 = vunpack.c.l.b16 %v311
  %v1651 = vunpack.c.l.b16 %v312
  %v1652 = vunpack.c.l.b16 %v313
  %v1653 = vunpack.c.l.b16 %v314
  %v1654 = vunpack.c.l.b16 %v315
  %v1655 = vunpack.c.l.b16 %v316
  %v1656 = vunpack.c.l.b16 %v317
  %v1657 = vunpack.c.l.b16 %v318
  %v1658 = vunpack.c.l.b16 %v319
  %v1659 = vunpack.c.l.b16 %v320
  %v1660 = vunpack.c.l.b16 %v321
  %v1661 = vunpack.c.l.b16 %v322
  %v1662 = vunpack.c.l.b16 %v323
  %v1663 = vunpack.c.l.b16 %v324
  %v1664 = vunpack.c.l.b16 %v325
  %v1665 = vunpack.c.l.b16 %v326
  %v1666 = vunpack.c.l.b16 %v327
  %v1667 = vunpack.c.l.b16 %v328
  %v1668 = vunpack.c.l.b16 %v329
  %v1669 = vunpack.c.l.b16 %v330
  %v1670 = vunpack.c.l.b16 %v331
  %v1671 = vunpack.c.l.b16 %v332
  %v1672 = vunpack.c.l.b16 %v333
  %v1673 = vunpack.c.l.b16 %v334
  %v1674 = vunpack.c.l.b16 %v335
  %v1675 = vunpack.c.l.b16 %v336
  %v1676 = vunpack.c.l.b16 %v337
  %v1677 = vunpack.c.l.b16 %v338
  %v1678 = vunpack.c.l.b16 %v339
  %v1679 = vunpack.c.l.b16 %v340
  %v1680 = vunpack.c.l.b16 %v341
  %v1681 = vunpack.c.l.b16 %v342
  %v1682 = vunpack.c.l.b16 %v343
  %v1683 = vunpack.c.l.b16 %v344
  %v1684 = vunpack.c.l.b16 %v345
  %v1685 = vunpack.c.l.b16 %v346
  %v1686 = vunpack.c.l.b16 %v347
  %v1687 = vunpack.c.l.b16 %v348
  %v1688 = vunpack.c.l.b16 %v349
  %v1689 = vunpack.c.l.b16 %v350
  %v1690 = vunpack.c.l.b16 %v351
  %v1691 = vunpack.c.l.b16 %v352
  %v1692 = vunpack.c.l.b16 %v353
  %v1693 = vunpack.c.l.b16 %v354
  %v1694 = vunpack.c.l.b16 %v355
  %v1695 = vunpack.c.l.b16 %v356
  %v1696 = vunpack.c.l.b16 %v357
  %v1697 = vunpack.c.l.b16 %v358
  %v1698 = vunpack.c.l.b16 %v359
  %v1699 = vunpack.c.l.b16 %v360
  %v1700 = vunpack.c.l.b16 %v361
  %v1701 = vunpack.c.l.b16 %v362
  %v1702 = vunpack.c.l.b16 %v363
  %v1703 = vunpack.c.l.b16 %v364
  %v1704 = vunpack.c.l.b16 %v365
  %v1705 = vunpack.c.l.b16 %v366
  %v1706 = vunpack.c.l.b16 %v367
  %v1707 = vunpack.c.l.b16 %v368
  %v1708 = vunpack.c.l.b16 %v369
  %v1709 = vunpack.c.l.b16 %v370
  %v1710 = vunpack.c.l.b16 %v371
  %v1711 = vunpack.c.l.b16 %v372
  %v1712 = vunpack.c.l.b16 %v373
  %v1713 = vunpack.c.l.b16 %v374
  %v1714 = vunpack.c.l.b16 %v375
  %v1715 = vunpack.c.l.b16 %v376
  %v1716 = vunpack.c.l.b16 %v377
  %v1717 = vunpack.c.l.b16 %v378
  %v1718 = vunpack.c.l.b16 %v379
  %v1719 = vunpack.c.l.b16 %v380
  %v1720 = vunpack.c.l.b16 %v381
  %v1721 = vunpack.c.l.b16 %v382
  %v1722 = vunpack.c.l.b16 %v383
  %v1723 = vunpack.c.l.b16 %v384
  %v1724 = vunpack.c.l.b16 %v385
  %v1725 = vunpack.c.l.b16 %v386
  %v1726 = vunpack.c.l.b16 %v387
  %v1727 = vunpack.c.l.b16 %v388
  %v1728 = vunpack.c.l.b16 %v389
  %v1729 = vunpack.c.l.b16 %v390
  %v1730 = vunpack.c.l.b16 %v391
  %v1731 = vunpack.c.l.b16 %v392
  %v1732 = vunpack.c.l.b16 %v393
  %v1733 = vunpack.c.l.b16 %v394
  %v1734 = vunpack.c.l.b16 %v395
  %v1735 = vunpack.c.l.b16 %v396
  %v1736 = vunpack.c.l.b16 %v397
  %v1737 = vunpack.c.l.b16 %v398
  %v1738 = vunpack.c.l.b16 %v399
  %v1739 = vunpack.c.l.b16 %v400
  %v1740 = vunpack.c.l.b16 %v401
  %v1741 = vunpack.c.l.b16 %v402
  %v1742 = vunpack.c.l.b16 %v403
  %v1743 = vunpack.c.l.b16 %v404
  %v1744 = vunpack.c.l.b16 %v405
  %v1745 = vunpack.c.l.b16 %v406
  %v1746 = vunpack.c.l.b16 %v407
  %v1747 = vunpack.c.l.b16 %v408
  %v1748 = vunpack.c.l.b16 %v409
  %v1749 = vunpack.c.l.b16 %v410
  %v1750 = vunpack.c.l.b16 %v411
  %v1751 = vunpack.c.l.b16 %v412
  %v1752 = vunpack.c.l.b16 %v413
  %v1753 = vunpack.c.l.b16 %v414
  %v1754 = vunpack.c.l.b16 %v415
  %v1755 = vunpack.c.l.b16 %v416
  %v1756 = vunpack.c.l.b16 %v417
  %v1757 = vunpack.c.l.b16 %v418
  %v1758 = vunpack.c.l.b16 %v419
  %v1759 = vunpack.c.l.b16 %v420
  %v1760 = vunpack.c.l.b16 %v421
  %v1761 = vunpack.c.l.b16 %v422
  %v1762 = vunpack.c.l.b16 %v423
  %v1763 = vunpack.c.l.b16 %v424
  %v1764 = vunpack.c.l.b16 %v425
  %v1765 = vunpack.c.l.b16 %v426
  %v1766 = vunpack.c.l.b16 %v427
  %v1767 = vunpack.c.l.b16 %v428
  %v1768 = vunpack.c.l.b16 %v429
  %v1769 = vunpack.c.l.b16 %v430
  %v1770 = vunpack.c.l.b16 %v431
  %v1771 = vunpack.c.l.b16 %v432
  %v1772 = vunpack.c.l.b16 %v433
  %v1773 = vunpack.c.l.b16 %v434
  %v1774 = vunpack.c.l.b16 %v435
  %v1775 = vunpack.c.l.b16 %v436
  %v1776 = vunpack.c.l.b16 %v437
  %v1777 = vunpack.c.l.b16 %v438
  %v1778 = vunpack.c.l.b16 %v439
  %v1779 = vunpack.c.l.b16 %v440
  %v1780 = vunpack.c.l.b16 %v441
  %v1781 = vunpack.c.l.b16 %v442
  %v1782 = vunpack.c.l.b16 %v443
  %v1783 = vunpack.c.l.b16 %v444
  %v1784 = vunpack.c.l.b16 %v445
  %v1785 = vunpack.c.l.b16 %v446
  %v1786 = vunpack.c.l.b16 %v447
  %v1787 = vunpack.c.l.b16 %v448
  %v1788 = vunpack.c.l.b16 %v449
  %v1789 = vunpack.c.l.b16 %v450
  %v1790 = vunpack.c.l.b16 %v451
  %v1791 = vunpack.c.l.b16 %v452
  %v1792 = vunpack.c.l.b16 %v453
  %v1793 = vunpack.c.l.b16 %v454
  %v1794 = vunpack.c.l.b16 %v455
  %v1795 = vunpack.c.l.b16 %v456
  %v1796 = vunpack.c.l.b16 %v457
  %v1797 = vunpack.c.l.b16 %v458
  %v1798 = vunpack.c.l.b16 %v459
  %v1799 = vunpack.c.l.b16 %v460
  %v1800 = vunpack.c.l.b16 %v461
  %v1801 = vunpack.c.l.b16 %v462
  %v1802 = vunpack.c.l.b16 %v463
  %v1803 = vunpack.c.l.b16 %v464
  %v1804 = vunpack.c.l.b16 %v465
  %v1805 = vunpack.c.l.b16 %v466
  %v1806 = vunpack.c.l.b16 %v467
  %v1807 = vunpack.c.l.b16 %v468
  %v1808 = vunpack.c.l.b16 %v469
  %v1809 = vunpack.c.l.b16 %v470
  %v1810 = vunpack.c.l.b16 %v471
  %v1811 = vunpack.c.l.b16 %v472
  %v1812 = vunpack.c.l.b16 %v473
  %v1813 = vunpack.c.l.b16 %v474
  %v1814 = vunpack.c.l.b16 %v475
  %v1815 = vunpack.c.l.b16 %v476
  %v1816 = vunpack.c.l.b16 %v477
  %v1817 = vunpack.c.l.b16 %v478
  %v1818 = vunpack.c.l.b16 %v479
  %v1819 = vunpack.c.l.b16 %v480
  %v1820 = vunpack.c.l.b16 %v481
  %v1821 = vunpack.c.l.b16 %v482
  %v1822 = vunpack.c.l.b16 %v483
  %v1823 = vunpack.c.l.b16 %v484
  %v1824 = vunpack.c.l.b16 %v485
  %v1825 = vunpack.c.l.b16 %v486
  %v1826 = vunpack.c.l.b16 %v487
  %v1827 = vunpack.c.l.b16 %v488
  %v1828 = vunpack.c.l.b16 %v489
  %v1829 = vunpack.c.l.b16 %v490
  %v1830 = vunpack.c.l.b16 %v491
  %v1831 = vunpack.c.l.b16 %v492
  %v1832 = vunpack.c.l.b16 %v493
  %v1833 = vunpack.c.l.b16 %v494
  %v1834 = vunpack.c.l.b16 %v495
  %v1835 = vunpack.c.l.b16 %v496
  %v1836 = vunpack.c.l.b16 %v497
  %v1837 = vunpack.c.l.b16 %v498
  %v1838 = vunpack.c.l.b16 %v499
  %v1839 = vunpack.c.l.b16 %v500
  %v1840 = vunpack.c.l.b16 %v501
  %v1841 = vunpack.c.l.b16 %v502
  %v1842 = vunpack.c.l.b16 %v503
  %v1843 = vunpack.c.l.b16 %v504
  %v1844 = vunpack.c.l.b16 %v505
  %v1845 = vunpack.c.l.b16 %v506
  %v1846 = vunpack.c.l.b16 %v507
  %v1847 = vunpack.c.l.b16 %v508
  %v1848 = vunpack.c.l.b16 %v509
  %v1849 = vunpack.c.l.b16 %v510
  %v1850 = vunpack.c.l.b16 %v511
  %v1851 = vunpack.c.l.b16 %v512
  %v1852 = vunpack.c.l.b16 %v513
  %v1853 = vunpack.c.l.b16 %v514
  %v1854 = vunpack.c.l.b16 %v515
  %v1855 = vunpack.c.l.b16 %v516
  %v1856 = vunpack.c.l.b16 %v517
  %v1857 = vunpack.c.l.b16 %v518
  %v1858 = vunpack.c.l.b16 %v519
  %v1859 = vunpack.c.l.b16 %v520
  %v1860 = vunpack.c.l.b16 %v521
  %v1861 = vunpack.c.l.b16 %v522
  %v1862 = vunpack.c.l.b16 %v523
  %v1863 = vunpack.c.l.b16 %v524
  %v1864 = vunpack.c.l.b16 %v525
  %v1865 = vunpack.c.l.b16 %v526
  %v1866 = vunpack.c.l.b16 %v527
  %v1867 = vunpack.c.l.b16 %v528
  %v1868 = vunpack.c.l.b16 %v529
  %v1869 = vunpack.c.l.b16 %v530
  %v1870 = vunpack.c.l.b16 %v531
  %v1871 = vunpack.c.l.b16 %v532
  %v1872 = vunpack.c.l.b16 %v533
  %v1873 = vunpack.c.l.b16 %v534
  %v1874 = vunpack.c.l.b16 %v535
  %v1875 = vunpack.c.l.b16 %v536
  %v1876 = vunpack.c.l.b16 %v537
  %v1877 = vunpack.c.l.b16 %v538
  %v1878 = vunpack.c.l.b16 %v539
  %v1879 = vunpack.c.l.b16 %v540
  %v1880 = vunpack.c.l.b16 %v541
  %v1881 = vunpack.c.l.b16 %v542
  %v1882 = vunpack.c.l.b16 %v543
  %v1883 = vunpack.c.l.b16 %v544
  %v1884 = vunpack.c.l.b16 %v545
  %v1885 = vunpack.c.l.b16 %v546
  %v1886 = vunpack.c.l.b16 %v547
  %v1887 = vunpack.c.l.b16 %v548
  %v1888 = vunpack.c.l.b16 %v549
  %v1889 = vunpack.c.l.b16 %v550
  %v1890 = vunpack.c.l.b16 %v551
  %v1891 = vunpack.c.l.b16 %v552
  %v1892 = vunpack.c.l.b16 %v553
  %v1893 = vunpack.c.l.b16 %v554
  %v1894 = vunpack.c.l.b16 %v555
  %v1895 = vunpack.c.l.b16 %v556
  %v1896 = vunpack.c.l.b16 %v557
  %v1897 = vunpack.c.l.b16 %v558
  %v1898 = vunpack.c.l.b16 %v559
  %v1899 = vunpack.c.l.b16 %v560
  %v1900 = vunpack.c.l.b16 %v561
  %v1901 = vunpack.c.l.b16 %v562
  %v1902 = vunpack.c.l.b16 %v563
  %v1903 = vunpack.c.l.b16 %v564
  %v1904 = vunpack.c.l.b16 %v565
  %v1905 = vunpack.c.l.b16 %v566
  %v1906 = vunpack.c.l.b16 %v567
  %v1907 = vunpack.c.l.b16 %v568
  %v1908 = vunpack.c.l.b16 %v569
  %v1909 = vunpack.c.l.b16 %v570
  %v1910 = vunpack.c.l.b16 %v571
  %v1911 = vunpack.c.l.b16 %v572
  %v1912 = vunpack.c.l.b16 %v573
  %v1913 = vunpack.c.l.b16 %v574
  %v1914 = vunpack.c.l.b16 %v575
  %v1915 = vunpack.c.l.b16 %v576
  %v1916 = vunpack.c.l.b16 %v577
  %v1917 = vunpack.c.l.b16 %v578
  %v1918 = vunpack.c.l.b16 %v579
  %v1919 = vunpack.c.l.b16 %v580
  %v1920 = vunpack.c.l.b16 %v581
  %v1921 = vunpack.c.l.b16 %v582
  %v1922 = vunpack.c.l.b16 %v583
  %v1923 = vunpack.c.l.b16 %v584
  %v1924 = vunpack.c.l.b16 %v585
  %v1925 = vunpack.c.l.b16 %v586
  %v1926 = vunpack.c.l.b16 %v587
  %v1927 = vunpack.c.l.b16 %v588
  %v1928 = vunpack.c.l.b16 %v589
  %v1929 = vunpack.c.l.b16 %v590
  %v1930 = vunpack.c.l.b16 %v591
  %v1931 = vunpack.c.l.b16 %v592
  %v1932 = vunpack.c.l.b16 %v593
  %v1933 = vunpack.c.l.b16 %v594
  %v1934 = vunpack.c.l.b16 %v595
  %v1935 = vunpack.c.l.b16 %v596
  %v1936 = vunpack.c.l.b16 %v597
  %v1937 = vunpack.c.l.b16 %v598
  %v1938 = vunpack.c.l.b16 %v599
  %v1939 = vunpack.c.l.b16 %v600
  %v1940 = vunpack.c.l.b16 %v601
  %v1941 = vunpack.c.l.b16 %v602
  %v1942 = vunpack.c.l.b16 %v603
  %v1943 = vunpack.c.l.b16 %v604
  %v1944 = vunpack.c.l.b16 %v605
  %v1945 = vunpack.c.l.b16 %v606
  %v1946 = vunpack.c.l.b16 %v607
  %v1947 = vunpack.c.l.b16 %v608
  %v1948 = vunpack.c.l.b16 %v609
  %v1949 = vunpack.c.l.b16 %v610
  %v1950 = vunpack.c.l.b16 %v611
  %v1951 = vunpack.c.l.b16 %v612
  %v1952 = vunpack.c.l.b16 %v613
  %v1953 = vunpack.c.l.b16 %v614
  %v1954 = vunpack.c.l.b16 %v615
  %v1955 = vunpack.c.l.b16 %v616
  %v1956 = vunpack.c.l.b16 %v617
  %v1957 = vunpack.c.l.b16 %v618
  %v1958 = vunpack.c.l.b16 %v619
  %v1959 = vunpack.c.l.b16 %v620
  %v1960 = vunpack.c.l.b16 %v621
  %v1961 = vunpack.c.l.b16 %v622
  %v1962 = vunpack.c.l.b16 %v623
  %v1963 = vunpack.c.l.b16 %v624
  %v1964 = vunpack.c.l.b16 %v625
  %v1965 = vunpack.c.l.b16 %v626
  %v1966 = vunpack.c.l.b16 %v627
  %v1967 = vunpack.c.l.b16 %v628
  %v1968 = vunpack.c.l.b16 %v629
  %v1969 = vunpack.c.l.b16 %v630
  %v1970 = vunpack.c.l.b16 %v631
  %v1971 = vunpack.c.l.b16 %v632
  %v1972 = vpack.c.b16 %v1397, %v1396
  %v1973 = vpack.c.b16 %v1399, %v1398
  %v1974 = vpack.c.b16 %v1401, %v1400
  %v1975 = vpack.c.b16 %v1403, %v1402
  %v1976 = vpack.c.b16 %v1405, %v1404
  %v1977 = vpack.c.b16 %v1407, %v1406
  %v1978 = vpack.c.b16 %v1409, %v1408
  %v1979 = vpack.c.b16 %v1411, %v1410
  %v1980 = vpack.c.b16 %v1413, %v1412
  %v1981 = vpack.c.b16 %v1415, %v1414
  %v1982 = vpack.c.b16 %v1417, %v1416
  %v1983 = vpack.c.b16 %v1419, %v1418
  %v1984 = vpack.c.b16 %v1421, %v1420
  %v1985 = vpack.c.b16 %v1423, %v1422
  %v1986 = vpack.c.b16 %v1425, %v1424
  %v1987 = vpack.c.b16 %v1427, %v1426
  %v1988 = vpack.c.b16 %v1429, %v1428
  %v1989 = vpack.c.b16 %v1431, %v1430
  %v1990 = vpack.c.b16 %v1433, %v1432
  %v1991 = vpack.c.b16 %v1435, %v1434
  %v1992 = vpack.c.b16 %v1437, %v1436
  %v1993 = vpack.c.b16 %v1439, %v1438
  %v1994 = vpack.c.b16 %v1441, %v1440
  %v1995 = vpack.c.b16 %v1443, %v1442
  %v1996 = vpack.c.b16 %v1445, %v1444
  %v1997 = vpack.c.b16 %v1447, %v1446
  %v1998 = vpack.c.b16 %v1449, %v1448
  %v1999 = vpack.c.b16 %v1451, %v1450
  %v2000 = vpack.c.b16 %v1453, %v1452
  %v2001 = vpack.c.b16 %v1455, %v1454
  %v2002 = vpack.c.b16 %v1457, %v1456
  %v2003 = vpack.c.b16 %v1459, %v1458
  %v2004 = vpack.c.b16 %v1461, %v1460
  %v2005 = vpack.c.b16 %v1463, %v1462
  %v2006 = vpack.c.b16 %v1465, %v1464
  %v2007 = vpack.c.b16 %v1467, %v1466
  %v2008 = vpack.c.b16 %v1469, %v1468
  %v2009 = vpack.c.b16 %v1471, %v1470
  %v2010 = vpack.c.b16 %v1473, %v1472
  %v2011 = vpack.c.b16 %v1475, %v1474
  %v2012 = vpack.c.b16 %v1477, %v1476
  %v2013 = vpack.c.b16 %v1479, %v1478
  %v2014 = vpack.c.b16 %v1481, %v1480
  %v2015 = vpack.c.b16 %v1483, %v1482
  %v2016 = vpack.c.b16 %v1485, %v1484
  %v2017 = vpack.c.b16 %v1487, %v1486
  %v2018 = vpack.c.b16 %v1489, %v1488
  %v2019 = vpack.c.b16 %v1491, %v1490
  %v2020 = vpack.c.b16 %v1493, %v1492
  %v2021 = vpack.c.b16 %v1495, %v1494
  %v2022 = vpack.c.b16 %v1497, %v1496
  %v2023 = vpack.c.b16 %v1499, %v1498
  %v2024 = vpack.c.b16 %v1501, %v1500
  %v2025 = vpack.c.b16 %v1503, %v1502
  %v2026 = vpack.c.b16 %v1505, %v1504
  %v2027 = vpack.c.b16 %v1507, %v1506
  %v2028 = vpack.c.b16 %v1509, %v1508
  %v2029 = vpack.c.b16 %v1511, %v1510
  %v2030 = vpack.c.b16 %v1513, %v1512
  %v2031 = vpack.c.b16 %v1515, %v1514
  %v2032 = vpack.c.b16 %v1517, %v1516
  %v2033 = vpack.c.b16 %v1519, %v1518
  %v2034 = vpack.c.b16 %v1521, %v1520
  %v2035 = vpack.c.b16 %v1523, %v1522
  %v2036 = vpack.c.b16 %v1525, %v1524
  %v2037 = vpack.c.b16 %v1527, %v1526
  %v2038 = vpack.c.b16 %v1529, %v1528
  %v2039 = vpack.c.b16 %v1531, %v1530
  %v2040 = vpack.c.b16 %v1533, %v1532
  %v2041 = vpack.c.b16 %v1535, %v1534
  %v2042 = vpack.c.b16 %v1537, %v1536
  %v2043 = vpack.c.b16 %v1539, %v1538
  %v2044 = vpack.c.b16 %v1541, %v1540
  %v2045 = vpack.c.b16 %v1543, %v1542
  %v2046 = vpack.c.b16 %v1545, %v1544
  %v2047 = vpack.c.b16 %v1547, %v1546
  %v2048 = vpack.c.b16 %v1549, %v1548
  %v2049 = vpack.c.b16 %v1551, %v1550
  %v2050 = vpack.c.b16 %v1553, %v1552
  %v2051 = vpack.c.b16 %v1555, %v1554
  %v2052 = vpack.c.b16 %v1557, %v1556
  %v2053 = vpack.c.b16 %v1559, %v1558
  %v2054 = vpack.c.b16 %v1561, %v1560
  %v2055 = vpack.c.b16 %v1563, %v1562
  %v2056 = vpack.c.b16 %v1565, %v1564
  %v2057 = vpack.c.b16 %v1567, %v1566
  %v2058 = vpack.c.b16 %v1569, %v1568
  %v2059 = vpack.c.b16 %v1571, %v1570
  %v2060 = vpack.c.b16 %v1573, %v1572
  %v2061 = vpack.c.b16 %v1575, %v1574
  %v2062 = vpack.c.b16 %v1577, %v1576
  %v2063 = vpack.c.b16 %v1579, %v1578
  %v2064 = vpack.c.b16 %v1581, %v1580
  %v2065 = vpack.c.b16 %v1583, %v1582
  %v2066 = vpack.c.b16 %v1585, %v1584
  %v2067 = vpack.c.b16 %v1587, %v1586
  %v2068 = vpack.c.b16 %v1589, %v1588
  %v2069 = vpack.c.b16 %v1591, %v1590
  %v2070 = vpack.c.b16 %v1593, %v1592
  %v2071 = vpack.c.b16 %v1595, %v1594
  %v2072 = vpack.c.b16 %v1597, %v1596
  %v2073 = vpack.c.b16 %v1599, %v1598
  %v2074 = vpack.c.b16 %v1601, %v1600
  %v2075 = vpack.c.b16 %v1603, %v1602
  %v2076 = vpack.c.b16 %v1605, %v1604
  %v2077 = vpack.c.b16 %v1607, %v1606
  %v2078 = vpack.c.b16 %v1609, %v1608
  %v2079 = vpack.c.b16 %v1611, %v1610
  %v2080 = vpack.c.b16 %v1613, %v1612
  %v2081 = vpack.c.b16 %v1615, %v1614
  %v2082 = vpack.c.b16 %v1617, %v1616
  %v2083 = vpack.c.b16 %v1619, %v1618
  %v2084 = vpack.c.b16 %v1621, %v1620
  %v2085 = vpack.c.b16 %v1623, %v1622
  %v2086 = vpack.c.b16 %v1625, %v1624
  %v2087 = vpack.c.b16 %v1627, %v1626
  %v2088 = vpack.c.b16 %v1629, %v1628
  %v2089 = vpack.c.b16 %v1631, %v1630
  %v2090 = vpack.c.b16 %v1633, %v1632
  %v2091 = vpack.c.b16 %v1635, %v1634
  %v2092 = vpack.c.b16 %v1637, %v1636
  %v2093 = vpack.c.b16 %v1639, %v1638
  %v2094 = vpack.c.b16 %v1641, %v1640
  %v2095 = vpack.c.b16 %v1643, %v1642
  %v2096 = vpack.c.b16 %v1645, %v1644
  %v2097 = vpack.c.b16 %v1647, %v1646
  %v2098 = vpack.c.b16 %v1649, %v1648
  %v2099 = vpack.c.b16 %v1651, %v1650
  %v2100 = vpack.c.b16 %v1653, %v1652
  %v2101 = vpack.c.b16 %v1655, %v1654
  %v2102 = vpack.c.b16 %v1657, %v1656
  %v2103 = vpack.c.b16 %v1659, %v1658
  %v2104 = vpack.c.b16 %v1661, %v1660
  %v2105 = vpack.c.b16 %v1663, %v1662
  %v2106 = vpack.c.b16 %v1665, %v1664
  %v2107 = vpack.c.b16 %v1667, %v1666
  %v2108 = vpack.c.b16 %v1669, %v1668
  %v2109 = vpack.c.b16 %v1671, %v1670
  %v2110 = vpack.c.b16 %v1673, %v1672
  %v2111 = vpack.c.b16 %v1675, %v1674
  %v2112 = vpack.c.b16 %v1677, %v1676
  %v2113 = vpack.c.b16 %v1679, %v1678
  %v2114 = vpack.c.b16 %v1681, %v1680
  %v2115 = vpack.c.b16 %v1683, %v1682
  %v2116 = vpack.c.b16 %v1685, %v1684
  %v2117 = vpack.c.b16 %v1687, %v1686
  %v2118 = vpack.c.b16 %v1689, %v1688
  %v2119 = vpack.c.b16 %v1691, %v1690
  %v2120 = vpack.c.b16 %v1693, %v1692
  %v2121 = vpack.c.b16 %v1695, %v1694
  %v2122 = vpack.c.b16 %v1697, %v1696
  %v2123 = vpack.c.b16 %v1699, %v1698
  %v2124 = vpack.c.b16 %v1701, %v1700
  %v2125 = vpack.c.b16 %v1703, %v1702
  %v2126 = vpack.c.b16 %v1705, %v1704
  %v2127 = vpack.c.b16 %v1707, %v1706
  %v2128 = vpack.c.b16 %v1709, %v1708
  %v2129 = vpack.c.b16 %v1711, %v1710
  %v2130 = vpack.c.b16 %v1713, %v1712
  %v2131 = vpack.c.b16 %v1715, %v1714
  %v2132 = vpack.c.b16 %v1717, %v1716
  %v2133 = vpack.c.b16 %v1719, %v1718
  %v2134 = vpack.c.b16 %v1721, %v1720
  %v2135 = vpack.c.b16 %v1723, %v1722
  %v2136 = vpack.c.b16 %v1725, %v1724
  %v2137 = vpack.c.b16 %v1727, %v1726
  %v2138 = vpack.c.b16 %v1729, %v1728
  %v2139 = vpack.c.b16 %v1731, %v1730
  %v2140 = vpack.c.b16 %v1733, %v1732
  %v2141 = vpack.c.b16 %v1735, %v1734
  %v2142 = vpack.c.b16 %v1737, %v1736
  %v2143 = vpack.c.b16 %v1739, %v1738
  %v2144 = vpack.c.b16 %v1741, %v1740
  %v2145 = vpack.c.b16 %v1743, %v1742
  %v2146 = vpack.c.b16 %v1745, %v1744
  %v2147 = vpack.c.b16 %v1747, %v1746
  %v2148 = vpack.c.b16 %v1749, %v1748
  %v2149 = vpack.c.b16 %v1751, %v1750
  %v2150 = vpack.c.b16 %v1753, %v1752
  %v2151 = vpack.c.b16 %v1755, %v1754
  %v2152 = vpack.c.b16 %v1757, %v1756
  %v2153 = vpack.c.b16 %v1759, %v1758
  %v2154 = vpack.c.b16 %v1761, %v1760
  %v2155 = vpack.c.b16 %v1763, %v1762
  %v2156 = vpack.c.b16 %v1765, %v1764
  %v2157 = vpack.c.b16 %v1767, %v1766
  %v2158 = vpack.c.b16 %v1769, %v1768
  %v2159 = vpack.c.b16 %v1771, %v1770
  %v2160 = vpack.c.b16 %v1773, %v1772
  %v2161 = vpack.c.b16 %v1775, %v1774
  %v2162 = vpack.c.b16 %v1777, %v1776
  %v2163 = vpack.c.b16 %v1779, %v1778
  %v2164 = vpack.c.b16 %v1781, %v1780
  %v2165 = vpack.c.b16 %v1783, %v1782
  %v2166 = vpack.c.b16 %v1785, %v1784
  %v2167 = vpack.c.b16 %v1787, %v1786
  %v2168 = vpack.c.b16 %v1789, %v1788
  %v2169 = vpack.c.b16 %v1791, %v1790
  %v2170 = vpack.c.b16 %v1793, %v1792
  %v2171 = vpack.c.b16 %v1795, %v1794
  %v2172 = vpack.c.b16 %v1797, %v1796
  %v2173 = vpack.c.b16 %v1799, %v1798
  %v2174 = vpack.c.b16 %v1801, %v1800
  %v2175 = vpack.c.b16 %v1803, %v1802
  %v2176 = vpack.c.b16 %v1805, %v1804
  %v2177 = vpack.c.b16 %v1807, %v1806
  %v2178 = vpack.c.b16 %v1809, %v1808
  %v2179 = vpack.c.b16 %v1811, %v1810
  %v2180 = vpack.c.b16 %v1813, %v1812
  %v2181 = vpack.c.b16 %v1815, %v1814
  %v2182 = vpack.c.b16 %v1817, %v1816
  %v2183 = vpack.c.b16 %v1819, %v1818
  %v2184 = vpack.c.b16 %v1821, %v1820
  %v2185 = vpack.c.b16 %v1823, %v1822
  %v2186 = vpack.c.b16 %v1825, %v1824
  %v2187 = vpack.c.b16 %v1827, %v1826
  %v2188 = vpack.c.b16 %v1829, %v1828
  %v2189 = vpack.c.b16 %v1831, %v1830
  %v2190 = vpack.c.b16 %v1833, %v1832
  %v2191 = vpack.c.b16 %v1835, %v1834
  %v2192 = vpack.c.b16 %v1837, %v1836
  %v2193 = vpack.c.b16 %v1839, %v1838
  %v2194 = vpack.c.b16 %v1841, %v1840
  %v2195 = vpack.c.b16 %v1843, %v1842
  %v2196 = vpack.c.b16 %v1845, %v1844
  %v2197 = vpack.c.b16 %v1847, %v1846
  %v2198 = vpack.c.b16 %v1849, %v1848
  %v2199 = vpack.c.b16 %v1851, %v1850
  %v2200 = vpack.c.b16 %v1853, %v1852
  %v2201 = vpack.c.b16 %v1855, %v1854
  %v2202 = vpack.c.b16 %v1857, %v1856
  %v2203 = vpack.c.b16 %v1859, %v1858
  %v2204 = vpack.c.b16 %v1861, %v1860
  %v2205 = vpack.c.b16 %v1863, %v1862
  %v2206 = vpack.c.b16 %v1865, %v1864
  %v2207 = vpack.c.b16 %v1867, %v1866
  %v2208 = vpack.c.b16 %v1869, %v1868
  %v2209 = vpack.c.b16 %v1871, %v1870
  %v2210 = vpack.c.b16 %v1873, %v1872
  %v2211 = vpack.c.b16 %v1875, %v1874
  %v2212 = vpack.c.b16 %v1877, %v1876
  %v2213 = vpack.c.b16 %v1879, %v1878
  %v2214 = vpack.c.b16 %v1881, %v1880
  %v2215 = vpack.c.b16 %v1883, %v1882
  %v2216 = vpack.c.b16 %v1885, %v1884
  %v2217 = vpack.c.b16 %v1887, %v1886
  %v2218 = vpack.c.b16 %v1889, %v1888
  %v2219 = vpack.c.b16 %v1891, %v1890
  %v2220 = vpack.c.b16 %v1893, %v1892
  %v2221 = vpack.c.b16 %v1895, %v1894
  %v2222 = vpack.c.b16 %v1897, %v1896
  %v2223 = vpack.c.b16 %v1899, %v1898
  %v2224 = vpack.c.b16 %v1901, %v1900
  %v2225 = vpack.c.b16 %v1903, %v1902
  %v2226 = vpack.c.b16 %v1905, %v1904
  %v2227 = vpack.c.b16 %v1907, %v1906
  %v2228 = vpack.c.b16 %v1909, %v1908
  %v2229 = vpack.c.b16 %v1911, %v1910
  %v2230 = vpack.c.b16 %v1913, %v1912
  %v2231 = vpack.c.b16 %v1915, %v1914
  %v2232 = vpack.c.b16 %v1917, %v1916
  %v2233 = vpack.c.b16 %v1919, %v1918
  %v2234 = vpack.c.b16 %v1921, %v1920
  %v2235 = vpack.c.b16 %v1923, %v1922
  %v2236 = vpack.c.b16 %v1925, %v1924
  %v2237 = vpack.c.b16 %v1927, %v1926
  %v2238 = vpack.c.b16 %v1929, %v1928
  %v2239 = vpack.c.b16 %v1931, %v1930
  %v2240 = vpack.c.b16 %v1933, %v1932
  %v2241 = vpack.c.b16 %v1935, %v1934
  %v2242 = vpack.c.b16 %v1937, %v1936
  %v2243 = vpack.c.b16 %v1939, %v1938
  %v2244 = vpack.c.b16 %v1941, %v1940
  %v2245 = vpack.c.b16 %v1943, %v1942
  %v2246 = vpack.c.b16 %v1945, %v1944
  %v2247 = vpack.c.b16 %v1947, %v1946
  %v2248 = vpack.c.b16 %v1949, %v1948
  %v2249 = vpack.c.b16 %v1951, %v1950
  %v2250 = vpack.c.b16 %v1953, %v1952
  %v2251 = vpack.c.b16 %v1955, %v1954
  %v2252 = vpack.c.b16 %v1957, %v1956
  %v2253 = vpack.c.b16 %v1959, %v1958
  %v2254 = vpack.c.b16 %v1961, %v1960
  %v2255 = vpack.c.b16 %v1963, %v1962
  %v2256 = vpack.c.b16 %v1965, %v1964
  %v2257 = vpack.c.b16 %v1967, %v1966
  %v2258 = vpack.c.b16 %v1969, %v1968
  %v2259 = vpack.c.b16 %v1971, %v1970
  %2548 = vmatprep.subr.bf16.mxu0 0
  %2549 = vmatpush1.bf16.msra.mxu0 %v1972
  %2550 = vmatprep.subr.bf16.mxu0 0
  %2551 = vmatpush1.bf16.msra.mxu0 %v1973
  %2552 = vmatprep.subr.bf16.mxu0 0
  %2553 = vmatpush1.bf16.msra.mxu0 %v1974
  %2554 = vmatprep.subr.bf16.mxu0 0
  %2555 = vmatpush1.bf16.msra.mxu0 %v1975
  %2556 = vmatprep.subr.bf16.mxu0 0
  %2557 = vmatpush1.bf16.msra.mxu0 %v1976
  %2558 = vmatprep.subr.bf16.mxu0 0
  %2559 = vmatpush1.bf16.msra.mxu0 %v1977
  %2560 = vmatprep.subr.bf16.mxu0 0
  %2561 = vmatpush1.bf16.msra.mxu0 %v1978
  %2562 = vmatprep.subr.bf16.mxu0 0
  %2563 = vmatpush1.bf16.msra.mxu0 %v1979
  %2564 = vmatprep.subr.bf16.mxu0 0
  %2565 = vmatpush1.bf16.msra.mxu0 %v1980
  %2566 = vmatprep.subr.bf16.mxu0 0
  %2567 = vmatpush1.bf16.msra.mxu0 %v1981
  %2568 = vmatprep.subr.bf16.mxu0 0
  %2569 = vmatpush1.bf16.msra.mxu0 %v1982
  %2570 = vmatprep.subr.bf16.mxu0 0
  %2571 = vmatpush1.bf16.msra.mxu0 %v1983
  %2572 = vmatprep.subr.bf16.mxu0 0
  %2573 = vmatpush1.bf16.msra.mxu0 %v1984
  %2574 = vmatprep.subr.bf16.mxu0 0
  %2575 = vmatpush1.bf16.msra.mxu0 %v1985
  %2576 = vmatprep.subr.bf16.mxu0 0
  %2577 = vmatpush1.bf16.msra.mxu0 %v1986
  %2578 = vmatprep.subr.bf16.mxu0 0
  %2579 = vmatpush1.bf16.msra.mxu0 %v1987
  %2580 = vmatprep.mubr.bf16.mxu0 %v749
  %2581 = vmatmul.mubr.bf16.gmra.mrb[0].mxu0 %v748
  %v2582 = vpop.f32.mrb[0].mxu0
  %v2583 = vadd.f32 %v638, %v2582
  %v2584 = vpop.f32.mrb[0].mxu0
  %v2585 = vpop.f32.mrb[0].mxu0
  %v2586 = vadd.f32 %v638, %v2585
  %v2587 = vpop.f32.mrb[0].mxu0
  %2588 = vdwg.mxu0
  %2589 = vmatprep.subr.bf16.mxu0 0
  %2590 = vmatpush1.bf16.msra.mxu0 %v1988
  %2591 = vmatprep.subr.bf16.mxu0 0
  %2592 = vmatpush1.bf16.msra.mxu0 %v1989
  %2593 = vmatprep.subr.bf16.mxu0 0
  %2594 = vmatpush1.bf16.msra.mxu0 %v1990
  %2595 = vmatprep.subr.bf16.mxu0 0
  %2596 = vmatpush1.bf16.msra.mxu0 %v1991
  %2597 = vmatprep.subr.bf16.mxu0 0
  %2598 = vmatpush1.bf16.msra.mxu0 %v1992
  %2599 = vmatprep.subr.bf16.mxu0 0
  %2600 = vmatpush1.bf16.msra.mxu0 %v1993
  %2601 = vmatprep.subr.bf16.mxu0 0
  %2602 = vmatpush1.bf16.msra.mxu0 %v1994
  %2603 = vmatprep.subr.bf16.mxu0 0
  %2604 = vmatpush1.bf16.msra.mxu0 %v1995
  %2605 = vmatprep.subr.bf16.mxu0 0
  %2606 = vmatpush1.bf16.msra.mxu0 %v1996
  %2607 = vmatprep.subr.bf16.mxu0 0
  %2608 = vmatpush1.bf16.msra.mxu0 %v1997
  %2609 = vmatprep.subr.bf16.mxu0 0
  %2610 = vmatpush1.bf16.msra.mxu0 %v1998
  %2611 = vmatprep.subr.bf16.mxu0 0
  %2612 = vmatpush1.bf16.msra.mxu0 %v1999
  %2613 = vmatprep.subr.bf16.mxu0 0
  %2614 = vmatpush1.bf16.msra.mxu0 %v2000
  %2615 = vmatprep.subr.bf16.mxu0 0
  %2616 = vmatpush1.bf16.msra.mxu0 %v2001
  %2617 = vmatprep.subr.bf16.mxu0 0
  %2618 = vmatpush1.bf16.msra.mxu0 %v2002
  %2619 = vmatprep.subr.bf16.mxu0 0
  %2620 = vmatpush1.bf16.msra.mxu0 %v2003
  %2621 = vmatprep.mubr.bf16.mxu0 %v751
  %2622 = vmatmul.mubr.bf16.gmra.mrb[0].mxu0 %v750
  %v2623 = vpop.f32.mrb[0].mxu0
  %v2624 = vadd.f32 %v2583, %v2623
  %v2625 = vpop.f32.mrb[0].mxu0
  %v2626 = vpop.f32.mrb[0].mxu0
  %v2627 = vadd.f32 %v2586, %v2626
  %v2628 = vpop.f32.mrb[0].mxu0
  %2629 = vdwg.mxu0
  %2630 = vmatprep.subr.bf16.mxu0 0
  %2631 = vmatpush1.bf16.msra.mxu0 %v2004
  %2632 = vmatprep.subr.bf16.mxu0 0
  %2633 = vmatpush1.bf16.msra.mxu0 %v2005
  %2634 = vmatprep.subr.bf16.mxu0 0
  %2635 = vmatpush1.bf16.msra.mxu0 %v2006
  %2636 = vmatprep.subr.bf16.mxu0 0
  %2637 = vmatpush1.bf16.msra.mxu0 %v2007
  %2638 = vmatprep.subr.bf16.mxu0 0
  %2639 = vmatpush1.bf16.msra.mxu0 %v2008
  %2640 = vmatprep.subr.bf16.mxu0 0
  %2641 = vmatpush1.bf16.msra.mxu0 %v2009
  %2642 = vmatprep.subr.bf16.mxu0 0
  %2643 = vmatpush1.bf16.msra.mxu0 %v2010
  %2644 = vmatprep.subr.bf16.mxu0 0
  %2645 = vmatpush1.bf16.msra.mxu0 %v2011
  %2646 = vmatprep.subr.bf16.mxu0 0
  %2647 = vmatpush1.bf16.msra.mxu0 %v2012
  %2648 = vmatprep.subr.bf16.mxu0 0
  %2649 = vmatpush1.bf16.msra.mxu0 %v2013
  %2650 = vmatprep.subr.bf16.mxu0 0
  %2651 = vmatpush1.bf16.msra.mxu0 %v2014
  %2652 = vmatprep.subr.bf16.mxu0 0
  %2653 = vmatpush1.bf16.msra.mxu0 %v2015
  %2654 = vmatprep.subr.bf16.mxu0 0
  %2655 = vmatpush1.bf16.msra.mxu0 %v2016
  %2656 = vmatprep.subr.bf16.mxu0 0
  %2657 = vmatpush1.bf16.msra.mxu0 %v2017
  %2658 = vmatprep.subr.bf16.mxu0 0
  %2659 = vmatpush1.bf16.msra.mxu0 %v2018
  %2660 = vmatprep.subr.bf16.mxu0 0
  %2661 = vmatpush1.bf16.msra.mxu0 %v2019
  %2662 = vmatprep.mubr.bf16.mxu0 %v753
  %2663 = vmatmul.mubr.bf16.gmra.mrb[0].mxu0 %v752
  %v2664 = vpop.f32.mrb[0].mxu0
  %v2665 = vadd.f32 %v2624, %v2664
  %v2666 = vpop.f32.mrb[0].mxu0
  %v2667 = vpop.f32.mrb[0].mxu0
  %v2668 = vadd.f32 %v2627, %v2667
  %v2669 = vpop.f32.mrb[0].mxu0
  %2670 = vdwg.mxu0
  %2671 = vmatprep.subr.bf16.mxu0 0
  %2672 = vmatpush1.bf16.msra.mxu0 %v2020
  %2673 = vmatprep.subr.bf16.mxu0 0
  %2674 = vmatpush1.bf16.msra.mxu0 %v2021
  %2675 = vmatprep.subr.bf16.mxu0 0
  %2676 = vmatpush1.bf16.msra.mxu0 %v2022
  %2677 = vmatprep.subr.bf16.mxu0 0
  %2678 = vmatpush1.bf16.msra.mxu0 %v2023
  %2679 = vmatprep.subr.bf16.mxu0 0
  %2680 = vmatpush1.bf16.msra.mxu0 %v2024
  %2681 = vmatprep.subr.bf16.mxu0 0
  %2682 = vmatpush1.bf16.msra.mxu0 %v2025
  %2683 = vmatprep.subr.bf16.mxu0 0
  %2684 = vmatpush1.bf16.msra.mxu0 %v2026
  %2685 = vmatprep.subr.bf16.mxu0 0
  %2686 = vmatpush1.bf16.msra.mxu0 %v2027
  %2687 = vmatprep.subr.bf16.mxu0 0
  %2688 = vmatpush1.bf16.msra.mxu0 %v2028
  %2689 = vmatprep.subr.bf16.mxu0 0
  %2690 = vmatpush1.bf16.msra.mxu0 %v2029
  %2691 = vmatprep.subr.bf16.mxu0 0
  %2692 = vmatpush1.bf16.msra.mxu0 %v2030
  %2693 = vmatprep.subr.bf16.mxu0 0
  %2694 = vmatpush1.bf16.msra.mxu0 %v2031
  %2695 = vmatprep.subr.bf16.mxu0 0
  %2696 = vmatpush1.bf16.msra.mxu0 %v2032
  %2697 = vmatprep.subr.bf16.mxu0 0
  %2698 = vmatpush1.bf16.msra.mxu0 %v2033
  %2699 = vmatprep.subr.bf16.mxu0 0
  %2700 = vmatpush1.bf16.msra.mxu0 %v2034
  %2701 = vmatprep.subr.bf16.mxu0 0
  %2702 = vmatpush1.bf16.msra.mxu0 %v2035
  %2703 = vmatprep.mubr.bf16.mxu0 %v755
  %2704 = vmatmul.mubr.bf16.gmra.mrb[0].mxu0 %v754
  %v2705 = vpop.f32.mrb[0].mxu0
  %v2706 = vadd.f32 %v2665, %v2705
  %v2707 = vpop.f32.mrb[0].mxu0
  %v2708 = vpop.f32.mrb[0].mxu0
  %v2709 = vadd.f32 %v2668, %v2708
  %v2710 = vpop.f32.mrb[0].mxu0
  %2711 = vdwg.mxu0
  %2712 = vmatprep.subr.bf16.mxu0 0
  %2713 = vmatpush1.bf16.msra.mxu0 %v2036
  %2714 = vmatprep.subr.bf16.mxu0 0
  %2715 = vmatpush1.bf16.msra.mxu0 %v2037
  %2716 = vmatprep.subr.bf16.mxu0 0
  %2717 = vmatpush1.bf16.msra.mxu0 %v2038
  %2718 = vmatprep.subr.bf16.mxu0 0
  %2719 = vmatpush1.bf16.msra.mxu0 %v2039
  %2720 = vmatprep.subr.bf16.mxu0 0
  %2721 = vmatpush1.bf16.msra.mxu0 %v2040
  %2722 = vmatprep.subr.bf16.mxu0 0
  %2723 = vmatpush1.bf16.msra.mxu0 %v2041
  %2724 = vmatprep.subr.bf16.mxu0 0
  %2725 = vmatpush1.bf16.msra.mxu0 %v2042
  %2726 = vmatprep.subr.bf16.mxu0 0
  %2727 = vmatpush1.bf16.msra.mxu0 %v2043
  %2728 = vmatprep.subr.bf16.mxu0 0
  %2729 = vmatpush1.bf16.msra.mxu0 %v2044
  %2730 = vmatprep.subr.bf16.mxu0 0
  %2731 = vmatpush1.bf16.msra.mxu0 %v2045
  %2732 = vmatprep.subr.bf16.mxu0 0
  %2733 = vmatpush1.bf16.msra.mxu0 %v2046
  %2734 = vmatprep.subr.bf16.mxu0 0
  %2735 = vmatpush1.bf16.msra.mxu0 %v2047
  %2736 = vmatprep.subr.bf16.mxu0 0
  %2737 = vmatpush1.bf16.msra.mxu0 %v2048
  %2738 = vmatprep.subr.bf16.mxu0 0
  %2739 = vmatpush1.bf16.msra.mxu0 %v2049
  %2740 = vmatprep.subr.bf16.mxu0 0
  %2741 = vmatpush1.bf16.msra.mxu0 %v2050
  %2742 = vmatprep.subr.bf16.mxu0 0
  %2743 = vmatpush1.bf16.msra.mxu0 %v2051
  %2744 = vmatprep.mubr.bf16.mxu0 %v757
  %2745 = vmatmul.mubr.bf16.gmra.mrb[0].mxu0 %v756
  %v2746 = vpop.f32.mrb[0].mxu0
  %v2747 = vadd.f32 %v2706, %v2746
  %v2748 = vpop.f32.mrb[0].mxu0
  %v2749 = vpop.f32.mrb[0].mxu0
  %v2750 = vadd.f32 %v2709, %v2749
  %v2751 = vpop.f32.mrb[0].mxu0
  %2752 = vdwg.mxu0
  %2753 = vmatprep.subr.bf16.mxu0 0
  %2754 = vmatpush1.bf16.msra.mxu0 %v2052
  %2755 = vmatprep.subr.bf16.mxu0 0
  %2756 = vmatpush1.bf16.msra.mxu0 %v2053
  %2757 = vmatprep.subr.bf16.mxu0 0
  %2758 = vmatpush1.bf16.msra.mxu0 %v2054
  %2759 = vmatprep.subr.bf16.mxu0 0
  %2760 = vmatpush1.bf16.msra.mxu0 %v2055
  %2761 = vmatprep.subr.bf16.mxu0 0
  %2762 = vmatpush1.bf16.msra.mxu0 %v2056
  %2763 = vmatprep.subr.bf16.mxu0 0
  %2764 = vmatpush1.bf16.msra.mxu0 %v2057
  %2765 = vmatprep.subr.bf16.mxu0 0
  %2766 = vmatpush1.bf16.msra.mxu0 %v2058
  %2767 = vmatprep.subr.bf16.mxu0 0
  %2768 = vmatpush1.bf16.msra.mxu0 %v2059
  %2769 = vmatprep.subr.bf16.mxu0 0
  %2770 = vmatpush1.bf16.msra.mxu0 %v2060
  %2771 = vmatprep.subr.bf16.mxu0 0
  %2772 = vmatpush1.bf16.msra.mxu0 %v2061
  %2773 = vmatprep.subr.bf16.mxu0 0
  %2774 = vmatpush1.bf16.msra.mxu0 %v2062
  %2775 = vmatprep.subr.bf16.mxu0 0
  %2776 = vmatpush1.bf16.msra.mxu0 %v2063
  %2777 = vmatprep.subr.bf16.mxu0 0
  %2778 = vmatpush1.bf16.msra.mxu0 %v2064
  %2779 = vmatprep.subr.bf16.mxu0 0
  %2780 = vmatpush1.bf16.msra.mxu0 %v2065
  %2781 = vmatprep.subr.bf16.mxu0 0
  %2782 = vmatpush1.bf16.msra.mxu0 %v2066
  %2783 = vmatprep.subr.bf16.mxu0 0
  %2784 = vmatpush1.bf16.msra.mxu0 %v2067
  %2785 = vmatprep.mubr.bf16.mxu0 %v759
  %2786 = vmatmul.mubr.bf16.gmra.mrb[0].mxu0 %v758
  %v2787 = vpop.f32.mrb[0].mxu0
  %v2788 = vadd.f32 %v2747, %v2787
  %v2789 = vpop.f32.mrb[0].mxu0
  %v2790 = vpop.f32.mrb[0].mxu0
  %v2791 = vadd.f32 %v2750, %v2790
  %v2792 = vpop.f32.mrb[0].mxu0
  %2793 = vdwg.mxu0
  %2794 = vmatprep.subr.bf16.mxu0 0
  %2795 = vmatpush1.bf16.msra.mxu0 %v2068
  %2796 = vmatprep.subr.bf16.mxu0 0
  %2797 = vmatpush1.bf16.msra.mxu0 %v2069
  %2798 = vmatprep.subr.bf16.mxu0 0
  %2799 = vmatpush1.bf16.msra.mxu0 %v2070
  %2800 = vmatprep.subr.bf16.mxu0 0
  %2801 = vmatpush1.bf16.msra.mxu0 %v2071
  %2802 = vmatprep.subr.bf16.mxu0 0
  %2803 = vmatpush1.bf16.msra.mxu0 %v2072
  %2804 = vmatprep.subr.bf16.mxu0 0
  %2805 = vmatpush1.bf16.msra.mxu0 %v2073
  %2806 = vmatprep.subr.bf16.mxu0 0
  %2807 = vmatpush1.bf16.msra.mxu0 %v2074
  %2808 = vmatprep.subr.bf16.mxu0 0
  %2809 = vmatpush1.bf16.msra.mxu0 %v2075
  %2810 = vmatprep.subr.bf16.mxu0 0
  %2811 = vmatpush1.bf16.msra.mxu0 %v2076
  %2812 = vmatprep.subr.bf16.mxu0 0
  %2813 = vmatpush1.bf16.msra.mxu0 %v2077
  %2814 = vmatprep.subr.bf16.mxu0 0
  %2815 = vmatpush1.bf16.msra.mxu0 %v2078
  %2816 = vmatprep.subr.bf16.mxu0 0
  %2817 = vmatpush1.bf16.msra.mxu0 %v2079
  %2818 = vmatprep.subr.bf16.mxu0 0
  %2819 = vmatpush1.bf16.msra.mxu0 %v2080
  %2820 = vmatprep.subr.bf16.mxu0 0
  %2821 = vmatpush1.bf16.msra.mxu0 %v2081
  %2822 = vmatprep.subr.bf16.mxu0 0
  %2823 = vmatpush1.bf16.msra.mxu0 %v2082
  %2824 = vmatprep.subr.bf16.mxu0 0
  %2825 = vmatpush1.bf16.msra.mxu0 %v2083
  %2826 = vmatprep.mubr.bf16.mxu0 %v761
  %2827 = vmatmul.mubr.bf16.gmra.mrb[0].mxu0 %v760
  %v2828 = vpop.f32.mrb[0].mxu0
  %v2829 = vadd.f32 %v2788, %v2828
  %v2830 = vpop.f32.mrb[0].mxu0
  %v2831 = vpop.f32.mrb[0].mxu0
  %v2832 = vadd.f32 %v2791, %v2831
  %v2833 = vpop.f32.mrb[0].mxu0
  %2834 = vdwg.mxu0
  %2835 = vmatprep.subr.bf16.mxu0 0
  %2836 = vmatpush1.bf16.msra.mxu0 %v2084
  %2837 = vmatprep.subr.bf16.mxu0 0
  %2838 = vmatpush1.bf16.msra.mxu0 %v2085
  %2839 = vmatprep.subr.bf16.mxu0 0
  %2840 = vmatpush1.bf16.msra.mxu0 %v2086
  %2841 = vmatprep.subr.bf16.mxu0 0
  %2842 = vmatpush1.bf16.msra.mxu0 %v2087
  %2843 = vmatprep.subr.bf16.mxu0 0
  %2844 = vmatpush1.bf16.msra.mxu0 %v2088
  %2845 = vmatprep.subr.bf16.mxu0 0
  %2846 = vmatpush1.bf16.msra.mxu0 %v2089
  %2847 = vmatprep.subr.bf16.mxu0 0
  %2848 = vmatpush1.bf16.msra.mxu0 %v2090
  %2849 = vmatprep.subr.bf16.mxu0 0
  %2850 = vmatpush1.bf16.msra.mxu0 %v2091
  %2851 = vmatprep.subr.bf16.mxu0 0
  %2852 = vmatpush1.bf16.msra.mxu0 %v2092
  %2853 = vmatprep.subr.bf16.mxu0 0
  %2854 = vmatpush1.bf16.msra.mxu0 %v2093
  %2855 = vmatprep.subr.bf16.mxu0 0
  %2856 = vmatpush1.bf16.msra.mxu0 %v2094
  %2857 = vmatprep.subr.bf16.mxu0 0
  %2858 = vmatpush1.bf16.msra.mxu0 %v2095
  %2859 = vmatprep.subr.bf16.mxu0 0
  %2860 = vmatpush1.bf16.msra.mxu0 %v2096
  %2861 = vmatprep.subr.bf16.mxu0 0
  %2862 = vmatpush1.bf16.msra.mxu0 %v2097
  %2863 = vmatprep.subr.bf16.mxu0 0
  %2864 = vmatpush1.bf16.msra.mxu0 %v2098
  %2865 = vmatprep.subr.bf16.mxu0 0
  %2866 = vmatpush1.bf16.msra.mxu0 %v2099
  %2867 = vmatprep.mubr.bf16.mxu0 %v763
  %2868 = vmatmul.mubr.bf16.gmra.mrb[0].mxu0 %v762
  %v2869 = vpop.f32.mrb[0].mxu0
  %v2870 = vadd.f32 %v2829, %v2869
  %v2871 = vpop.f32.mrb[0].mxu0
  %v2872 = vpop.f32.mrb[0].mxu0
  %v2873 = vadd.f32 %v2832, %v2872
  %v2874 = vpop.f32.mrb[0].mxu0
  %2875 = vdwg.mxu0
  %2876 = vmatprep.subr.bf16.mxu0 0
  %2877 = vmatpush1.bf16.msra.mxu0 %v2100
  %2878 = vmatprep.subr.bf16.mxu0 0
  %2879 = vmatpush1.bf16.msra.mxu0 %v2101
  %2880 = vmatprep.subr.bf16.mxu0 0
  %2881 = vmatpush1.bf16.msra.mxu0 %v2102
  %2882 = vmatprep.subr.bf16.mxu0 0
  %2883 = vmatpush1.bf16.msra.mxu0 %v2103
  %2884 = vmatprep.subr.bf16.mxu0 0
  %2885 = vmatpush1.bf16.msra.mxu0 %v2104
  %2886 = vmatprep.subr.bf16.mxu0 0
  %2887 = vmatpush1.bf16.msra.mxu0 %v2105
  %2888 = vmatprep.subr.bf16.mxu0 0
  %2889 = vmatpush1.bf16.msra.mxu0 %v2106
  %2890 = vmatprep.subr.bf16.mxu0 0
  %2891 = vmatpush1.bf16.msra.mxu0 %v2107
  %2892 = vmatprep.subr.bf16.mxu0 0
  %2893 = vmatpush1.bf16.msra.mxu0 %v2108
  %2894 = vmatprep.subr.bf16.mxu0 0
  %2895 = vmatpush1.bf16.msra.mxu0 %v2109
  %2896 = vmatprep.subr.bf16.mxu0 0
  %2897 = vmatpush1.bf16.msra.mxu0 %v2110
  %2898 = vmatprep.subr.bf16.mxu0 0
  %2899 = vmatpush1.bf16.msra.mxu0 %v2111
  %2900 = vmatprep.subr.bf16.mxu0 0
  %2901 = vmatpush1.bf16.msra.mxu0 %v2112
  %2902 = vmatprep.subr.bf16.mxu0 0
  %2903 = vmatpush1.bf16.msra.mxu0 %v2113
  %2904 = vmatprep.subr.bf16.mxu0 0
  %2905 = vmatpush1.bf16.msra.mxu0 %v2114
  %2906 = vmatprep.subr.bf16.mxu0 0
  %2907 = vmatpush1.bf16.msra.mxu0 %v2115
  %2908 = vmatprep.mubr.bf16.mxu0 %v765
  %2909 = vmatmul.mubr.bf16.gmra.mrb[0].mxu0 %v764
  %v2910 = vpop.f32.mrb[0].mxu0
  %v2911 = vadd.f32 %v2870, %v2910
  %v2912 = vpop.f32.mrb[0].mxu0
  %v2913 = vpop.f32.mrb[0].mxu0
  %v2914 = vadd.f32 %v2873, %v2913
  %v2915 = vpop.f32.mrb[0].mxu0
  %2916 = vdwg.mxu0
  %2917 = vmatprep.subr.bf16.mxu0 0
  %2918 = vmatpush1.bf16.msra.mxu0 %v2116
  %2919 = vmatprep.subr.bf16.mxu0 0
  %2920 = vmatpush1.bf16.msra.mxu0 %v2117
  %2921 = vmatprep.subr.bf16.mxu0 0
  %2922 = vmatpush1.bf16.msra.mxu0 %v2118
  %2923 = vmatprep.subr.bf16.mxu0 0
  %2924 = vmatpush1.bf16.msra.mxu0 %v2119
  %2925 = vmatprep.subr.bf16.mxu0 0
  %2926 = vmatpush1.bf16.msra.mxu0 %v2120
  %2927 = vmatprep.subr.bf16.mxu0 0
  %2928 = vmatpush1.bf16.msra.mxu0 %v2121
  %2929 = vmatprep.subr.bf16.mxu0 0
  %2930 = vmatpush1.bf16.msra.mxu0 %v2122
  %2931 = vmatprep.subr.bf16.mxu0 0
  %2932 = vmatpush1.bf16.msra.mxu0 %v2123
  %2933 = vmatprep.subr.bf16.mxu0 0
  %2934 = vmatpush1.bf16.msra.mxu0 %v2124
  %2935 = vmatprep.subr.bf16.mxu0 0
  %2936 = vmatpush1.bf16.msra.mxu0 %v2125
  %2937 = vmatprep.subr.bf16.mxu0 0
  %2938 = vmatpush1.bf16.msra.mxu0 %v2126
  %2939 = vmatprep.subr.bf16.mxu0 0
  %2940 = vmatpush1.bf16.msra.mxu0 %v2127
  %2941 = vmatprep.subr.bf16.mxu0 0
  %2942 = vmatpush1.bf16.msra.mxu0 %v2128
  %2943 = vmatprep.subr.bf16.mxu0 0
  %2944 = vmatpush1.bf16.msra.mxu0 %v2129
  %2945 = vmatprep.subr.bf16.mxu0 0
  %2946 = vmatpush1.bf16.msra.mxu0 %v2130
  %2947 = vmatprep.subr.bf16.mxu0 0
  %2948 = vmatpush1.bf16.msra.mxu0 %v2131
  %2949 = vmatprep.mubr.bf16.mxu0 %v767
  %2950 = vmatmul.mubr.bf16.gmra.mrb[0].mxu0 %v766
  %v2951 = vpop.f32.mrb[0].mxu0
  %v2952 = vadd.f32 %v2911, %v2951
  %v2953 = vpop.f32.mrb[0].mxu0
  %v2954 = vpop.f32.mrb[0].mxu0
  %v2955 = vadd.f32 %v2914, %v2954
  %v2956 = vpop.f32.mrb[0].mxu0
  %2957 = vdwg.mxu0
  %2958 = vmatprep.subr.bf16.mxu0 0
  %2959 = vmatpush1.bf16.msra.mxu0 %v2132
  %2960 = vmatprep.subr.bf16.mxu0 0
  %2961 = vmatpush1.bf16.msra.mxu0 %v2133
  %2962 = vmatprep.subr.bf16.mxu0 0
  %2963 = vmatpush1.bf16.msra.mxu0 %v2134
  %2964 = vmatprep.subr.bf16.mxu0 0
  %2965 = vmatpush1.bf16.msra.mxu0 %v2135
  %2966 = vmatprep.subr.bf16.mxu0 0
  %2967 = vmatpush1.bf16.msra.mxu0 %v2136
  %2968 = vmatprep.subr.bf16.mxu0 0
  %2969 = vmatpush1.bf16.msra.mxu0 %v2137
  %2970 = vmatprep.subr.bf16.mxu0 0
  %2971 = vmatpush1.bf16.msra.mxu0 %v2138
  %2972 = vmatprep.subr.bf16.mxu0 0
  %2973 = vmatpush1.bf16.msra.mxu0 %v2139
  %2974 = vmatprep.subr.bf16.mxu0 0
  %2975 = vmatpush1.bf16.msra.mxu0 %v2140
  %2976 = vmatprep.subr.bf16.mxu0 0
  %2977 = vmatpush1.bf16.msra.mxu0 %v2141
  %2978 = vmatprep.subr.bf16.mxu0 0
  %2979 = vmatpush1.bf16.msra.mxu0 %v2142
  %2980 = vmatprep.subr.bf16.mxu0 0
  %2981 = vmatpush1.bf16.msra.mxu0 %v2143
  %2982 = vmatprep.subr.bf16.mxu0 0
  %2983 = vmatpush1.bf16.msra.mxu0 %v2144
  %2984 = vmatprep.subr.bf16.mxu0 0
  %2985 = vmatpush1.bf16.msra.mxu0 %v2145
  %2986 = vmatprep.subr.bf16.mxu0 0
  %2987 = vmatpush1.bf16.msra.mxu0 %v2146
  %2988 = vmatprep.subr.bf16.mxu0 0
  %2989 = vmatpush1.bf16.msra.mxu0 %v2147
  %2990 = vmatprep.mubr.bf16.mxu0 %v769
  %2991 = vmatmul.mubr.bf16.gmra.mrb[0].mxu0 %v768
  %v2992 = vpop.f32.mrb[0].mxu0
  %v2993 = vadd.f32 %v2952, %v2992
  %v2994 = vpop.f32.mrb[0].mxu0
  %v2995 = vpop.f32.mrb[0].mxu0
  %v2996 = vadd.f32 %v2955, %v2995
  %v2997 = vpop.f32.mrb[0].mxu0
  %2998 = vdwg.mxu0
  %2999 = vmatprep.subr.bf16.mxu0 0
  %3000 = vmatpush1.bf16.msra.mxu0 %v2148
  %3001 = vmatprep.subr.bf16.mxu0 0
  %3002 = vmatpush1.bf16.msra.mxu0 %v2149
  %3003 = vmatprep.subr.bf16.mxu0 0
  %3004 = vmatpush1.bf16.msra.mxu0 %v2150
  %3005 = vmatprep.subr.bf16.mxu0 0
  %3006 = vmatpush1.bf16.msra.mxu0 %v2151
  %3007 = vmatprep.subr.bf16.mxu0 0
  %3008 = vmatpush1.bf16.msra.mxu0 %v2152
  %3009 = vmatprep.subr.bf16.mxu0 0
  %3010 = vmatpush1.bf16.msra.mxu0 %v2153
  %3011 = vmatprep.subr.bf16.mxu0 0
  %3012 = vmatpush1.bf16.msra.mxu0 %v2154
  %3013 = vmatprep.subr.bf16.mxu0 0
  %3014 = vmatpush1.bf16.msra.mxu0 %v2155
  %3015 = vmatprep.subr.bf16.mxu0 0
  %3016 = vmatpush1.bf16.msra.mxu0 %v2156
  %3017 = vmatprep.subr.bf16.mxu0 0
  %3018 = vmatpush1.bf16.msra.mxu0 %v2157
  %3019 = vmatprep.subr.bf16.mxu0 0
  %3020 = vmatpush1.bf16.msra.mxu0 %v2158
  %3021 = vmatprep.subr.bf16.mxu0 0
  %3022 = vmatpush1.bf16.msra.mxu0 %v2159
  %3023 = vmatprep.subr.bf16.mxu0 0
  %3024 = vmatpush1.bf16.msra.mxu0 %v2160
  %3025 = vmatprep.subr.bf16.mxu0 0
  %3026 = vmatpush1.bf16.msra.mxu0 %v2161
  %3027 = vmatprep.subr.bf16.mxu0 0
  %3028 = vmatpush1.bf16.msra.mxu0 %v2162
  %3029 = vmatprep.subr.bf16.mxu0 0
  %3030 = vmatpush1.bf16.msra.mxu0 %v2163
  %3031 = vmatprep.mubr.bf16.mxu0 %v771
  %3032 = vmatmul.mubr.bf16.gmra.mrb[0].mxu0 %v770
  %v3033 = vpop.f32.mrb[0].mxu0
  %v3034 = vadd.f32 %v2993, %v3033
  %v3035 = vpop.f32.mrb[0].mxu0
  %v3036 = vpop.f32.mrb[0].mxu0
  %v3037 = vadd.f32 %v2996, %v3036
  %v3038 = vpop.f32.mrb[0].mxu0
  %3039 = vdwg.mxu0
  %3040 = vmatprep.subr.bf16.mxu0 0
  %3041 = vmatpush1.bf16.msra.mxu0 %v2164
  %3042 = vmatprep.subr.bf16.mxu0 0
  %3043 = vmatpush1.bf16.msra.mxu0 %v2165
  %3044 = vmatprep.subr.bf16.mxu0 0
  %3045 = vmatpush1.bf16.msra.mxu0 %v2166
  %3046 = vmatprep.subr.bf16.mxu0 0
  %3047 = vmatpush1.bf16.msra.mxu0 %v2167
  %3048 = vmatprep.subr.bf16.mxu0 0
  %3049 = vmatpush1.bf16.msra.mxu0 %v2168
  %3050 = vmatprep.subr.bf16.mxu0 0
  %3051 = vmatpush1.bf16.msra.mxu0 %v2169
  %3052 = vmatprep.subr.bf16.mxu0 0
  %3053 = vmatpush1.bf16.msra.mxu0 %v2170
  %3054 = vmatprep.subr.bf16.mxu0 0
  %3055 = vmatpush1.bf16.msra.mxu0 %v2171
  %3056 = vmatprep.subr.bf16.mxu0 0
  %3057 = vmatpush1.bf16.msra.mxu0 %v2172
  %3058 = vmatprep.subr.bf16.mxu0 0
  %3059 = vmatpush1.bf16.msra.mxu0 %v2173
  %3060 = vmatprep.subr.bf16.mxu0 0
  %3061 = vmatpush1.bf16.msra.mxu0 %v2174
  %3062 = vmatprep.subr.bf16.mxu0 0
  %3063 = vmatpush1.bf16.msra.mxu0 %v2175
  %3064 = vmatprep.subr.bf16.mxu0 0
  %3065 = vmatpush1.bf16.msra.mxu0 %v2176
  %3066 = vmatprep.subr.bf16.mxu0 0
  %3067 = vmatpush1.bf16.msra.mxu0 %v2177
  %3068 = vmatprep.subr.bf16.mxu0 0
  %3069 = vmatpush1.bf16.msra.mxu0 %v2178
  %3070 = vmatprep.subr.bf16.mxu0 0
  %3071 = vmatpush1.bf16.msra.mxu0 %v2179
  %3072 = vmatprep.mubr.bf16.mxu0 %v773
  %3073 = vmatmul.mubr.bf16.gmra.mrb[0].mxu0 %v772
  %v3074 = vpop.f32.mrb[0].mxu0
  %v3075 = vadd.f32 %v3034, %v3074
  %v3076 = vpop.f32.mrb[0].mxu0
  %v3077 = vpop.f32.mrb[0].mxu0
  %v3078 = vadd.f32 %v3037, %v3077
  %v3079 = vpop.f32.mrb[0].mxu0
  %3080 = vdwg.mxu0
  %3081 = vmatprep.subr.bf16.mxu0 0
  %3082 = vmatpush1.bf16.msra.mxu0 %v2180
  %3083 = vmatprep.subr.bf16.mxu0 0
  %3084 = vmatpush1.bf16.msra.mxu0 %v2181
  %3085 = vmatprep.subr.bf16.mxu0 0
  %3086 = vmatpush1.bf16.msra.mxu0 %v2182
  %3087 = vmatprep.subr.bf16.mxu0 0
  %3088 = vmatpush1.bf16.msra.mxu0 %v2183
  %3089 = vmatprep.subr.bf16.mxu0 0
  %3090 = vmatpush1.bf16.msra.mxu0 %v2184
  %3091 = vmatprep.subr.bf16.mxu0 0
  %3092 = vmatpush1.bf16.msra.mxu0 %v2185
  %3093 = vmatprep.subr.bf16.mxu0 0
  %3094 = vmatpush1.bf16.msra.mxu0 %v2186
  %3095 = vmatprep.subr.bf16.mxu0 0
  %3096 = vmatpush1.bf16.msra.mxu0 %v2187
  %3097 = vmatprep.subr.bf16.mxu0 0
  %3098 = vmatpush1.bf16.msra.mxu0 %v2188
  %3099 = vmatprep.subr.bf16.mxu0 0
  %3100 = vmatpush1.bf16.msra.mxu0 %v2189
  %3101 = vmatprep.subr.bf16.mxu0 0
  %3102 = vmatpush1.bf16.msra.mxu0 %v2190
  %3103 = vmatprep.subr.bf16.mxu0 0
  %3104 = vmatpush1.bf16.msra.mxu0 %v2191
  %3105 = vmatprep.subr.bf16.mxu0 0
  %3106 = vmatpush1.bf16.msra.mxu0 %v2192
  %3107 = vmatprep.subr.bf16.mxu0 0
  %3108 = vmatpush1.bf16.msra.mxu0 %v2193
  %3109 = vmatprep.subr.bf16.mxu0 0
  %3110 = vmatpush1.bf16.msra.mxu0 %v2194
  %3111 = vmatprep.subr.bf16.mxu0 0
  %3112 = vmatpush1.bf16.msra.mxu0 %v2195
  %3113 = vmatprep.mubr.bf16.mxu0 %v775
  %3114 = vmatmul.mubr.bf16.gmra.mrb[0].mxu0 %v774
  %v3115 = vpop.f32.mrb[0].mxu0
  %v3116 = vadd.f32 %v3075, %v3115
  %v3117 = vpop.f32.mrb[0].mxu0
  %v3118 = vpop.f32.mrb[0].mxu0
  %v3119 = vadd.f32 %v3078, %v3118
  %v3120 = vpop.f32.mrb[0].mxu0
  %3121 = vdwg.mxu0
  %3122 = vmatprep.subr.bf16.mxu0 0
  %3123 = vmatpush1.bf16.msra.mxu0 %v2196
  %3124 = vmatprep.subr.bf16.mxu0 0
  %3125 = vmatpush1.bf16.msra.mxu0 %v2197
  %3126 = vmatprep.subr.bf16.mxu0 0
  %3127 = vmatpush1.bf16.msra.mxu0 %v2198
  %3128 = vmatprep.subr.bf16.mxu0 0
  %3129 = vmatpush1.bf16.msra.mxu0 %v2199
  %3130 = vmatprep.subr.bf16.mxu0 0
  %3131 = vmatpush1.bf16.msra.mxu0 %v2200
  %3132 = vmatprep.subr.bf16.mxu0 0
  %3133 = vmatpush1.bf16.msra.mxu0 %v2201
  %3134 = vmatprep.subr.bf16.mxu0 0
  %3135 = vmatpush1.bf16.msra.mxu0 %v2202
  %3136 = vmatprep.subr.bf16.mxu0 0
  %3137 = vmatpush1.bf16.msra.mxu0 %v2203
  %3138 = vmatprep.subr.bf16.mxu0 0
  %3139 = vmatpush1.bf16.msra.mxu0 %v2204
  %3140 = vmatprep.subr.bf16.mxu0 0
  %3141 = vmatpush1.bf16.msra.mxu0 %v2205
  %3142 = vmatprep.subr.bf16.mxu0 0
  %3143 = vmatpush1.bf16.msra.mxu0 %v2206
  %3144 = vmatprep.subr.bf16.mxu0 0
  %3145 = vmatpush1.bf16.msra.mxu0 %v2207
  %3146 = vmatprep.subr.bf16.mxu0 0
  %3147 = vmatpush1.bf16.msra.mxu0 %v2208
  %3148 = vmatprep.subr.bf16.mxu0 0
  %3149 = vmatpush1.bf16.msra.mxu0 %v2209
  %3150 = vmatprep.subr.bf16.mxu0 0
  %3151 = vmatpush1.bf16.msra.mxu0 %v2210
  %3152 = vmatprep.subr.bf16.mxu0 0
  %3153 = vmatpush1.bf16.msra.mxu0 %v2211
  %3154 = vmatprep.mubr.bf16.mxu0 %v777
  %3155 = vmatmul.mubr.bf16.gmra.mrb[0].mxu0 %v776
  %v3156 = vpop.f32.mrb[0].mxu0
  %v3157 = vadd.f32 %v3116, %v3156
  %v3158 = vpop.f32.mrb[0].mxu0
  %v3159 = vpop.f32.mrb[0].mxu0
  %v3160 = vadd.f32 %v3119, %v3159
  %v3161 = vpop.f32.mrb[0].mxu0
  %3162 = vdwg.mxu0
  %3163 = vmatprep.subr.bf16.mxu0 0
  %3164 = vmatpush1.bf16.msra.mxu0 %v2212
  %3165 = vmatprep.subr.bf16.mxu0 0
  %3166 = vmatpush1.bf16.msra.mxu0 %v2213
  %3167 = vmatprep.subr.bf16.mxu0 0
  %3168 = vmatpush1.bf16.msra.mxu0 %v2214
  %3169 = vmatprep.subr.bf16.mxu0 0
  %3170 = vmatpush1.bf16.msra.mxu0 %v2215
  %3171 = vmatprep.subr.bf16.mxu0 0
  %3172 = vmatpush1.bf16.msra.mxu0 %v2216
  %3173 = vmatprep.subr.bf16.mxu0 0
  %3174 = vmatpush1.bf16.msra.mxu0 %v2217
  %3175 = vmatprep.subr.bf16.mxu0 0
  %3176 = vmatpush1.bf16.msra.mxu0 %v2218
  %3177 = vmatprep.subr.bf16.mxu0 0
  %3178 = vmatpush1.bf16.msra.mxu0 %v2219
  %3179 = vmatprep.subr.bf16.mxu0 0
  %3180 = vmatpush1.bf16.msra.mxu0 %v2220
  %3181 = vmatprep.subr.bf16.mxu0 0
  %3182 = vmatpush1.bf16.msra.mxu0 %v2221
  %3183 = vmatprep.subr.bf16.mxu0 0
  %3184 = vmatpush1.bf16.msra.mxu0 %v2222
  %3185 = vmatprep.subr.bf16.mxu0 0
  %3186 = vmatpush1.bf16.msra.mxu0 %v2223
  %3187 = vmatprep.subr.bf16.mxu0 0
  %3188 = vmatpush1.bf16.msra.mxu0 %v2224
  %3189 = vmatprep.subr.bf16.mxu0 0
  %3190 = vmatpush1.bf16.msra.mxu0 %v2225
  %3191 = vmatprep.subr.bf16.mxu0 0
  %3192 = vmatpush1.bf16.msra.mxu0 %v2226
  %3193 = vmatprep.subr.bf16.mxu0 0
  %3194 = vmatpush1.bf16.msra.mxu0 %v2227
  %3195 = vmatprep.mubr.bf16.mxu0 %v779
  %3196 = vmatmul.mubr.bf16.gmra.mrb[0].mxu0 %v778
  %v3197 = vpop.f32.mrb[0].mxu0
  %v3198 = vadd.f32 %v3157, %v3197
  %v3199 = vpop.f32.mrb[0].mxu0
  %v3200 = vpop.f32.mrb[0].mxu0
  %v3201 = vadd.f32 %v3160, %v3200
  %v3202 = vpop.f32.mrb[0].mxu0
  %3203 = vdwg.mxu0
  %3204 = vmatprep.subr.bf16.mxu0 0
  %3205 = vmatpush1.bf16.msra.mxu0 %v2228
  %3206 = vmatprep.subr.bf16.mxu0 0
  %3207 = vmatpush1.bf16.msra.mxu0 %v2229
  %3208 = vmatprep.subr.bf16.mxu0 0
  %3209 = vmatpush1.bf16.msra.mxu0 %v2230
  %3210 = vmatprep.subr.bf16.mxu0 0
  %3211 = vmatpush1.bf16.msra.mxu0 %v2231
  %3212 = vmatprep.subr.bf16.mxu0 0
  %3213 = vmatpush1.bf16.msra.mxu0 %v2232
  %3214 = vmatprep.subr.bf16.mxu0 0
  %3215 = vmatpush1.bf16.msra.mxu0 %v2233
  %3216 = vmatprep.subr.bf16.mxu0 0
  %3217 = vmatpush1.bf16.msra.mxu0 %v2234
  %3218 = vmatprep.subr.bf16.mxu0 0
  %3219 = vmatpush1.bf16.msra.mxu0 %v2235
  %3220 = vmatprep.subr.bf16.mxu0 0
  %3221 = vmatpush1.bf16.msra.mxu0 %v2236
  %3222 = vmatprep.subr.bf16.mxu0 0
  %3223 = vmatpush1.bf16.msra.mxu0 %v2237
  %3224 = vmatprep.subr.bf16.mxu0 0
  %3225 = vmatpush1.bf16.msra.mxu0 %v2238
  %3226 = vmatprep.subr.bf16.mxu0 0
  %3227 = vmatpush1.bf16.msra.mxu0 %v2239
  %3228 = vmatprep.subr.bf16.mxu0 0
  %3229 = vmatpush1.bf16.msra.mxu0 %v2240
  %3230 = vmatprep.subr.bf16.mxu0 0
  %3231 = vmatpush1.bf16.msra.mxu0 %v2241
  %3232 = vmatprep.subr.bf16.mxu0 0
  %3233 = vmatpush1.bf16.msra.mxu0 %v2242
  %3234 = vmatprep.subr.bf16.mxu0 0
  %3235 = vmatpush1.bf16.msra.mxu0 %v2243
  %3236 = vmatprep.mubr.bf16.mxu0 %v781
  %3237 = vmatmul.mubr.bf16.gmra.mrb[0].mxu0 %v780
  %v3238 = vpop.f32.mrb[0].mxu0
  %v3239 = vadd.f32 %v3198, %v3238
  %v3240 = vpop.f32.mrb[0].mxu0
  %v3241 = vpop.f32.mrb[0].mxu0
  %v3242 = vadd.f32 %v3201, %v3241
  %v3243 = vpop.f32.mrb[0].mxu0
  %3244 = vdwg.mxu0
  %3245 = vmatprep.subr.bf16.mxu0 0
  %3246 = vmatpush1.bf16.msra.mxu0 %v2244
  %3247 = vmatprep.subr.bf16.mxu0 0
  %3248 = vmatpush1.bf16.msra.mxu0 %v2245
  %3249 = vmatprep.subr.bf16.mxu0 0
  %3250 = vmatpush1.bf16.msra.mxu0 %v2246
  %3251 = vmatprep.subr.bf16.mxu0 0
  %3252 = vmatpush1.bf16.msra.mxu0 %v2247
  %3253 = vmatprep.subr.bf16.mxu0 0
  %3254 = vmatpush1.bf16.msra.mxu0 %v2248
  %3255 = vmatprep.subr.bf16.mxu0 0
  %3256 = vmatpush1.bf16.msra.mxu0 %v2249
  %3257 = vmatprep.subr.bf16.mxu0 0
  %3258 = vmatpush1.bf16.msra.mxu0 %v2250
  %3259 = vmatprep.subr.bf16.mxu0 0
  %3260 = vmatpush1.bf16.msra.mxu0 %v2251
  %3261 = vmatprep.subr.bf16.mxu0 0
  %3262 = vmatpush1.bf16.msra.mxu0 %v2252
  %3263 = vmatprep.subr.bf16.mxu0 0
  %3264 = vmatpush1.bf16.msra.mxu0 %v2253
  %3265 = vmatprep.subr.bf16.mxu0 0
  %3266 = vmatpush1.bf16.msra.mxu0 %v2254
  %3267 = vmatprep.subr.bf16.mxu0 0
  %3268 = vmatpush1.bf16.msra.mxu0 %v2255
  %3269 = vmatprep.subr.bf16.mxu0 0
  %3270 = vmatpush1.bf16.msra.mxu0 %v2256
  %3271 = vmatprep.subr.bf16.mxu0 0
  %3272 = vmatpush1.bf16.msra.mxu0 %v2257
  %3273 = vmatprep.subr.bf16.mxu0 0
  %3274 = vmatpush1.bf16.msra.mxu0 %v2258
  %3275 = vmatprep.subr.bf16.mxu0 0
  %3276 = vmatpush1.bf16.msra.mxu0 %v2259
  %3277 = vmatprep.mubr.bf16.mxu0 %v783
  %3278 = vmatmul.mubr.bf16.gmra.mrb[0].mxu0 %v782
  %v3279 = vpop.f32.mrb[0].mxu0
  %v3280 = vadd.f32 %v3239, %v3279
  %v3281 = vpop.f32.mrb[0].mxu0
  %v3282 = vpop.f32.mrb[0].mxu0
  %v3283 = vadd.f32 %v3242, %v3282
  %v3284 = vpop.f32.mrb[0].mxu0
  %3285 = vdwg.mxu0
  %v3286 = vmax.f32 %v3280, 0.0
  %v3287 = vmax.f32 %v3283, 0.0
  %v3288 = vpack.c.bf16 %v3287, %v3286
  %v3289 = vld [vmem:[%s3] sm:$0xf]
  %v3290 = vld [vmem:[%s3 + $0x4] sm:$0xf]
  %v3291 = vld [vmem:[%s3 + $0x8] sm:$0xf]
  %v3292 = vld [vmem:[%s3 + $0xc] sm:$0xf]
  %v3293 = vld [vmem:[%s3 + $0x10] sm:$0xf]
  %v3294 = vld [vmem:[%s3 + $0x14] sm:$0xf]
  %v3295 = vld [vmem:[%s3 + $0x18] sm:$0xf]
  %v3296 = vld [vmem:[%s3 + $0x1c] sm:$0xf]
  %v3297 = vld [vmem:[%s3 + $0x20] sm:$0xf]
  %v3298 = vld [vmem:[%s3 + $0x24] sm:$0xf]
  %v3299 = vld [vmem:[%s3 + $0x28] sm:$0xf]
  %v3300 = vld [vmem:[%s3 + $0x2c] sm:$0xf]
  %v3301 = vld [vmem:[%s3 + $0x30] sm:$0xf]
  %v3302 = vld [vmem:[%s3 + $0x34] sm:$0xf]
  %v3303 = vld [vmem:[%s3 + $0x38] sm:$0xf]
  %v3304 = vld [vmem:[%s3 + $0x3c] sm:$0xf]
  %v3305 = vld [vmem:[%s4] sm:$0x1]
  %v3307 = vlaneseq
  %v3308 = vshrl.u32 %v3307, 7
  %v3309 = vsub.s32 0, %v3308
  %v3310 = vrot.slane %v3305, %v3309
  %v3328 = vunpack.c.l.b16 %v3289
  %v3329 = vunpack.c.l.b16 %v3290
  %v3330 = vunpack.c.l.b16 %v3291
  %v3331 = vunpack.c.l.b16 %v3292
  %v3332 = vunpack.c.l.b16 %v3293
  %v3333 = vunpack.c.l.b16 %v3294
  %v3334 = vunpack.c.l.b16 %v3295
  %v3335 = vunpack.c.l.b16 %v3296
  %v3336 = vunpack.c.l.b16 %v3297
  %v3337 = vunpack.c.l.b16 %v3298
  %v3338 = vunpack.c.l.b16 %v3299
  %v3339 = vunpack.c.l.b16 %v3300
  %v3340 = vunpack.c.l.b16 %v3301
  %v3341 = vunpack.c.l.b16 %v3302
  %v3342 = vunpack.c.l.b16 %v3303
  %v3343 = vunpack.c.l.b16 %v3304
  %v3344 = vpack.c.b16 %v3329, %v3328
  %v3345 = vpack.c.b16 %v3331, %v3330
  %v3346 = vpack.c.b16 %v3333, %v3332
  %v3347 = vpack.c.b16 %v3335, %v3334
  %v3348 = vpack.c.b16 %v3337, %v3336
  %v3349 = vpack.c.b16 %v3339, %v3338
  %v3350 = vpack.c.b16 %v3341, %v3340
  %v3351 = vpack.c.b16 %v3343, %v3342
  %3360 = vmatprep.subr.bf16.mxu0 0
  %3361 = vmatpush1.bf16.msra.mxu0 %v3344
  %3362 = vmatprep.subr.bf16.mxu0 0
  %3363 = vmatpush1.bf16.msra.mxu0 %v3345
  %3364 = vmatprep.subr.bf16.mxu0 0
  %3365 = vmatpush1.bf16.msra.mxu0 %v3346
  %3366 = vmatprep.subr.bf16.mxu0 0
  %3367 = vmatpush1.bf16.msra.mxu0 %v3347
  %3368 = vmatprep.subr.bf16.mxu0 0
  %3369 = vmatpush1.bf16.msra.mxu0 %v3348
  %3370 = vmatprep.subr.bf16.mxu0 0
  %3371 = vmatpush1.bf16.msra.mxu0 %v3349
  %3372 = vmatprep.subr.bf16.mxu0 0
  %3373 = vmatpush1.bf16.msra.mxu0 %v3350
  %3374 = vmatprep.subr.bf16.mxu0 0
  %3375 = vmatpush1.bf16.msra.mxu0 %v3351
  %3376 = vmatprep.subr.bf16.mxu0 0
  %3377 = vmatpush1.bf16.msra.mxu0 0
  %3378 = vmatprep.subr.bf16.mxu0 0
  %3379 = vmatpush1.bf16.msra.mxu0 0
  %3380 = vmatprep.subr.bf16.mxu0 0
  %3381 = vmatpush1.bf16.msra.mxu0 0
  %3382 = vmatprep.subr.bf16.mxu0 0
  %3383 = vmatpush1.bf16.msra.mxu0 0
  %3384 = vmatprep.subr.bf16.mxu0 0
  %3385 = vmatpush1.bf16.msra.mxu0 0
  %3386 = vmatprep.subr.bf16.mxu0 0
  %3387 = vmatpush1.bf16.msra.mxu0 0
  %3388 = vmatprep.subr.bf16.mxu0 0
  %3389 = vmatpush1.bf16.msra.mxu0 0
  %3390 = vmatprep.subr.bf16.mxu0 0
  %3391 = vmatpush1.bf16.msra.mxu0 0
  %3392 = vmatprep.mubr.bf16.mxu0 0
  %3393 = vmatmul.mubr.bf16.gmra.mrb[0].mxu0 %v3288
  %v3394 = vpop.f32.mrb[0].mxu0
  %v3395 = vadd.f32 %v3310, %v3394
  %v3396 = vpop.f32.mrb[0].mxu0
  %v3397 = vpop.f32.mrb[0].mxu0
  %v3398 = vadd.f32 %v3310, %v3397
  %v3399 = vpop.f32.mrb[0].mxu0
  %3400 = vdwg.mxu0
  %3401 = vst [vmem:[%s5] sm:$0xff] %v3395
  %3402 = vst [vmem:[%s5 + $0x8] sm:$0xff] %v3398
  // Predicated region
  $region22: #{mnist_net_forward.5} parent=0 // pred_check
    _
  $region23: #{mnist_net_forward.5} parent=0 // pred_check_branch
    %3404 = sbr.rel (0) target = $region25
  $region24: #{mnist_net_forward.5} parent=0 // pred_region
    _
  $region25: #{mnist_net_forward.5} parent=0 // pred_fallthru
    _
  // Predicated region
  $region26: #{mnist_net_forward.5} parent=0 // pred_check
    _
  $region27: #{mnist_net_forward.5} parent=0 // pred_check_branch
    %3406 = sbr.rel (0) target = $region29
  $region28: #{mnist_net_forward.5} parent=0 // pred_region
    _
  $region29: #{mnist_net_forward.5} parent=0 // pred_fallthru
    _

</llo_original>
